<compile_context>
chip_gen: v6e
topology: v6e:2x2x1
jax: 0.10.0
libtpu: 0.0.40
codegen_flags: <defaults>
</compile_context>

<pallas_src>
import jax
import jax.numpy as jnp
from jax.experimental import pallas as pl
from jax.experimental.pallas import tpu as pltpu

EPS = 1e-8  # safe_norm epsilon


def _cdiv(a, b):
    return -(-a // b)


def _round_up(a, m):
    return _cdiv(a, m) * m


# -----------------------------------------------------------------------------
# Kernel
# -----------------------------------------------------------------------------
def gcp2_kernel(s_ref, vstk_ref, fr_ref, wdown_ref, wsc_ref, wvec_ref, out_ref):
    """One row-tile of the GCP2 forward pass.

    s_ref     [TE, Si]          scalar features
    vstk_ref  [3, TE, Vi]       vector features, axis-major (x/y/z planes)
    fr_ref    [TE, 9]           frames flattened as index 3*f + x
    wdown_ref [Vi, H+3]         [vector_down | vector_down_frames] (column-fused)
    wsc_ref   [Si+H+9+1, SO]    scalar_out rows [scalar|vnorm|frames] + bias row
    wvec_ref  [H+SO+1, Vo]      [vector_up | vector_out_scale | gate bias]
    out_ref   [TE, P>=SO+3*Vo]  packed output [silu(s) | vx | vy | vz | 0 pad]
    """
    f32 = jnp.float32
    te, si = s_ref.shape
    h = wdown_ref.shape[1] - 3
    so = wsc_ref.shape[1]
    vo = wvec_ref.shape[1]

    # ---- stage 1: fused down-projection for all three xyz planes at once ----
    # row blocks: [0:te]=x, [te:2te]=y, [2te:3te]=z (sublane concat, te % 8 == 0)
    v2d = jnp.concatenate([vstk_ref[0], vstk_ref[1], vstk_ref[2]], axis=0)   # [3TE, Vi]
    h_all = jnp.dot(v2d, wdown_ref[...], preferred_element_type=f32)        # [3TE, H+3]
    h_v = h_all[:, :h]                                                       # vector_down part

    # safe_norm over the xyz axis (sum of squared row blocks)
    sq = h_v * h_v
    vnorm = jnp.sqrt(sq[0:te] + sq[te:2 * te] + sq[2 * te:3 * te] + EPS)     # [TE, H]

    # ---- stage 2: scalar_out on merged = [scalar | vnorm | frame scalars] ---
    s_pre = (jnp.dot(s_ref[...], wsc_ref[0:si, :], preferred_element_type=f32)
             + jnp.dot(vnorm, wsc_ref[si:si + h, :], preferred_element_type=f32)
             + wsc_ref[si + h + 9:si + h + 10, :])                           # bias row
    # frame scalarization (node_inputs=False, node_mask=None):
    #   sh[:, 3*s+f] = sum_x frames[:, f, x] * (v @ W_down_frames)[:, x, s]
    # folded directly into s_pre as nine rank-1 VPU updates (no concat, no K=9
    # matmul).
    dx = h_all[0:te, h:h + 3]
    dy = h_all[te:2 * te, h:h + 3]
    dz = h_all[2 * te:3 * te, h:h + 3]
    fr = fr_ref[...]                                                         # [TE, 9]
    for s_idx in range(3):
        for f_idx in range(3):
            c = (dx[:, s_idx:s_idx + 1] * fr[:, 3 * f_idx + 0:3 * f_idx + 1]
                 + dy[:, s_idx:s_idx + 1] * fr[:, 3 * f_idx + 1:3 * f_idx + 2]
                 + dz[:, s_idx:s_idx + 1] * fr[:, 3 * f_idx + 2:3 * f_idx + 3])
            row = si + h + 3 * s_idx + f_idx
            s_pre = s_pre + c * wsc_ref[row:row + 1, :]

    s_act = jax.nn.silu(s_pre)       # computed once; reused for gate and output

    # ---- stage 3: vector up-projection + vector gate -------------------------
    u_all = jnp.dot(h_v, wvec_ref[0:h, :], preferred_element_type=f32)       # [3TE, Vo]
    gate = jax.nn.sigmoid(
        jnp.dot(s_act, wvec_ref[h:h + so, :], preferred_element_type=f32)
        + wvec_ref[h + so:h + so + 1, :])                                    # [TE, Vo]

    # ---- single lane-dense output slab ---------------------------------------
    out_ref[:, 0:so] = s_act
    out_ref[:, so:so + vo] = u_all[0:te] * gate
    out_ref[:, so + vo:so + 2 * vo] = u_all[te:2 * te] * gate
    out_ref[:, so + 2 * vo:so + 3 * vo] = u_all[2 * te:3 * te] * gate
    pad = out_ref.shape[1] - (so + 3 * vo)
    if pad:
        out_ref[:, so + 3 * vo:] = jnp.zeros((te, pad), f32)


# -----------------------------------------------------------------------------
# Wrapper
# -----------------------------------------------------------------------------
def gcp2_forward(scalar_rep, vector_rep, edge_index, frames, params, *, tile_e=512):
    """GCP2 forward (default config). edge_index is unused because the default
    call uses node_inputs=False and node_mask=None (scalarize is a pure per-edge
    frame projection in that case)."""
    del edge_index  # not consumed in the default (node_inputs=False) path
    E, si = scalar_rep.shape
    _, vi, _ = vector_rep.shape
    h = params["wd"].shape[1]
    so = params["ws"].shape[1]
    vo = params["wup"].shape[1]
    f32 = jnp.float32

    # ---- tiling: big tiles, but keep >= 2 tiles so v7x's two TCs share work ----
    n_tiles = max(2, _cdiv(E, tile_e)) if E > 8 else 1
    te = _round_up(_cdiv(E, n_tiles), 8)
    e_pad = n_tiles * te

    # ---- data layout prep -----------------------------------------------------
    s_in = scalar_rep.astype(f32)
    vstk = jnp.moveaxis(vector_rep.astype(f32), -1, 0)      # [3, E, Vi] axis-major
    fr9 = frames.astype(f32).reshape(E, 9)                  # index 3*f + x
    if e_pad > E:
        p = e_pad - E
        s_in = jnp.pad(s_in, ((0, p), (0, 0)))
        vstk = jnp.pad(vstk, ((0, 0), (0, p), (0, 0)))
        fr9 = jnp.pad(fr9, ((0, p), (0, 0)))

    # ---- packed weight slabs (one per matmul stage) ---------------------------
    wdown = jnp.concatenate([params["wd"], params["wdf"]], axis=1).astype(f32)        # [Vi, H+3]
    wsc = jnp.concatenate([params["ws"], params["bs"].reshape(1, so)], axis=0).astype(f32)   # [Si+H+9+1, SO]
    wvec = jnp.concatenate([params["wup"], params["wg"], params["bg"].reshape(1, vo)],
                           axis=0).astype(f32)                                        # [H+SO+1, Vo]

    p_out = _round_up(so + 3 * vo, 128)                     # lane-dense output slab

    out = pl.pallas_call(
        gcp2_kernel,
        grid=(n_tiles,),
        in_specs=[
            pl.BlockSpec((te, si), lambda i: (i, 0)),             # scalar features
            pl.BlockSpec((3, te, vi), lambda i: (0, i, 0)),       # stacked xyz planes
            pl.BlockSpec((te, 9), lambda i: (i, 0)),              # frames (flattened)
            pl.BlockSpec((vi, h + 3), lambda i: (0, 0)),          # fused down weight
            pl.BlockSpec((si + h + 10, so), lambda i: (0, 0)),    # scalar_out slab (+bias)
            pl.BlockSpec((h + so + 1, vo), lambda i: (0, 0)),     # up/gate slab (+bias)
        ],
        out_specs=pl.BlockSpec((te, p_out), lambda i: (i, 0)),
        out_shape=jax.ShapeDtypeStruct((e_pad, p_out), f32),
        compiler_params=pltpu.CompilerParams(
            dimension_semantics=("parallel",),
            # working set per step is < 1 MiB even at te=512; 32 MiB keeps ample
            # headroom on every generation (v7x physical VMEM = 64 MiB / TC).
            vmem_limit_bytes=32 * 1024 * 1024,
        ),
    )(s_in, vstk, fr9, wdown, wsc, wvec)

    s_out = out[:E, :so]
    # back to the PyTorch layout [E, Vo, 3] (kept outside the kernel on purpose)
    vec_out = jnp.stack([out[:E, so:so + vo],
                         out[:E, so + vo:so + 2 * vo],
                         out[:E, so + 2 * vo:so + 3 * vo]], axis=-1)
    return s_out, vec_out


# -----------------------------------------------------------------------------
# Pure-JAX reference (mirrors the PyTorch forward, default config)
# -----------------------------------------------------------------------------
def gcp2_reference(scalar_rep, vector_rep, frames, params):
    E = scalar_rep.shape[0]
    v_pre = jnp.swapaxes(vector_rep, -1, -2)                 # [E, 3, Vi]
    vhr = v_pre @ params["wd"]                               # [E, 3, H]
    vnorm = jnp.sqrt(jnp.sum(vhr ** 2, axis=-2) + EPS)       # [E, H]
    vdf = v_pre @ params["wdf"]                              # [E, 3(x), 3(s)]
    sh = jnp.einsum("efx,exs->esf", frames, vdf).reshape(E, 9)
    merged = jnp.concatenate([scalar_rep, vnorm, sh], axis=-1)
    s_pre = merged @ params["ws"] + params["bs"]
    vup = jnp.swapaxes(vhr @ params["wup"], -1, -2)          # [E, Vo, 3]
    gate = jax.nn.silu(s_pre) @ params["wg"] + params["bg"]
    vec_out = vup * jax.nn.sigmoid(gate)[..., None]
    return jax.nn.silu(s_pre), vec_out


# -----------------------------------------------------------------------------
# Main
# -----------------------------------------------------------------------------
if __name__ == "__main__":
    # sizes: E entities (edge inputs), scalar dims, vector channel dims
    E, SI, VI, SO, VO = 256, 32, 16, 32, 16
    H = max(VI, VO)  # bottleneck=1 -> hidden_dim = max(vector_in, vector_out)

    key = jax.random.PRNGKey(0)
    ks = jax.random.split(key, 12)

    def init(k, shape, fan_in):
        bound = 1.0 / jnp.sqrt(float(fan_in))
        return jax.random.uniform(k, shape, jnp.float32, -bound, bound)

    # parameters (stored already transposed for right-multiplication: y = x @ W^T_torch)
    params = {
        "wd":  init(ks[0], (VI, H), VI),                   # vector_down (no bias)
        "wdf": init(ks[1], (VI, 3), VI),                   # vector_down_frames (no bias)
        "ws":  init(ks[2], (SI + H + 9, SO), SI + H + 9),  # scalar_out weight
        "bs":  init(ks[3], (SO,), SI + H + 9),             # scalar_out bias
        "wup": init(ks[4], (H, VO), H),                    # vector_up (no bias)
        "wg":  init(ks[5], (SO, VO), SO),                  # vector_out_scale weight
        "bg":  init(ks[6], (VO,), SO),                     # vector_out_scale bias
    }

    # inputs
    scalar_rep = jax.random.normal(ks[7], (E, SI), jnp.float32)
    vector_rep = jax.random.normal(ks[8], (E, VI, 3), jnp.float32)
    frames = jax.random.normal(ks[9], (E, 3, 3), jnp.float32)
    edge_index = jax.random.randint(ks[10], (2, E), 0, E, jnp.int32)  # unused (node_inputs=False)
    # TODO(synk): node_inputs=True path (gather by edge_index + scatter-mean) and
    # the frame_gate=True vectorize() branch are not exercised by the default config.

    s_out, v_out = gcp2_forward(scalar_rep, vector_rep, edge_index, frames, params)
    s_out = jax.block_until_ready(s_out)
    v_out = jax.block_until_ready(v_out)

    s_ref, v_ref = gcp2_reference(scalar_rep, vector_rep, frames, params)
    assert s_out.shape == (E, SO) and v_out.shape == (E, VO, 3)
    assert jnp.allclose(s_out, s_ref, rtol=1e-4, atol=1e-5), "scalar mismatch"
    assert jnp.allclose(v_out, v_ref, rtol=1e-4, atol=1e-5), "vector mismatch"

    print("KERNEL_OK")
</pallas_src>

<mosaic_0001>
module attributes {stable_mosaic.version = 11 : i64} {
  func.func @gcp2_kernel(%arg0: i32, %arg1: memref<128x32xf32, #tpu.memory_space<vmem>>, %arg2: memref<3x128x16xf32, #tpu.memory_space<vmem>>, %arg3: memref<128x9xf32, #tpu.memory_space<vmem>>, %arg4: memref<16x19xf32, #tpu.memory_space<vmem>>, %arg5: memref<58x32xf32, #tpu.memory_space<vmem>>, %arg6: memref<49x16xf32, #tpu.memory_space<vmem>>, %arg7: memref<128x128xf32, #tpu.memory_space<vmem>>) attributes {dimension_semantics = [#tpu.dimension_semantics<parallel>], iteration_bounds = array<i64: 2>, scalar_prefetch = 0 : i64, scratch_operands = 0 : i64, tpu.core_type = #tpu.core_type<tc>, window_params = [{transform_indices = @transform_0, window_bounds = array<i64: 128, 32>}, {transform_indices = @transform_1, window_bounds = array<i64: 3, 128, 16>}, {transform_indices = @transform_2, window_bounds = array<i64: 128, 9>}, {pipeline_mode = #tpu.pipeline_mode<synchronous>, transform_indices = @transform_3, window_bounds = array<i64: 16, 19>}, {pipeline_mode = #tpu.pipeline_mode<synchronous>, transform_indices = @transform_4, window_bounds = array<i64: 58, 32>}, {pipeline_mode = #tpu.pipeline_mode<synchronous>, transform_indices = @transform_5, window_bounds = array<i64: 49, 16>}, {transform_indices = @transform_6, window_bounds = array<i64: 128, 128>}]} {
    %c0 = arith.constant 0 : index
    %c0_0 = arith.constant 0 : index
    %c0_1 = arith.constant 0 : index
    %0 = vector.load %arg2[%c0, %c0_0, %c0_1] : memref<3x128x16xf32, #tpu.memory_space<vmem>>, vector<1x128x16xf32>
    %1 = vector.shape_cast %0 : vector<1x128x16xf32> to vector<128x16xf32>
    %c1 = arith.constant 1 : index
    %c0_2 = arith.constant 0 : index
    %c0_3 = arith.constant 0 : index
    %2 = vector.load %arg2[%c1, %c0_2, %c0_3] : memref<3x128x16xf32, #tpu.memory_space<vmem>>, vector<1x128x16xf32>
    %3 = vector.shape_cast %2 : vector<1x128x16xf32> to vector<128x16xf32>
    %c2 = arith.constant 2 : index
    %c0_4 = arith.constant 0 : index
    %c0_5 = arith.constant 0 : index
    %4 = vector.load %arg2[%c2, %c0_4, %c0_5] : memref<3x128x16xf32, #tpu.memory_space<vmem>>, vector<1x128x16xf32>
    %5 = vector.shape_cast %4 : vector<1x128x16xf32> to vector<128x16xf32>
    %6 = tpu.concatenate %1, %3, %5 in 0 : vector<128x16xf32>, vector<128x16xf32>, vector<128x16xf32> -> vector<384x16xf32>
    %c0_6 = arith.constant 0 : index
    %c0_7 = arith.constant 0 : index
    %7 = vector.load %arg4[%c0_6, %c0_7] : memref<16x19xf32, #tpu.memory_space<vmem>>, vector<16x19xf32>
    %cst = arith.constant dense<0.000000e+00> : vector<384x19xf32>
    %8 = tpu.matmul %6, %7, %cst {dimension_numbers = #tpu.dot_dimension_numbers<[1], [0], [0], [1], [0, 0, 1, 1], [], []>} : vector<384x16xf32>, vector<16x19xf32>, vector<384x19xf32> -> vector<384x19xf32>
    %9 = vector.extract_strided_slice %8 {offsets = [0, 0], sizes = [384, 16], strides = [1, 1]} : vector<384x19xf32> to vector<384x16xf32>
    %10 = arith.mulf %9, %9 : vector<384x16xf32>
    %11 = vector.extract_strided_slice %10 {offsets = [0, 0], sizes = [128, 16], strides = [1, 1]} : vector<384x16xf32> to vector<128x16xf32>
    %12 = vector.extract_strided_slice %10 {offsets = [128, 0], sizes = [128, 16], strides = [1, 1]} : vector<384x16xf32> to vector<128x16xf32>
    %13 = arith.addf %11, %12 : vector<128x16xf32>
    %14 = vector.extract_strided_slice %10 {offsets = [256, 0], sizes = [128, 16], strides = [1, 1]} : vector<384x16xf32> to vector<128x16xf32>
    %15 = arith.addf %13, %14 : vector<128x16xf32>
    %cst_8 = arith.constant 9.99999993E-9 : f32
    %16 = vector.broadcast %cst_8 : f32 to vector<128x16xf32>
    %17 = arith.addf %15, %16 : vector<128x16xf32>
    %18 = math.sqrt %17 : vector<128x16xf32>
    %c0_9 = arith.constant 0 : index
    %c0_10 = arith.constant 0 : index
    %19 = vector.load %arg1[%c0_9, %c0_10] : memref<128x32xf32, #tpu.memory_space<vmem>>, vector<128x32xf32>
    %c0_11 = arith.constant 0 : index
    %c0_12 = arith.constant 0 : index
    %20 = vector.load %arg5[%c0_11, %c0_12] : memref<58x32xf32, #tpu.memory_space<vmem>>, vector<32x32xf32>
    %cst_13 = arith.constant dense<0.000000e+00> : vector<128x32xf32>
    %21 = tpu.matmul %19, %20, %cst_13 {dimension_numbers = #tpu.dot_dimension_numbers<[1], [0], [0], [1], [0, 0, 1, 1], [], []>} : vector<128x32xf32>, vector<32x32xf32>, vector<128x32xf32> -> vector<128x32xf32>
    %c32 = arith.constant 32 : index
    %c0_14 = arith.constant 0 : index
    %22 = vector.load %arg5[%c32, %c0_14] : memref<58x32xf32, #tpu.memory_space<vmem>>, vector<16x32xf32>
    %cst_15 = arith.constant dense<0.000000e+00> : vector<128x32xf32>
    %23 = tpu.matmul %18, %22, %cst_15 {dimension_numbers = #tpu.dot_dimension_numbers<[1], [0], [0], [1], [0, 0, 1, 1], [], []>} : vector<128x16xf32>, vector<16x32xf32>, vector<128x32xf32> -> vector<128x32xf32>
    %24 = arith.addf %21, %23 : vector<128x32xf32>
    %c57 = arith.constant 57 : index
    %c0_16 = arith.constant 0 : index
    %25 = vector.load %arg5[%c57, %c0_16] : memref<58x32xf32, #tpu.memory_space<vmem>>, vector<1x32xf32>
    %26 = vector.broadcast %25 : vector<1x32xf32> to vector<128x32xf32>
    %27 = arith.addf %24, %26 : vector<128x32xf32>
    %28 = vector.extract_strided_slice %8 {offsets = [0, 16], sizes = [128, 3], strides = [1, 1]} : vector<384x19xf32> to vector<128x3xf32>
    %29 = vector.extract_strided_slice %8 {offsets = [128, 16], sizes = [128, 3], strides = [1, 1]} : vector<384x19xf32> to vector<128x3xf32>
    %30 = vector.extract_strided_slice %8 {offsets = [256, 16], sizes = [128, 3], strides = [1, 1]} : vector<384x19xf32> to vector<128x3xf32>
    %c0_17 = arith.constant 0 : index
    %c0_18 = arith.constant 0 : index
    %31 = vector.load %arg3[%c0_17, %c0_18] : memref<128x9xf32, #tpu.memory_space<vmem>>, vector<128x9xf32>
    %32 = vector.extract_strided_slice %28 {offsets = [0, 0], sizes = [128, 1], strides = [1, 1]} : vector<128x3xf32> to vector<128x1xf32>
    %33 = vector.extract_strided_slice %31 {offsets = [0, 0], sizes = [128, 1], strides = [1, 1]} : vector<128x9xf32> to vector<128x1xf32>
    %34 = arith.mulf %32, %33 : vector<128x1xf32>
    %35 = vector.extract_strided_slice %29 {offsets = [0, 0], sizes = [128, 1], strides = [1, 1]} : vector<128x3xf32> to vector<128x1xf32>
    %36 = vector.extract_strided_slice %31 {offsets = [0, 1], sizes = [128, 1], strides = [1, 1]} : vector<128x9xf32> to vector<128x1xf32>
    %37 = arith.mulf %35, %36 : vector<128x1xf32>
    %38 = arith.addf %34, %37 : vector<128x1xf32>
    %39 = vector.extract_strided_slice %30 {offsets = [0, 0], sizes = [128, 1], strides = [1, 1]} : vector<128x3xf32> to vector<128x1xf32>
    %40 = vector.extract_strided_slice %31 {offsets = [0, 2], sizes = [128, 1], strides = [1, 1]} : vector<128x9xf32> to vector<128x1xf32>
    %41 = arith.mulf %39, %40 : vector<128x1xf32>
    %42 = arith.addf %38, %41 : vector<128x1xf32>
    %c48 = arith.constant 48 : index
    %c0_19 = arith.constant 0 : index
    %43 = vector.load %arg5[%c48, %c0_19] : memref<58x32xf32, #tpu.memory_space<vmem>>, vector<1x32xf32>
    %44 = vector.broadcast %42 : vector<128x1xf32> to vector<128x32xf32>
    %45 = vector.broadcast %43 : vector<1x32xf32> to vector<128x32xf32>
    %46 = arith.mulf %44, %45 : vector<128x32xf32>
    %47 = arith.addf %27, %46 : vector<128x32xf32>
    %48 = vector.extract_strided_slice %28 {offsets = [0, 0], sizes = [128, 1], strides = [1, 1]} : vector<128x3xf32> to vector<128x1xf32>
    %49 = vector.extract_strided_slice %31 {offsets = [0, 3], sizes = [128, 1], strides = [1, 1]} : vector<128x9xf32> to vector<128x1xf32>
    %50 = arith.mulf %48, %49 : vector<128x1xf32>
    %51 = vector.extract_strided_slice %29 {offsets = [0, 0], sizes = [128, 1], strides = [1, 1]} : vector<128x3xf32> to vector<128x1xf32>
    %52 = vector.extract_strided_slice %31 {offsets = [0, 4], sizes = [128, 1], strides = [1, 1]} : vector<128x9xf32> to vector<128x1xf32>
    %53 = arith.mulf %51, %52 : vector<128x1xf32>
    %54 = arith.addf %50, %53 : vector<128x1xf32>
    %55 = vector.extract_strided_slice %30 {offsets = [0, 0], sizes = [128, 1], strides = [1, 1]} : vector<128x3xf32> to vector<128x1xf32>
    %56 = vector.extract_strided_slice %31 {offsets = [0, 5], sizes = [128, 1], strides = [1, 1]} : vector<128x9xf32> to vector<128x1xf32>
    %57 = arith.mulf %55, %56 : vector<128x1xf32>
    %58 = arith.addf %54, %57 : vector<128x1xf32>
    %c49 = arith.constant 49 : index
    %c0_20 = arith.constant 0 : index
    %59 = vector.load %arg5[%c49, %c0_20] : memref<58x32xf32, #tpu.memory_space<vmem>>, vector<1x32xf32>
    %60 = vector.broadcast %58 : vector<128x1xf32> to vector<128x32xf32>
    %61 = vector.broadcast %59 : vector<1x32xf32> to vector<128x32xf32>
    %62 = arith.mulf %60, %61 : vector<128x32xf32>
    %63 = arith.addf %47, %62 : vector<128x32xf32>
    %64 = vector.extract_strided_slice %28 {offsets = [0, 0], sizes = [128, 1], strides = [1, 1]} : vector<128x3xf32> to vector<128x1xf32>
    %65 = vector.extract_strided_slice %31 {offsets = [0, 6], sizes = [128, 1], strides = [1, 1]} : vector<128x9xf32> to vector<128x1xf32>
    %66 = arith.mulf %64, %65 : vector<128x1xf32>
    %67 = vector.extract_strided_slice %29 {offsets = [0, 0], sizes = [128, 1], strides = [1, 1]} : vector<128x3xf32> to vector<128x1xf32>
    %68 = vector.extract_strided_slice %31 {offsets = [0, 7], sizes = [128, 1], strides = [1, 1]} : vector<128x9xf32> to vector<128x1xf32>
    %69 = arith.mulf %67, %68 : vector<128x1xf32>
    %70 = arith.addf %66, %69 : vector<128x1xf32>
    %71 = vector.extract_strided_slice %30 {offsets = [0, 0], sizes = [128, 1], strides = [1, 1]} : vector<128x3xf32> to vector<128x1xf32>
    %72 = vector.extract_strided_slice %31 {offsets = [0, 8], sizes = [128, 1], strides = [1, 1]} : vector<128x9xf32> to vector<128x1xf32>
    %73 = arith.mulf %71, %72 : vector<128x1xf32>
    %74 = arith.addf %70, %73 : vector<128x1xf32>
    %c50 = arith.constant 50 : index
    %c0_21 = arith.constant 0 : index
    %75 = vector.load %arg5[%c50, %c0_21] : memref<58x32xf32, #tpu.memory_space<vmem>>, vector<1x32xf32>
    %76 = vector.broadcast %74 : vector<128x1xf32> to vector<128x32xf32>
    %77 = vector.broadcast %75 : vector<1x32xf32> to vector<128x32xf32>
    %78 = arith.mulf %76, %77 : vector<128x32xf32>
    %79 = arith.addf %63, %78 : vector<128x32xf32>
    %80 = vector.extract_strided_slice %28 {offsets = [0, 1], sizes = [128, 1], strides = [1, 1]} : vector<128x3xf32> to vector<128x1xf32>
    %81 = vector.extract_strided_slice %31 {offsets = [0, 0], sizes = [128, 1], strides = [1, 1]} : vector<128x9xf32> to vector<128x1xf32>
    %82 = arith.mulf %80, %81 : vector<128x1xf32>
    %83 = vector.extract_strided_slice %29 {offsets = [0, 1], sizes = [128, 1], strides = [1, 1]} : vector<128x3xf32> to vector<128x1xf32>
    %84 = vector.extract_strided_slice %31 {offsets = [0, 1], sizes = [128, 1], strides = [1, 1]} : vector<128x9xf32> to vector<128x1xf32>
    %85 = arith.mulf %83, %84 : vector<128x1xf32>
    %86 = arith.addf %82, %85 : vector<128x1xf32>
    %87 = vector.extract_strided_slice %30 {offsets = [0, 1], sizes = [128, 1], strides = [1, 1]} : vector<128x3xf32> to vector<128x1xf32>
    %88 = vector.extract_strided_slice %31 {offsets = [0, 2], sizes = [128, 1], strides = [1, 1]} : vector<128x9xf32> to vector<128x1xf32>
    %89 = arith.mulf %87, %88 : vector<128x1xf32>
    %90 = arith.addf %86, %89 : vector<128x1xf32>
    %c51 = arith.constant 51 : index
    %c0_22 = arith.constant 0 : index
    %91 = vector.load %arg5[%c51, %c0_22] : memref<58x32xf32, #tpu.memory_space<vmem>>, vector<1x32xf32>
    %92 = vector.broadcast %90 : vector<128x1xf32> to vector<128x32xf32>
    %93 = vector.broadcast %91 : vector<1x32xf32> to vector<128x32xf32>
    %94 = arith.mulf %92, %93 : vector<128x32xf32>
    %95 = arith.addf %79, %94 : vector<128x32xf32>
    %96 = vector.extract_strided_slice %28 {offsets = [0, 1], sizes = [128, 1], strides = [1, 1]} : vector<128x3xf32> to vector<128x1xf32>
    %97 = vector.extract_strided_slice %31 {offsets = [0, 3], sizes = [128, 1], strides = [1, 1]} : vector<128x9xf32> to vector<128x1xf32>
    %98 = arith.mulf %96, %97 : vector<128x1xf32>
    %99 = vector.extract_strided_slice %29 {offsets = [0, 1], sizes = [128, 1], strides = [1, 1]} : vector<128x3xf32> to vector<128x1xf32>
    %100 = vector.extract_strided_slice %31 {offsets = [0, 4], sizes = [128, 1], strides = [1, 1]} : vector<128x9xf32> to vector<128x1xf32>
    %101 = arith.mulf %99, %100 : vector<128x1xf32>
    %102 = arith.addf %98, %101 : vector<128x1xf32>
    %103 = vector.extract_strided_slice %30 {offsets = [0, 1], sizes = [128, 1], strides = [1, 1]} : vector<128x3xf32> to vector<128x1xf32>
    %104 = vector.extract_strided_slice %31 {offsets = [0, 5], sizes = [128, 1], strides = [1, 1]} : vector<128x9xf32> to vector<128x1xf32>
    %105 = arith.mulf %103, %104 : vector<128x1xf32>
    %106 = arith.addf %102, %105 : vector<128x1xf32>
    %c52 = arith.constant 52 : index
    %c0_23 = arith.constant 0 : index
    %107 = vector.load %arg5[%c52, %c0_23] : memref<58x32xf32, #tpu.memory_space<vmem>>, vector<1x32xf32>
    %108 = vector.broadcast %106 : vector<128x1xf32> to vector<128x32xf32>
    %109 = vector.broadcast %107 : vector<1x32xf32> to vector<128x32xf32>
    %110 = arith.mulf %108, %109 : vector<128x32xf32>
    %111 = arith.addf %95, %110 : vector<128x32xf32>
    %112 = vector.extract_strided_slice %28 {offsets = [0, 1], sizes = [128, 1], strides = [1, 1]} : vector<128x3xf32> to vector<128x1xf32>
    %113 = vector.extract_strided_slice %31 {offsets = [0, 6], sizes = [128, 1], strides = [1, 1]} : vector<128x9xf32> to vector<128x1xf32>
    %114 = arith.mulf %112, %113 : vector<128x1xf32>
    %115 = vector.extract_strided_slice %29 {offsets = [0, 1], sizes = [128, 1], strides = [1, 1]} : vector<128x3xf32> to vector<128x1xf32>
    %116 = vector.extract_strided_slice %31 {offsets = [0, 7], sizes = [128, 1], strides = [1, 1]} : vector<128x9xf32> to vector<128x1xf32>
    %117 = arith.mulf %115, %116 : vector<128x1xf32>
    %118 = arith.addf %114, %117 : vector<128x1xf32>
    %119 = vector.extract_strided_slice %30 {offsets = [0, 1], sizes = [128, 1], strides = [1, 1]} : vector<128x3xf32> to vector<128x1xf32>
    %120 = vector.extract_strided_slice %31 {offsets = [0, 8], sizes = [128, 1], strides = [1, 1]} : vector<128x9xf32> to vector<128x1xf32>
    %121 = arith.mulf %119, %120 : vector<128x1xf32>
    %122 = arith.addf %118, %121 : vector<128x1xf32>
    %c53 = arith.constant 53 : index
    %c0_24 = arith.constant 0 : index
    %123 = vector.load %arg5[%c53, %c0_24] : memref<58x32xf32, #tpu.memory_space<vmem>>, vector<1x32xf32>
    %124 = vector.broadcast %122 : vector<128x1xf32> to vector<128x32xf32>
    %125 = vector.broadcast %123 : vector<1x32xf32> to vector<128x32xf32>
    %126 = arith.mulf %124, %125 : vector<128x32xf32>
    %127 = arith.addf %111, %126 : vector<128x32xf32>
    %128 = vector.extract_strided_slice %28 {offsets = [0, 2], sizes = [128, 1], strides = [1, 1]} : vector<128x3xf32> to vector<128x1xf32>
    %129 = vector.extract_strided_slice %31 {offsets = [0, 0], sizes = [128, 1], strides = [1, 1]} : vector<128x9xf32> to vector<128x1xf32>
    %130 = arith.mulf %128, %129 : vector<128x1xf32>
    %131 = vector.extract_strided_slice %29 {offsets = [0, 2], sizes = [128, 1], strides = [1, 1]} : vector<128x3xf32> to vector<128x1xf32>
    %132 = vector.extract_strided_slice %31 {offsets = [0, 1], sizes = [128, 1], strides = [1, 1]} : vector<128x9xf32> to vector<128x1xf32>
    %133 = arith.mulf %131, %132 : vector<128x1xf32>
    %134 = arith.addf %130, %133 : vector<128x1xf32>
    %135 = vector.extract_strided_slice %30 {offsets = [0, 2], sizes = [128, 1], strides = [1, 1]} : vector<128x3xf32> to vector<128x1xf32>
    %136 = vector.extract_strided_slice %31 {offsets = [0, 2], sizes = [128, 1], strides = [1, 1]} : vector<128x9xf32> to vector<128x1xf32>
    %137 = arith.mulf %135, %136 : vector<128x1xf32>
    %138 = arith.addf %134, %137 : vector<128x1xf32>
    %c54 = arith.constant 54 : index
    %c0_25 = arith.constant 0 : index
    %139 = vector.load %arg5[%c54, %c0_25] : memref<58x32xf32, #tpu.memory_space<vmem>>, vector<1x32xf32>
    %140 = vector.broadcast %138 : vector<128x1xf32> to vector<128x32xf32>
    %141 = vector.broadcast %139 : vector<1x32xf32> to vector<128x32xf32>
    %142 = arith.mulf %140, %141 : vector<128x32xf32>
    %143 = arith.addf %127, %142 : vector<128x32xf32>
    %144 = vector.extract_strided_slice %28 {offsets = [0, 2], sizes = [128, 1], strides = [1, 1]} : vector<128x3xf32> to vector<128x1xf32>
    %145 = vector.extract_strided_slice %31 {offsets = [0, 3], sizes = [128, 1], strides = [1, 1]} : vector<128x9xf32> to vector<128x1xf32>
    %146 = arith.mulf %144, %145 : vector<128x1xf32>
    %147 = vector.extract_strided_slice %29 {offsets = [0, 2], sizes = [128, 1], strides = [1, 1]} : vector<128x3xf32> to vector<128x1xf32>
    %148 = vector.extract_strided_slice %31 {offsets = [0, 4], sizes = [128, 1], strides = [1, 1]} : vector<128x9xf32> to vector<128x1xf32>
    %149 = arith.mulf %147, %148 : vector<128x1xf32>
    %150 = arith.addf %146, %149 : vector<128x1xf32>
    %151 = vector.extract_strided_slice %30 {offsets = [0, 2], sizes = [128, 1], strides = [1, 1]} : vector<128x3xf32> to vector<128x1xf32>
    %152 = vector.extract_strided_slice %31 {offsets = [0, 5], sizes = [128, 1], strides = [1, 1]} : vector<128x9xf32> to vector<128x1xf32>
    %153 = arith.mulf %151, %152 : vector<128x1xf32>
    %154 = arith.addf %150, %153 : vector<128x1xf32>
    %c55 = arith.constant 55 : index
    %c0_26 = arith.constant 0 : index
    %155 = vector.load %arg5[%c55, %c0_26] : memref<58x32xf32, #tpu.memory_space<vmem>>, vector<1x32xf32>
    %156 = vector.broadcast %154 : vector<128x1xf32> to vector<128x32xf32>
    %157 = vector.broadcast %155 : vector<1x32xf32> to vector<128x32xf32>
    %158 = arith.mulf %156, %157 : vector<128x32xf32>
    %159 = arith.addf %143, %158 : vector<128x32xf32>
    %160 = vector.extract_strided_slice %28 {offsets = [0, 2], sizes = [128, 1], strides = [1, 1]} : vector<128x3xf32> to vector<128x1xf32>
    %161 = vector.extract_strided_slice %31 {offsets = [0, 6], sizes = [128, 1], strides = [1, 1]} : vector<128x9xf32> to vector<128x1xf32>
    %162 = arith.mulf %160, %161 : vector<128x1xf32>
    %163 = vector.extract_strided_slice %29 {offsets = [0, 2], sizes = [128, 1], strides = [1, 1]} : vector<128x3xf32> to vector<128x1xf32>
    %164 = vector.extract_strided_slice %31 {offsets = [0, 7], sizes = [128, 1], strides = [1, 1]} : vector<128x9xf32> to vector<128x1xf32>
    %165 = arith.mulf %163, %164 : vector<128x1xf32>
    %166 = arith.addf %162, %165 : vector<128x1xf32>
    %167 = vector.extract_strided_slice %30 {offsets = [0, 2], sizes = [128, 1], strides = [1, 1]} : vector<128x3xf32> to vector<128x1xf32>
    %168 = vector.extract_strided_slice %31 {offsets = [0, 8], sizes = [128, 1], strides = [1, 1]} : vector<128x9xf32> to vector<128x1xf32>
    %169 = arith.mulf %167, %168 : vector<128x1xf32>
    %170 = arith.addf %166, %169 : vector<128x1xf32>
    %c56 = arith.constant 56 : index
    %c0_27 = arith.constant 0 : index
    %171 = vector.load %arg5[%c56, %c0_27] : memref<58x32xf32, #tpu.memory_space<vmem>>, vector<1x32xf32>
    %172 = vector.broadcast %170 : vector<128x1xf32> to vector<128x32xf32>
    %173 = vector.broadcast %171 : vector<1x32xf32> to vector<128x32xf32>
    %174 = arith.mulf %172, %173 : vector<128x32xf32>
    %175 = arith.addf %159, %174 : vector<128x32xf32>
    %176 = arith.negf %175 : vector<128x32xf32>
    %177 = math.exp %176 : vector<128x32xf32>
    %cst_28 = arith.constant 1.000000e+00 : f32
    %178 = vector.broadcast %cst_28 : f32 to vector<128x32xf32>
    %179 = arith.addf %178, %177 : vector<128x32xf32>
    %180 = arith.divf %178, %179 : vector<128x32xf32>
    %181 = arith.mulf %175, %180 : vector<128x32xf32>
    %c0_29 = arith.constant 0 : index
    %c0_30 = arith.constant 0 : index
    %182 = vector.load %arg6[%c0_29, %c0_30] : memref<49x16xf32, #tpu.memory_space<vmem>>, vector<16x16xf32>
    %cst_31 = arith.constant dense<0.000000e+00> : vector<384x16xf32>
    %183 = tpu.matmul %9, %182, %cst_31 {dimension_numbers = #tpu.dot_dimension_numbers<[1], [0], [0], [1], [0, 0, 1, 1], [], []>} : vector<384x16xf32>, vector<16x16xf32>, vector<384x16xf32> -> vector<384x16xf32>
    %c16 = arith.constant 16 : index
    %c0_32 = arith.constant 0 : index
    %184 = vector.load %arg6[%c16, %c0_32] : memref<49x16xf32, #tpu.memory_space<vmem>>, vector<32x16xf32>
    %cst_33 = arith.constant dense<0.000000e+00> : vector<128x16xf32>
    %185 = tpu.matmul %181, %184, %cst_33 {dimension_numbers = #tpu.dot_dimension_numbers<[1], [0], [0], [1], [0, 0, 1, 1], [], []>} : vector<128x32xf32>, vector<32x16xf32>, vector<128x16xf32> -> vector<128x16xf32>
    %c48_34 = arith.constant 48 : index
    %c0_35 = arith.constant 0 : index
    %186 = vector.load %arg6[%c48_34, %c0_35] : memref<49x16xf32, #tpu.memory_space<vmem>>, vector<1x16xf32>
    %187 = vector.broadcast %186 : vector<1x16xf32> to vector<128x16xf32>
    %188 = arith.addf %185, %187 : vector<128x16xf32>
    %189 = arith.negf %188 : vector<128x16xf32>
    %190 = math.exp %189 : vector<128x16xf32>
    %cst_36 = arith.constant 1.000000e+00 : f32
    %191 = vector.broadcast %cst_36 : f32 to vector<128x16xf32>
    %192 = arith.addf %191, %190 : vector<128x16xf32>
    %193 = arith.divf %191, %192 : vector<128x16xf32>
    %c0_37 = arith.constant 0 : index
    %c0_38 = arith.constant 0 : index
    %194 = vector.load %arg7[%c0_37, %c0_38] : memref<128x128xf32, #tpu.memory_space<vmem>>, vector<128x32xf32>
    tpu.vector_store %arg7[%c0_37, %c0_38], %181 {strides = array<i32>} : memref<128x128xf32, #tpu.memory_space<vmem>>, vector<128x32xf32>,
    %195 = vector.extract_strided_slice %183 {offsets = [0, 0], sizes = [128, 16], strides = [1, 1]} : vector<384x16xf32> to vector<128x16xf32>
    %196 = arith.mulf %195, %193 : vector<128x16xf32>
    %c0_39 = arith.constant 0 : index
    %c32_40 = arith.constant 32 : index
    %197 = vector.load %arg7[%c0_39, %c32_40] : memref<128x128xf32, #tpu.memory_space<vmem>>, vector<128x16xf32>
    tpu.vector_store %arg7[%c0_39, %c32_40], %196 {strides = array<i32>} : memref<128x128xf32, #tpu.memory_space<vmem>>, vector<128x16xf32>,
    %198 = vector.extract_strided_slice %183 {offsets = [128, 0], sizes = [128, 16], strides = [1, 1]} : vector<384x16xf32> to vector<128x16xf32>
    %199 = arith.mulf %198, %193 : vector<128x16xf32>
    %c0_41 = arith.constant 0 : index
    %c48_42 = arith.constant 48 : index
    %200 = vector.load %arg7[%c0_41, %c48_42] : memref<128x128xf32, #tpu.memory_space<vmem>>, vector<128x16xf32>
    tpu.vector_store %arg7[%c0_41, %c48_42], %199 {strides = array<i32>} : memref<128x128xf32, #tpu.memory_space<vmem>>, vector<128x16xf32>,
    %201 = vector.extract_strided_slice %183 {offsets = [256, 0], sizes = [128, 16], strides = [1, 1]} : vector<384x16xf32> to vector<128x16xf32>
    %202 = arith.mulf %201, %193 : vector<128x16xf32>
    %c0_43 = arith.constant 0 : index
    %c64 = arith.constant 64 : index
    %203 = vector.load %arg7[%c0_43, %c64] : memref<128x128xf32, #tpu.memory_space<vmem>>, vector<128x16xf32>
    tpu.vector_store %arg7[%c0_43, %c64], %202 {strides = array<i32>} : memref<128x128xf32, #tpu.memory_space<vmem>>, vector<128x16xf32>,
    %cst_44 = arith.constant 0.000000e+00 : f32
    %204 = vector.broadcast %cst_44 : f32 to vector<128x48xf32>
    %c0_45 = arith.constant 0 : index
    %c80 = arith.constant 80 : index
    %205 = vector.load %arg7[%c0_45, %c80] : memref<128x128xf32, #tpu.memory_space<vmem>>, vector<128x48xf32>
    tpu.vector_store %arg7[%c0_45, %c80], %204 {strides = array<i32>} : memref<128x128xf32, #tpu.memory_space<vmem>>, vector<128x48xf32>,
    return
  }
  func.func @transform_0(%arg0: i32) -> (i32, i32) {
    %c0_i32 = arith.constant 0 : i32
    %c0_i32_0 = arith.constant 0 : i32
    return %arg0, %c0_i32 : i32, i32
  }
  func.func @transform_1(%arg0: i32) -> (i32, i32, i32) {
    %c0_i32 = arith.constant 0 : i32
    %c0_i32_0 = arith.constant 0 : i32
    %c0_i32_1 = arith.constant 0 : i32
    return %c0_i32, %arg0, %c0_i32_0 : i32, i32, i32
  }
  func.func @transform_2(%arg0: i32) -> (i32, i32) {
    %c0_i32 = arith.constant 0 : i32
    %c0_i32_0 = arith.constant 0 : i32
    return %arg0, %c0_i32 : i32, i32
  }
  func.func @transform_3(%arg0: i32) -> (i32, i32) {
    %c0_i32 = arith.constant 0 : i32
    %c0_i32_0 = arith.constant 0 : i32
    %c0_i32_1 = arith.constant 0 : i32
    return %c0_i32, %c0_i32_0 : i32, i32
  }
  func.func @transform_4(%arg0: i32) -> (i32, i32) {
    %c0_i32 = arith.constant 0 : i32
    %c0_i32_0 = arith.constant 0 : i32
    %c0_i32_1 = arith.constant 0 : i32
    return %c0_i32, %c0_i32_0 : i32, i32
  }
  func.func @transform_5(%arg0: i32) -> (i32, i32) {
    %c0_i32 = arith.constant 0 : i32
    %c0_i32_0 = arith.constant 0 : i32
    %c0_i32_1 = arith.constant 0 : i32
    return %c0_i32, %c0_i32_0 : i32, i32
  }
  func.func @transform_6(%arg0: i32) -> (i32, i32) {
    %c0_i32 = arith.constant 0 : i32
    %c0_i32_0 = arith.constant 0 : i32
    return %arg0, %c0_i32 : i32, i32
  }
}

</mosaic_0001>

<llo_original>
// kernel: tpu_custom_call.1
$region0: #{tpu_custom_call.1}
  #allocation0 [shape = 'u32[]', space=smem, size = 0x4, offset = 0x4, fixed_abs, tag = 'smem constant byte address 0x4 - core index']
  #allocation1 [shape = 'u32[144,128]{1,0:T(1,128)}', space=vmem, size = 0x12000, scoped, tag = 'internal scratch']
  %s0 = inlined_call_operand.vmem [shape: f32[256,32], index: 0, kind: input, shape index: {}]
  %s1 = inlined_call_operand.vmem [shape: f32[3,256,16], index: 1, kind: input, shape index: {}]
  %s2 = inlined_call_operand.vmem [shape: f32[256,9], index: 2, kind: input, shape index: {}]
  %s3 = inlined_call_operand.vmem [shape: f32[16,19], index: 3, kind: input, shape index: {}]
  %s4 = inlined_call_operand.vmem [shape: f32[58,32], index: 4, kind: input, shape index: {}]
  %s5 = inlined_call_operand.vmem [shape: f32[49,16], index: 5, kind: input, shape index: {}]
  %s6 = inlined_call_operand.hbm [shape: f32[256,128], index: 6, kind: output, shape index: {}]
  %s7 = sld [smem:[#allocation0]]
  $region95: #{tpu_custom_call.1} parent=0
    _
  %s9 = ssub.s32 1, %s7
  %s10 = scalar_select 0, %s9, %s7
  $region1: #{tpu_custom_call.1} parent=0
    #allocation2 [shape = 'u8[393216]{0}', space=vmem, size = 0x60000, scoped, tag = 'input window, operand 1']
    #allocation3 [shape = 'u8[131072]{0}', space=vmem, size = 0x20000, scoped, tag = 'output window, operand 0']
    #allocation4 [shape = 's32[2]{0}', space=sflag, size = 0x8, scoped, tag = 'scoped memory for tpu_custom_call.1']
    %11 = vsyncpa [#allocation4], 0
    %s12 = scalar_lea.sflag [#allocation4], 1
    %13 = vsyncpa %s12, 0
    loop: start=0, step=1, limit=4
    $region2: #{tpu_custom_call.1} parent=1 // loop_pre_header
      _
    $region3: #{tpu_custom_call.1} parent=1 // loop_header
      %s15 = sphi 0, %s19
      %p16 = scmp.ge.s32.totalorder %s15, 4
      %s25 = sphi 0, %s27
      %s28 = sphi 0, %s25
      %s29 = sphi 0, %s28
      %s45 = sphi 0, %s29
      %s51 = sphi 0, %s53
      %s54 = sphi 0, %s51
      %s55 = sphi 0, %s54
      %s71 = sphi 0, %s55
      %s77 = sphi 0, %s79
      %s80 = sphi 0, %s77
      %s81 = sphi 0, %s80
      %s97 = sphi 0, %s81
      %s101 = sphi 0, %s101
      %s103 = sphi 0, %s101
      %s104 = sphi 0, %s103
      %s118 = sphi 0, %s104
      %s122 = sphi 0, %s122
      %s124 = sphi 0, %s122
      %s125 = sphi 0, %s124
      %s139 = sphi 0, %s125
      %s143 = sphi 0, %s143
      %s145 = sphi 0, %s143
      %s146 = sphi 0, %s145
      %s160 = sphi 0, %s146
      %s166 = sphi 0, %s168
      %s169 = sphi 0, %s166
      %s170 = sphi 0, %s169
      %s186 = sphi 0, %s170
    $region4: #{tpu_custom_call.1} parent=1 // loop_header_branch
      %18 = sbr.rel (%p16) target = $region8
    $region5: #{tpu_custom_call.1} parent=1 // loop_body
      %s20 = ssub.s32 %s15, 1
      %s21 = ssub.s32 %s15, 2
      %s22 = sadd.s32 %s15, 1
      %s23 = ssub.s32 %s15, %s22
      %p24 = scmp.eq.s32.totalorder %s23, 0
      %s26 = sadd.s32 %s25, 1
      %s27 = scalar_select %p24, %s25, %s26
      %p30 = pneg %p24
      %p31 = scmp.eq.s32.totalorder %s15, 1
      %p32 = por %p30, %p31
      %p33 = scmp.ne.s32.totalorder %s25, %s28
      %p34 = scmp.eq.s32.totalorder %s15, 0
      %p35 = por %p33, %p34
      %p36 = scmp.ne.s32.totalorder %s25, %s28
      %p37 = scmp.eq.s32.totalorder %s20, 1
      %p38 = por %p36, %p37
      %p39 = scmp.ne.s32.totalorder %s28, %s29
      %p40 = scmp.eq.s32.totalorder %s20, 0
      %p41 = por %p39, %p40
      %p42 = scmp.ne.s32.totalorder %s28, %s29
      %p43 = scmp.eq.s32.totalorder %s21, 1
      %p44 = por %p42, %p43
      %p46 = scmp.ne.s32.totalorder %s29, %s45
      %p47 = scmp.eq.s32.totalorder %s21, 0
      %p48 = por %p46, %p47
      %s49 = ssub.s32 %s15, %s22
      %p50 = scmp.eq.s32.totalorder %s49, 0
      %s52 = sadd.s32 %s51, 1
      %s53 = scalar_select %p50, %s51, %s52
      %p56 = pneg %p50
      %p57 = scmp.eq.s32.totalorder %s15, 1
      %p58 = por %p56, %p57
      %p59 = scmp.ne.s32.totalorder %s51, %s54
      %p60 = scmp.eq.s32.totalorder %s15, 0
      %p61 = por %p59, %p60
      %p62 = scmp.ne.s32.totalorder %s51, %s54
      %p63 = scmp.eq.s32.totalorder %s20, 1
      %p64 = por %p62, %p63
      %p65 = scmp.ne.s32.totalorder %s54, %s55
      %p66 = scmp.eq.s32.totalorder %s20, 0
      %p67 = por %p65, %p66
      %p68 = scmp.ne.s32.totalorder %s54, %s55
      %p69 = scmp.eq.s32.totalorder %s21, 1
      %p70 = por %p68, %p69
      %p72 = scmp.ne.s32.totalorder %s55, %s71
      %p73 = scmp.eq.s32.totalorder %s21, 0
      %p74 = por %p72, %p73
      %s75 = ssub.s32 %s15, %s22
      %p76 = scmp.eq.s32.totalorder %s75, 0
      %s78 = sadd.s32 %s77, 1
      %s79 = scalar_select %p76, %s77, %s78
      %p82 = pneg %p76
      %p83 = scmp.eq.s32.totalorder %s15, 1
      %p84 = por %p82, %p83
      %p85 = scmp.ne.s32.totalorder %s77, %s80
      %p86 = scmp.eq.s32.totalorder %s15, 0
      %p87 = por %p85, %p86
      %p88 = scmp.ne.s32.totalorder %s77, %s80
      %p89 = scmp.eq.s32.totalorder %s20, 1
      %p90 = por %p88, %p89
      %p91 = scmp.ne.s32.totalorder %s80, %s81
      %p92 = scmp.eq.s32.totalorder %s20, 0
      %p93 = por %p91, %p92
      %p94 = scmp.ne.s32.totalorder %s80, %s81
      %p95 = scmp.eq.s32.totalorder %s21, 1
      %p96 = por %p94, %p95
      %p98 = scmp.ne.s32.totalorder %s81, %s97
      %p99 = scmp.eq.s32.totalorder %s21, 0
      %p100 = por %p98, %p99
      %s102 = sadd.s32 %s101, 1
      %p105 = scmp.eq.s32.totalorder %s15, 1
      %p106 = scmp.ne.s32.totalorder %s101, %s103
      %p107 = scmp.eq.s32.totalorder %s15, 0
      %p108 = por %p106, %p107
      %p109 = scmp.ne.s32.totalorder %s101, %s103
      %p110 = scmp.eq.s32.totalorder %s20, 1
      %p111 = por %p109, %p110
      %p112 = scmp.ne.s32.totalorder %s103, %s104
      %p113 = scmp.eq.s32.totalorder %s20, 0
      %p114 = por %p112, %p113
      %p115 = scmp.ne.s32.totalorder %s103, %s104
      %p116 = scmp.eq.s32.totalorder %s21, 1
      %p117 = por %p115, %p116
      %p119 = scmp.ne.s32.totalorder %s104, %s118
      %p120 = scmp.eq.s32.totalorder %s21, 0
      %p121 = por %p119, %p120
      %s123 = sadd.s32 %s122, 1
      %p126 = scmp.eq.s32.totalorder %s15, 1
      %p127 = scmp.ne.s32.totalorder %s122, %s124
      %p128 = scmp.eq.s32.totalorder %s15, 0
      %p129 = por %p127, %p128
      %p130 = scmp.ne.s32.totalorder %s122, %s124
      %p131 = scmp.eq.s32.totalorder %s20, 1
      %p132 = por %p130, %p131
      %p133 = scmp.ne.s32.totalorder %s124, %s125
      %p134 = scmp.eq.s32.totalorder %s20, 0
      %p135 = por %p133, %p134
      %p136 = scmp.ne.s32.totalorder %s124, %s125
      %p137 = scmp.eq.s32.totalorder %s21, 1
      %p138 = por %p136, %p137
      %p140 = scmp.ne.s32.totalorder %s125, %s139
      %p141 = scmp.eq.s32.totalorder %s21, 0
      %p142 = por %p140, %p141
      %s144 = sadd.s32 %s143, 1
      %p147 = scmp.eq.s32.totalorder %s15, 1
      %p148 = scmp.ne.s32.totalorder %s143, %s145
      %p149 = scmp.eq.s32.totalorder %s15, 0
      %p150 = por %p148, %p149
      %p151 = scmp.ne.s32.totalorder %s143, %s145
      %p152 = scmp.eq.s32.totalorder %s20, 1
      %p153 = por %p151, %p152
      %p154 = scmp.ne.s32.totalorder %s145, %s146
      %p155 = scmp.eq.s32.totalorder %s20, 0
      %p156 = por %p154, %p155
      %p157 = scmp.ne.s32.totalorder %s145, %s146
      %p158 = scmp.eq.s32.totalorder %s21, 1
      %p159 = por %p157, %p158
      %p161 = scmp.ne.s32.totalorder %s146, %s160
      %p162 = scmp.eq.s32.totalorder %s21, 0
      %p163 = por %p161, %p162
      %s164 = ssub.s32 %s15, %s22
      %p165 = scmp.eq.s32.totalorder %s164, 0
      %s167 = sadd.s32 %s166, 1
      %s168 = scalar_select %p165, %s166, %s167
      %p171 = pneg %p165
      %p172 = scmp.eq.s32.totalorder %s15, 1
      %p173 = por %p171, %p172
      %p174 = scmp.ne.s32.totalorder %s166, %s169
      %p175 = scmp.eq.s32.totalorder %s15, 0
      %p176 = por %p174, %p175
      %p177 = scmp.ne.s32.totalorder %s166, %s169
      %p178 = scmp.eq.s32.totalorder %s20, 1
      %p179 = por %p177, %p178
      %p180 = scmp.ne.s32.totalorder %s169, %s170
      %p181 = scmp.eq.s32.totalorder %s20, 0
      %p182 = por %p180, %p181
      %p183 = scmp.ne.s32.totalorder %s169, %s170
      %p184 = scmp.eq.s32.totalorder %s21, 1
      %p185 = por %p183, %p184
      %p187 = scmp.ne.s32.totalorder %s170, %s186
      %p188 = scmp.eq.s32.totalorder %s21, 0
      %p189 = por %p187, %p188
      %p190 = scmp.le.s32.totalorder 1, %s15
      %p191 = scmp.lt.s32.totalorder %s15, 3
      %p192 = pnand %p190, %p191
      %p193 = pneg %p192
      // Predicated region
      $region9: #{tpu_custom_call.1} parent=5 // pred_check
        _
      $region10: #{tpu_custom_call.1} parent=5 // pred_check_branch
        %195 = sbr.rel (%p192) target = $region12
      $region11: #{tpu_custom_call.1} parent=5 // pred_region
        %s196 = ssub.s32 %s15, 1
        // Predicated region
        $region13: #{tpu_custom_call.1} parent=11 // pred_check
          %p197 = pneg %p114
        $region14: #{tpu_custom_call.1} parent=11 // pred_check_branch
          %199 = sbr.rel (%p197) target = $region16
        $region15: #{tpu_custom_call.1} parent=11 // pred_region
          _
        $region16: #{tpu_custom_call.1} parent=11 // pred_fallthru
          _
        // Predicated region
        $region17: #{tpu_custom_call.1} parent=11 // pred_check
          %p200 = pneg %p135
        $region18: #{tpu_custom_call.1} parent=11 // pred_check_branch
          %202 = sbr.rel (%p200) target = $region20
        $region19: #{tpu_custom_call.1} parent=11 // pred_region
          _
        $region20: #{tpu_custom_call.1} parent=11 // pred_fallthru
          _
        // Predicated region
        $region21: #{tpu_custom_call.1} parent=11 // pred_check
          %p203 = pneg %p156
        $region22: #{tpu_custom_call.1} parent=11 // pred_check_branch
          %205 = sbr.rel (%p203) target = $region24
        $region23: #{tpu_custom_call.1} parent=11 // pred_region
          _
        $region24: #{tpu_custom_call.1} parent=11 // pred_fallthru
          _
      $region12: #{tpu_custom_call.1} parent=5 // pred_fallthru
        _
      %p206 = scmp.lt.s32.totalorder %s15, 2
      // Predicated region
      $region25: #{tpu_custom_call.1} parent=5 // pred_check
        %p207 = pneg %p206
      $region26: #{tpu_custom_call.1} parent=5 // pred_check_branch
        %209 = sbr.rel (%p207) target = $region28
      $region27: #{tpu_custom_call.1} parent=5 // pred_region
        // Predicated region
        $region29: #{tpu_custom_call.1} parent=27 // pred_check
          %p210 = pneg %p35
        $region30: #{tpu_custom_call.1} parent=27 // pred_check_branch
          %212 = sbr.rel (%p210) target = $region32
        $region31: #{tpu_custom_call.1} parent=27 // pred_region
          %s213 = smul.u32 16, %s15
          %p214 = scmp.lt.s32.totalorder %s213, 31
          %s215 = scalar_select %p214, %s213, 31
          %s216 = smul.addr %s215, 8
          %s217 = scalar_lea.vmem %s0, %s216
          %s218 = smul.u32 16, %s15
        $region32: #{tpu_custom_call.1} parent=27 // pred_fallthru
          _
        // Predicated region
        $region33: #{tpu_custom_call.1} parent=27 // pred_check
          %p219 = pneg %p61
        $region34: #{tpu_custom_call.1} parent=27 // pred_check_branch
          %221 = sbr.rel (%p219) target = $region36
        $region35: #{tpu_custom_call.1} parent=27 // pred_region
          %s222 = sand.u32 %s51, 1
          %s223 = sand.u32 %s51, 1
          %s224 = smul.addr %s223, 384
          %s225 = scalar_lea.vmem [#allocation2], %s224
          %s226 = smul.u32 16, %s15
          %s227 = smul.addr %s226, 8
          %s228 = scalar_lea.vmem %s1, %s227
          // Predicated region
          $region37: #{tpu_custom_call.1} parent=35 // pred_check
            _
          $region38: #{tpu_custom_call.1} parent=35 // pred_check_branch
            %230 = sbr.rel (0) target = $region40
          $region39: #{tpu_custom_call.1} parent=35 // pred_region
            // Predicated region
            $region41: #{tpu_custom_call.1} parent=39 // pred_check
              _
            $region42: #{tpu_custom_call.1} parent=39 // pred_check_branch
              %232 = sbr.rel (0) target = $region44
            $region43: #{tpu_custom_call.1} parent=39 // pred_region
              // Predicated region
              $region56: #{tpu_custom_call.1} parent=43 // pred_check
                _
              $region57: #{tpu_custom_call.1} parent=43 // pred_check_branch
                %342 = sbr.rel (0) target = $region59
              $region58: #{tpu_custom_call.1} parent=43 // pred_region
                loop: start=0, step=1, limit=1
                $region60: #{tpu_custom_call.1} parent=58 // loop_pre_header
                  _
                $region61: #{tpu_custom_call.1} parent=58 // loop_header
                  %s344 = sphi 0, %s348
                  %p345 = scmp.ge.s32.totalorder %s344, 1
                  %s349 = sphi %s228, %s228
                  %s350 = sphi %s225, %s225
                $region62: #{tpu_custom_call.1} parent=58 // loop_header_branch
                  %347 = sbr.rel (%p345) target = $region66
                $region63: #{tpu_custom_call.1} parent=58 // loop_body
                  %v351 = vld [vmem:[%s349] sm:$0xff]
                  %352 = vst [vmem:[%s350] sm:$0xff] %v351
                  %v353 = vld [vmem:[%s349 + $0x8] sm:$0xff]
                  %354 = vst [vmem:[%s350 + $0x8] sm:$0xff] %v353
                  %v355 = vld [vmem:[%s349 + $0x10] sm:$0xff]
                  %356 = vst [vmem:[%s350 + $0x10] sm:$0xff] %v355
                  %v357 = vld [vmem:[%s349 + $0x18] sm:$0xff]
                  %358 = vst [vmem:[%s350 + $0x18] sm:$0xff] %v357
                  %v359 = vld [vmem:[%s349 + $0x20] sm:$0xff]
                  %360 = vst [vmem:[%s350 + $0x20] sm:$0xff] %v359
                  %v361 = vld [vmem:[%s349 + $0x28] sm:$0xff]
                  %362 = vst [vmem:[%s350 + $0x28] sm:$0xff] %v361
                  %v363 = vld [vmem:[%s349 + $0x30] sm:$0xff]
                  %364 = vst [vmem:[%s350 + $0x30] sm:$0xff] %v363
                  %v365 = vld [vmem:[%s349 + $0x38] sm:$0xff]
                  %366 = vst [vmem:[%s350 + $0x38] sm:$0xff] %v365
                  %v367 = vld [vmem:[%s349 + $0x40] sm:$0xff]
                  %368 = vst [vmem:[%s350 + $0x40] sm:$0xff] %v367
                  %v369 = vld [vmem:[%s349 + $0x48] sm:$0xff]
                  %370 = vst [vmem:[%s350 + $0x48] sm:$0xff] %v369
                  %v371 = vld [vmem:[%s349 + $0x50] sm:$0xff]
                  %372 = vst [vmem:[%s350 + $0x50] sm:$0xff] %v371
                  %v373 = vld [vmem:[%s349 + $0x58] sm:$0xff]
                  %374 = vst [vmem:[%s350 + $0x58] sm:$0xff] %v373
                  %v375 = vld [vmem:[%s349 + $0x60] sm:$0xff]
                  %376 = vst [vmem:[%s350 + $0x60] sm:$0xff] %v375
                  %v377 = vld [vmem:[%s349 + $0x68] sm:$0xff]
                  %378 = vst [vmem:[%s350 + $0x68] sm:$0xff] %v377
                  %v379 = vld [vmem:[%s349 + $0x70] sm:$0xff]
                  %380 = vst [vmem:[%s350 + $0x70] sm:$0xff] %v379
                  %v381 = vld [vmem:[%s349 + $0x78] sm:$0xff]
                  %382 = vst [vmem:[%s350 + $0x78] sm:$0xff] %v381
                  %v383 = vld [vmem:[%s349 + $0x100] sm:$0xff]
                  %384 = vst [vmem:[%s350 + $0x80] sm:$0xff] %v383
                  %v385 = vld [vmem:[%s349 + $0x108] sm:$0xff]
                  %386 = vst [vmem:[%s350 + $0x88] sm:$0xff] %v385
                  %v387 = vld [vmem:[%s349 + $0x110] sm:$0xff]
                  %388 = vst [vmem:[%s350 + $0x90] sm:$0xff] %v387
                  %v389 = vld [vmem:[%s349 + $0x118] sm:$0xff]
                  %390 = vst [vmem:[%s350 + $0x98] sm:$0xff] %v389
                  %v391 = vld [vmem:[%s349 + $0x120] sm:$0xff]
                  %392 = vst [vmem:[%s350 + $0xa0] sm:$0xff] %v391
                  %v393 = vld [vmem:[%s349 + $0x128] sm:$0xff]
                  %394 = vst [vmem:[%s350 + $0xa8] sm:$0xff] %v393
                  %v395 = vld [vmem:[%s349 + $0x130] sm:$0xff]
                  %396 = vst [vmem:[%s350 + $0xb0] sm:$0xff] %v395
                  %v397 = vld [vmem:[%s349 + $0x138] sm:$0xff]
                  %398 = vst [vmem:[%s350 + $0xb8] sm:$0xff] %v397
                  %v399 = vld [vmem:[%s349 + $0x140] sm:$0xff]
                  %400 = vst [vmem:[%s350 + $0xc0] sm:$0xff] %v399
                  %v401 = vld [vmem:[%s349 + $0x148] sm:$0xff]
                  %402 = vst [vmem:[%s350 + $0xc8] sm:$0xff] %v401
                  %v403 = vld [vmem:[%s349 + $0x150] sm:$0xff]
                  %404 = vst [vmem:[%s350 + $0xd0] sm:$0xff] %v403
                  %v405 = vld [vmem:[%s349 + $0x158] sm:$0xff]
                  %406 = vst [vmem:[%s350 + $0xd8] sm:$0xff] %v405
                  %v407 = vld [vmem:[%s349 + $0x160] sm:$0xff]
                  %408 = vst [vmem:[%s350 + $0xe0] sm:$0xff] %v407
                  %v409 = vld [vmem:[%s349 + $0x168] sm:$0xff]
                  %410 = vst [vmem:[%s350 + $0xe8] sm:$0xff] %v409
                  %v411 = vld [vmem:[%s349 + $0x170] sm:$0xff]
                  %412 = vst [vmem:[%s350 + $0xf0] sm:$0xff] %v411
                  %v413 = vld [vmem:[%s349 + $0x178] sm:$0xff]
                  %414 = vst [vmem:[%s350 + $0xf8] sm:$0xff] %v413
                  %v415 = vld [vmem:[%s349 + $0x200] sm:$0xff]
                  %416 = vst [vmem:[%s350 + $0x100] sm:$0xff] %v415
                  %v417 = vld [vmem:[%s349 + $0x208] sm:$0xff]
                  %418 = vst [vmem:[%s350 + $0x108] sm:$0xff] %v417
                  %v419 = vld [vmem:[%s349 + $0x210] sm:$0xff]
                  %420 = vst [vmem:[%s350 + $0x110] sm:$0xff] %v419
                  %v421 = vld [vmem:[%s349 + $0x218] sm:$0xff]
                  %422 = vst [vmem:[%s350 + $0x118] sm:$0xff] %v421
                  %v423 = vld [vmem:[%s349 + $0x220] sm:$0xff]
                  %424 = vst [vmem:[%s350 + $0x120] sm:$0xff] %v423
                  %v425 = vld [vmem:[%s349 + $0x228] sm:$0xff]
                  %426 = vst [vmem:[%s350 + $0x128] sm:$0xff] %v425
                  %v427 = vld [vmem:[%s349 + $0x230] sm:$0xff]
                  %428 = vst [vmem:[%s350 + $0x130] sm:$0xff] %v427
                  %v429 = vld [vmem:[%s349 + $0x238] sm:$0xff]
                  %430 = vst [vmem:[%s350 + $0x138] sm:$0xff] %v429
                  %v431 = vld [vmem:[%s349 + $0x240] sm:$0xff]
                  %432 = vst [vmem:[%s350 + $0x140] sm:$0xff] %v431
                  %v433 = vld [vmem:[%s349 + $0x248] sm:$0xff]
                  %434 = vst [vmem:[%s350 + $0x148] sm:$0xff] %v433
                  %v435 = vld [vmem:[%s349 + $0x250] sm:$0xff]
                  %436 = vst [vmem:[%s350 + $0x150] sm:$0xff] %v435
                  %v437 = vld [vmem:[%s349 + $0x258] sm:$0xff]
                  %438 = vst [vmem:[%s350 + $0x158] sm:$0xff] %v437
                  %v439 = vld [vmem:[%s349 + $0x260] sm:$0xff]
                  %440 = vst [vmem:[%s350 + $0x160] sm:$0xff] %v439
                  %v441 = vld [vmem:[%s349 + $0x268] sm:$0xff]
                  %442 = vst [vmem:[%s350 + $0x168] sm:$0xff] %v441
                  %v443 = vld [vmem:[%s349 + $0x270] sm:$0xff]
                  %444 = vst [vmem:[%s350 + $0x170] sm:$0xff] %v443
                  %v445 = vld [vmem:[%s349 + $0x278] sm:$0xff]
                  %446 = vst [vmem:[%s350 + $0x178] sm:$0xff] %v445
                $region64: #{tpu_custom_call.1} parent=58 // loop_footer
                  %s348 = sadd.s32 1, %s344
                $region65: #{tpu_custom_call.1} parent=58 // loop_footer_branch
                  %343 = sbr.rel target = $region61
                $region66: #{tpu_custom_call.1} parent=58 // loop_exit
                  _
              $region59: #{tpu_custom_call.1} parent=43 // pred_fallthru
                _
              // Predicated region
              $region67: #{tpu_custom_call.1} parent=43 // pred_check
                _
              $region68: #{tpu_custom_call.1} parent=43 // pred_check_branch
                %448 = sbr.rel target = $region70
              $region69: #{tpu_custom_call.1} parent=43 // pred_region
                _
              $region70: #{tpu_custom_call.1} parent=43 // pred_fallthru
                _
            $region44: #{tpu_custom_call.1} parent=39 // pred_fallthru
              _
            // Predicated region
            $region45: #{tpu_custom_call.1} parent=39 // pred_check
              _
            $region46: #{tpu_custom_call.1} parent=39 // pred_check_branch
              %234 = sbr.rel target = $region48
            $region47: #{tpu_custom_call.1} parent=39 // pred_region
              %s236 = ssub.s32 256, 1
              loop: start=0, step=1, limit=1
              $region49: #{tpu_custom_call.1} parent=47 // loop_pre_header
                _
              $region50: #{tpu_custom_call.1} parent=47 // loop_header
                %s238 = sphi 0, %s242
                %p239 = scmp.ge.s32.totalorder %s238, 1
                %s243 = sphi %s228, %s228
                %s244 = sphi %s225, %s225
              $region51: #{tpu_custom_call.1} parent=47 // loop_header_branch
                %241 = sbr.rel (%p239) target = $region55
              $region52: #{tpu_custom_call.1} parent=47 // loop_body
                %v245 = vld [vmem:[%s243] sm:%s236]
                %246 = vst [vmem:[%s244] sm:%s236] %v245
                %v247 = vld [vmem:[%s243 + $0x8] sm:%s236]
                %248 = vst [vmem:[%s244 + $0x8] sm:%s236] %v247
                %v249 = vld [vmem:[%s243 + $0x10] sm:%s236]
                %250 = vst [vmem:[%s244 + $0x10] sm:%s236] %v249
                %v251 = vld [vmem:[%s243 + $0x18] sm:%s236]
                %252 = vst [vmem:[%s244 + $0x18] sm:%s236] %v251
                %v253 = vld [vmem:[%s243 + $0x20] sm:%s236]
                %254 = vst [vmem:[%s244 + $0x20] sm:%s236] %v253
                %v255 = vld [vmem:[%s243 + $0x28] sm:%s236]
                %256 = vst [vmem:[%s244 + $0x28] sm:%s236] %v255
                %v257 = vld [vmem:[%s243 + $0x30] sm:%s236]
                %258 = vst [vmem:[%s244 + $0x30] sm:%s236] %v257
                %v259 = vld [vmem:[%s243 + $0x38] sm:%s236]
                %260 = vst [vmem:[%s244 + $0x38] sm:%s236] %v259
                %v261 = vld [vmem:[%s243 + $0x40] sm:%s236]
                %262 = vst [vmem:[%s244 + $0x40] sm:%s236] %v261
                %v263 = vld [vmem:[%s243 + $0x48] sm:%s236]
                %264 = vst [vmem:[%s244 + $0x48] sm:%s236] %v263
                %v265 = vld [vmem:[%s243 + $0x50] sm:%s236]
                %266 = vst [vmem:[%s244 + $0x50] sm:%s236] %v265
                %v267 = vld [vmem:[%s243 + $0x58] sm:%s236]
                %268 = vst [vmem:[%s244 + $0x58] sm:%s236] %v267
                %v269 = vld [vmem:[%s243 + $0x60] sm:%s236]
                %270 = vst [vmem:[%s244 + $0x60] sm:%s236] %v269
                %v271 = vld [vmem:[%s243 + $0x68] sm:%s236]
                %272 = vst [vmem:[%s244 + $0x68] sm:%s236] %v271
                %v273 = vld [vmem:[%s243 + $0x70] sm:%s236]
                %274 = vst [vmem:[%s244 + $0x70] sm:%s236] %v273
                %v275 = vld [vmem:[%s243 + $0x78] sm:%s236]
                %276 = vst [vmem:[%s244 + $0x78] sm:%s236] %v275
                %v277 = vld [vmem:[%s243 + $0x100] sm:%s236]
                %278 = vst [vmem:[%s244 + $0x80] sm:%s236] %v277
                %v279 = vld [vmem:[%s243 + $0x108] sm:%s236]
                %280 = vst [vmem:[%s244 + $0x88] sm:%s236] %v279
                %v281 = vld [vmem:[%s243 + $0x110] sm:%s236]
                %282 = vst [vmem:[%s244 + $0x90] sm:%s236] %v281
                %v283 = vld [vmem:[%s243 + $0x118] sm:%s236]
                %284 = vst [vmem:[%s244 + $0x98] sm:%s236] %v283
                %v285 = vld [vmem:[%s243 + $0x120] sm:%s236]
                %286 = vst [vmem:[%s244 + $0xa0] sm:%s236] %v285
                %v287 = vld [vmem:[%s243 + $0x128] sm:%s236]
                %288 = vst [vmem:[%s244 + $0xa8] sm:%s236] %v287
                %v289 = vld [vmem:[%s243 + $0x130] sm:%s236]
                %290 = vst [vmem:[%s244 + $0xb0] sm:%s236] %v289
                %v291 = vld [vmem:[%s243 + $0x138] sm:%s236]
                %292 = vst [vmem:[%s244 + $0xb8] sm:%s236] %v291
                %v293 = vld [vmem:[%s243 + $0x140] sm:%s236]
                %294 = vst [vmem:[%s244 + $0xc0] sm:%s236] %v293
                %v295 = vld [vmem:[%s243 + $0x148] sm:%s236]
                %296 = vst [vmem:[%s244 + $0xc8] sm:%s236] %v295
                %v297 = vld [vmem:[%s243 + $0x150] sm:%s236]
                %298 = vst [vmem:[%s244 + $0xd0] sm:%s236] %v297
                %v299 = vld [vmem:[%s243 + $0x158] sm:%s236]
                %300 = vst [vmem:[%s244 + $0xd8] sm:%s236] %v299
                %v301 = vld [vmem:[%s243 + $0x160] sm:%s236]
                %302 = vst [vmem:[%s244 + $0xe0] sm:%s236] %v301
                %v303 = vld [vmem:[%s243 + $0x168] sm:%s236]
                %304 = vst [vmem:[%s244 + $0xe8] sm:%s236] %v303
                %v305 = vld [vmem:[%s243 + $0x170] sm:%s236]
                %306 = vst [vmem:[%s244 + $0xf0] sm:%s236] %v305
                %v307 = vld [vmem:[%s243 + $0x178] sm:%s236]
                %308 = vst [vmem:[%s244 + $0xf8] sm:%s236] %v307
                %v309 = vld [vmem:[%s243 + $0x200] sm:%s236]
                %310 = vst [vmem:[%s244 + $0x100] sm:%s236] %v309
                %v311 = vld [vmem:[%s243 + $0x208] sm:%s236]
                %312 = vst [vmem:[%s244 + $0x108] sm:%s236] %v311
                %v313 = vld [vmem:[%s243 + $0x210] sm:%s236]
                %314 = vst [vmem:[%s244 + $0x110] sm:%s236] %v313
                %v315 = vld [vmem:[%s243 + $0x218] sm:%s236]
                %316 = vst [vmem:[%s244 + $0x118] sm:%s236] %v315
                %v317 = vld [vmem:[%s243 + $0x220] sm:%s236]
                %318 = vst [vmem:[%s244 + $0x120] sm:%s236] %v317
                %v319 = vld [vmem:[%s243 + $0x228] sm:%s236]
                %320 = vst [vmem:[%s244 + $0x128] sm:%s236] %v319
                %v321 = vld [vmem:[%s243 + $0x230] sm:%s236]
                %322 = vst [vmem:[%s244 + $0x130] sm:%s236] %v321
                %v323 = vld [vmem:[%s243 + $0x238] sm:%s236]
                %324 = vst [vmem:[%s244 + $0x138] sm:%s236] %v323
                %v325 = vld [vmem:[%s243 + $0x240] sm:%s236]
                %326 = vst [vmem:[%s244 + $0x140] sm:%s236] %v325
                %v327 = vld [vmem:[%s243 + $0x248] sm:%s236]
                %328 = vst [vmem:[%s244 + $0x148] sm:%s236] %v327
                %v329 = vld [vmem:[%s243 + $0x250] sm:%s236]
                %330 = vst [vmem:[%s244 + $0x150] sm:%s236] %v329
                %v331 = vld [vmem:[%s243 + $0x258] sm:%s236]
                %332 = vst [vmem:[%s244 + $0x158] sm:%s236] %v331
                %v333 = vld [vmem:[%s243 + $0x260] sm:%s236]
                %334 = vst [vmem:[%s244 + $0x160] sm:%s236] %v333
                %v335 = vld [vmem:[%s243 + $0x268] sm:%s236]
                %336 = vst [vmem:[%s244 + $0x168] sm:%s236] %v335
                %v337 = vld [vmem:[%s243 + $0x270] sm:%s236]
                %338 = vst [vmem:[%s244 + $0x170] sm:%s236] %v337
                %v339 = vld [vmem:[%s243 + $0x278] sm:%s236]
                %340 = vst [vmem:[%s244 + $0x178] sm:%s236] %v339
              $region53: #{tpu_custom_call.1} parent=47 // loop_footer
                %s242 = sadd.s32 1, %s238
              $region54: #{tpu_custom_call.1} parent=47 // loop_footer_branch
                %237 = sbr.rel target = $region50
              $region55: #{tpu_custom_call.1} parent=47 // loop_exit
                _
            $region48: #{tpu_custom_call.1} parent=39 // pred_fallthru
              _
          $region40: #{tpu_custom_call.1} parent=35 // pred_fallthru
            _
          %449 = vnop
        $region36: #{tpu_custom_call.1} parent=27 // pred_fallthru
          _
        // Predicated region
        $region71: #{tpu_custom_call.1} parent=27 // pred_check
          %p450 = pneg %p87
        $region72: #{tpu_custom_call.1} parent=27 // pred_check_branch
          %452 = sbr.rel (%p450) target = $region74
        $region73: #{tpu_custom_call.1} parent=27 // pred_region
          %s453 = smul.u32 16, %s15
          %p454 = scmp.lt.s32.totalorder %s453, 31
          %s455 = scalar_select %p454, %s453, 31
          %s456 = smul.addr %s455, 8
          %s457 = scalar_lea.vmem %s2, %s456
          %s458 = smul.u32 16, %s15
        $region74: #{tpu_custom_call.1} parent=27 // pred_fallthru
          _
      $region28: #{tpu_custom_call.1} parent=5 // pred_fallthru
        _
      %p459 = scmp.le.s32.totalorder 1, %s15
      %p460 = scmp.lt.s32.totalorder %s15, 3
      %p461 = pnand %p459, %p460
      %p462 = pneg %p461
      // Predicated region
      $region75: #{tpu_custom_call.1} parent=5 // pred_check
        _
      $region76: #{tpu_custom_call.1} parent=5 // pred_check_branch
        %464 = sbr.rel (%p461) target = $region78
      $region77: #{tpu_custom_call.1} parent=5 // pred_region
        %s465 = ssub.s32 %s15, 1
        %s466 = sand.u32 %s54, 1
        %s467 = sand.u32 %s54, 1
        %s468 = smul.addr %s467, 384
        %s469 = scalar_lea.vmem [#allocation2], %s468
        // Predicated region
        $region79: #{tpu_custom_call.1} parent=77 // pred_check
          %p470 = pneg %p67
        $region80: #{tpu_custom_call.1} parent=77 // pred_check_branch
          %472 = sbr.rel (%p470) target = $region82
        $region81: #{tpu_custom_call.1} parent=77 // pred_region
          _
        $region82: #{tpu_custom_call.1} parent=77 // pred_fallthru
          _
        %s473 = smul.u32 16, %s20
        %p474 = scmp.lt.s32.totalorder %s473, 31
        %s475 = scalar_select %p474, %s473, 31
        %s476 = smul.addr %s475, 8
        %s477 = scalar_lea.vmem %s0, %s476
        %p478 = pneg %p41
        %p479 = pneg %p38
        %s480 = sand.u32 %s54, 1
        %s481 = sand.u32 %s54, 1
        %s482 = smul.addr %s481, 384
        %s483 = scalar_lea.vmem [#allocation2], %s482
        %p484 = pneg %p67
        %p485 = pneg %p64
        %s486 = smul.u32 16, %s20
        %p487 = scmp.lt.s32.totalorder %s486, 31
        %s488 = scalar_select %p487, %s486, 31
        %s489 = smul.addr %s488, 8
        %s490 = scalar_lea.vmem %s2, %s489
        %p491 = pneg %p93
        %p492 = pneg %p90
        %p493 = pneg %p114
        %p494 = pneg %p111
        %p495 = pneg %p135
        %p496 = pneg %p132
        %p497 = pneg %p156
        %p498 = pneg %p153
        %p499 = pneg %p182
        %p500 = pneg %p179
        %s501 = sand.u32 %s169, 1
        %s502 = scalar_lea.sflag [#allocation4], %s501
        %s503 = sand.u32 %s169, 1
        %s504 = smul.addr %s503, 128
        %s505 = scalar_lea.vmem [#allocation3], %s504
        %s506 = smul.u32 16, %s20
        %p507 = scmp.lt.s32.totalorder %s506, 31
        %s508 = scalar_select %p507, %s506, 31
        %s509 = smul.addr %s508, 8
        %s510 = scalar_lea.vmem %s0, %s509
        %s511 = smul.u32 16, %s20
        %s512 = smul.u32 16, %s20
        %s513 = smul.u32 16, %s20
        %p514 = scmp.lt.s32.totalorder %s513, 31
        %s515 = scalar_select %p514, %s513, 31
        %s516 = smul.addr %s515, 8
        %s517 = scalar_lea.vmem %s2, %s516
        %s518 = smul.u32 16, %s20
        %s519 = smul.u32 16, %s20
        %v520 = vld [vmem:[%s469] sm:$0xff]
        %v521 = vld [vmem:[%s469 + $0x8] sm:$0xff]
        %v522 = vld [vmem:[%s469 + $0x10] sm:$0xff]
        %v523 = vld [vmem:[%s469 + $0x18] sm:$0xff]
        %v524 = vld [vmem:[%s469 + $0x20] sm:$0xff]
        %v525 = vld [vmem:[%s469 + $0x28] sm:$0xff]
        %v526 = vld [vmem:[%s469 + $0x30] sm:$0xff]
        %v527 = vld [vmem:[%s469 + $0x38] sm:$0xff]
        %v528 = vld [vmem:[%s469 + $0x40] sm:$0xff]
        %v529 = vld [vmem:[%s469 + $0x48] sm:$0xff]
        %v530 = vld [vmem:[%s469 + $0x50] sm:$0xff]
        %v531 = vld [vmem:[%s469 + $0x58] sm:$0xff]
        %v532 = vld [vmem:[%s469 + $0x60] sm:$0xff]
        %v533 = vld [vmem:[%s469 + $0x68] sm:$0xff]
        %v534 = vld [vmem:[%s469 + $0x70] sm:$0xff]
        %v535 = vld [vmem:[%s469 + $0x78] sm:$0xff]
        %s536 = scalar_lea.vmem %s469, 128 [#allocation2]
        %v537 = vld [vmem:[%s536] sm:$0xff]
        %v538 = vld [vmem:[%s536 + $0x8] sm:$0xff]
        %v539 = vld [vmem:[%s536 + $0x10] sm:$0xff]
        %v540 = vld [vmem:[%s536 + $0x18] sm:$0xff]
        %v541 = vld [vmem:[%s536 + $0x20] sm:$0xff]
        %v542 = vld [vmem:[%s536 + $0x28] sm:$0xff]
        %v543 = vld [vmem:[%s536 + $0x30] sm:$0xff]
        %v544 = vld [vmem:[%s536 + $0x38] sm:$0xff]
        %v545 = vld [vmem:[%s536 + $0x40] sm:$0xff]
        %v546 = vld [vmem:[%s536 + $0x48] sm:$0xff]
        %v547 = vld [vmem:[%s536 + $0x50] sm:$0xff]
        %v548 = vld [vmem:[%s536 + $0x58] sm:$0xff]
        %v549 = vld [vmem:[%s536 + $0x60] sm:$0xff]
        %v550 = vld [vmem:[%s536 + $0x68] sm:$0xff]
        %v551 = vld [vmem:[%s536 + $0x70] sm:$0xff]
        %v552 = vld [vmem:[%s536 + $0x78] sm:$0xff]
        %s553 = scalar_lea.vmem %s469, 256 [#allocation2]
        %v554 = vld [vmem:[%s553] sm:$0xff]
        %v555 = vld [vmem:[%s553 + $0x8] sm:$0xff]
        %v556 = vld [vmem:[%s553 + $0x10] sm:$0xff]
        %v557 = vld [vmem:[%s553 + $0x18] sm:$0xff]
        %v558 = vld [vmem:[%s553 + $0x20] sm:$0xff]
        %v559 = vld [vmem:[%s553 + $0x28] sm:$0xff]
        %v560 = vld [vmem:[%s553 + $0x30] sm:$0xff]
        %v561 = vld [vmem:[%s553 + $0x38] sm:$0xff]
        %v562 = vld [vmem:[%s553 + $0x40] sm:$0xff]
        %v563 = vld [vmem:[%s553 + $0x48] sm:$0xff]
        %v564 = vld [vmem:[%s553 + $0x50] sm:$0xff]
        %v565 = vld [vmem:[%s553 + $0x58] sm:$0xff]
        %v566 = vld [vmem:[%s553 + $0x60] sm:$0xff]
        %v567 = vld [vmem:[%s553 + $0x68] sm:$0xff]
        %v568 = vld [vmem:[%s553 + $0x70] sm:$0xff]
        %v569 = vld [vmem:[%s553 + $0x78] sm:$0xff]
        %v570 = vld [vmem:[%s3] sm:$0xff]
        %v571 = vld [vmem:[%s3 + $0x8] sm:$0xff]
        %vm572 = vcmask 130048
        %v574 = vsel %vm572, %v520, 0
        %v577 = vsel %vm572, %v521, 0
        %v580 = vsel %vm572, %v522, 0
        %v583 = vsel %vm572, %v523, 0
        %v586 = vsel %vm572, %v524, 0
        %v589 = vsel %vm572, %v525, 0
        %v592 = vsel %vm572, %v526, 0
        %v595 = vsel %vm572, %v527, 0
        %v598 = vsel %vm572, %v528, 0
        %v601 = vsel %vm572, %v529, 0
        %v604 = vsel %vm572, %v530, 0
        %v607 = vsel %vm572, %v531, 0
        %v610 = vsel %vm572, %v532, 0
        %v613 = vsel %vm572, %v533, 0
        %v616 = vsel %vm572, %v534, 0
        %v619 = vsel %vm572, %v535, 0
        %v622 = vsel %vm572, %v537, 0
        %v625 = vsel %vm572, %v538, 0
        %v628 = vsel %vm572, %v539, 0
        %v631 = vsel %vm572, %v540, 0
        %v634 = vsel %vm572, %v541, 0
        %v637 = vsel %vm572, %v542, 0
        %v640 = vsel %vm572, %v543, 0
        %v643 = vsel %vm572, %v544, 0
        %v646 = vsel %vm572, %v545, 0
        %v649 = vsel %vm572, %v546, 0
        %v652 = vsel %vm572, %v547, 0
        %v655 = vsel %vm572, %v548, 0
        %v658 = vsel %vm572, %v549, 0
        %v661 = vsel %vm572, %v550, 0
        %v664 = vsel %vm572, %v551, 0
        %v667 = vsel %vm572, %v552, 0
        %v670 = vsel %vm572, %v554, 0
        %v673 = vsel %vm572, %v555, 0
        %v676 = vsel %vm572, %v556, 0
        %v679 = vsel %vm572, %v557, 0
        %v682 = vsel %vm572, %v558, 0
        %v685 = vsel %vm572, %v559, 0
        %v688 = vsel %vm572, %v560, 0
        %v691 = vsel %vm572, %v561, 0
        %v694 = vsel %vm572, %v562, 0
        %v697 = vsel %vm572, %v563, 0
        %v700 = vsel %vm572, %v564, 0
        %v703 = vsel %vm572, %v565, 0
        %v706 = vsel %vm572, %v566, 0
        %v709 = vsel %vm572, %v567, 0
        %v712 = vsel %vm572, %v568, 0
        %v715 = vsel %vm572, %v569, 0
        %717 = vmatprep.subr.mxu0 0.0
        %718 = vmatpush1.msra.mxu0 0.0
        %719 = vmatprep.subr.mxu0 0.0
        %720 = vmatpush1.msra.mxu0 0.0
        %721 = vmatprep.subr.mxu0 0.0
        %722 = vmatpush1.msra.mxu0 0.0
        %723 = vmatprep.subr.mxu0 0.0
        %724 = vmatpush1.msra.mxu0 0.0
        %725 = vmatprep.subr.mxu0 0.0
        %726 = vmatpush1.msra.mxu0 0.0
        %727 = vmatprep.subr.mxu0 0.0
        %728 = vmatpush1.msra.mxu0 0.0
        %729 = vmatprep.subr.mxu0 0.0
        %730 = vmatpush1.msra.mxu0 0.0
        %731 = vmatprep.subr.mxu0 0.0
        %732 = vmatpush1.msra.mxu0 0.0
        %733 = vmatprep.subr.mxu0 0.0
        %734 = vmatpush1.msra.mxu0 0.0
        %735 = vmatprep.subr.mxu0 0.0
        %736 = vmatpush1.msra.mxu0 0.0
        %737 = vmatprep.subr.mxu0 0.0
        %738 = vmatpush1.msra.mxu0 0.0
        %739 = vmatprep.subr.mxu0 0.0
        %740 = vmatpush1.msra.mxu0 0.0
        %741 = vmatprep.subr.mxu0 0.0
        %742 = vmatpush1.msra.mxu0 0.0
        %743 = vmatprep.subr.mxu0 0.0
        %744 = vmatpush1.msra.mxu0 0.0
        %745 = vmatprep.subr.mxu0 0.0
        %746 = vmatpush1.msra.mxu0 %v571
        %747 = vmatprep.subr.mxu0 0.0
        %748 = vmatpush1.msra.mxu0 %v570
        %749 = vmatprep.subr.mxu0 0.0
        %750 = vmatpush2.msra.mxu0 0.0
        %751 = vmatprep.subr.mxu0 0.0
        %752 = vmatpush2.msra.mxu0 0.0
        %753 = vmatprep.subr.mxu0 0.0
        %754 = vmatpush2.msra.mxu0 0.0
        %755 = vmatprep.subr.mxu0 0.0
        %756 = vmatpush2.msra.mxu0 0.0
        %757 = vmatprep.subr.mxu0 0.0
        %758 = vmatpush2.msra.mxu0 0.0
        %759 = vmatprep.subr.mxu0 0.0
        %760 = vmatpush2.msra.mxu0 0.0
        %761 = vmatprep.subr.mxu0 0.0
        %762 = vmatpush2.msra.mxu0 0.0
        %763 = vmatprep.subr.mxu0 0.0
        %764 = vmatpush2.msra.mxu0 0.0
        %765 = vmatprep.subr.mxu0 0.0
        %766 = vmatpush2.msra.mxu0 0.0
        %767 = vmatprep.subr.mxu0 0.0
        %768 = vmatpush2.msra.mxu0 0.0
        %769 = vmatprep.subr.mxu0 0.0
        %770 = vmatpush2.msra.mxu0 0.0
        %771 = vmatprep.subr.mxu0 0.0
        %772 = vmatpush2.msra.mxu0 0.0
        %773 = vmatprep.subr.mxu0 0.0
        %774 = vmatpush2.msra.mxu0 0.0
        %775 = vmatprep.subr.mxu0 0.0
        %776 = vmatpush2.msra.mxu0 0.0
        %777 = vmatprep.subr.mxu0 0.0
        %778 = vmatpush2.msra.mxu0 0.0
        %779 = vmatprep.subr.mxu0 0.0
        %780 = vmatpush2.msra.mxu0 0.0
        %781 = vmatprep.mubr.f32.mxu0 0.0
        %782 = vmatmul.mubr.f32.gmra.mxu0 %v574
        %v783 = vpop.f32.mrf.mxu0
        %v784 = vadd.f32 0.0, %v783
        %v785 = vpop.f32.mrf.mxu0
        %786 = vmatprep.mubr.f32.mxu0 0.0
        %787 = vmatmul.mubr.f32.gmra.mxu0 %v577
        %v788 = vpop.f32.mrf.mxu0
        %v789 = vadd.f32 0.0, %v788
        %v790 = vpop.f32.mrf.mxu0
        %791 = vmatprep.mubr.f32.mxu0 0.0
        %792 = vmatmul.mubr.f32.gmra.mxu0 %v580
        %v793 = vpop.f32.mrf.mxu0
        %v794 = vadd.f32 0.0, %v793
        %v795 = vpop.f32.mrf.mxu0
        %796 = vmatprep.mubr.f32.mxu0 0.0
        %797 = vmatmul.mubr.f32.gmra.mxu0 %v583
        %v798 = vpop.f32.mrf.mxu0
        %v799 = vadd.f32 0.0, %v798
        %v800 = vpop.f32.mrf.mxu0
        %801 = vmatprep.mubr.f32.mxu0 0.0
        %802 = vmatmul.mubr.f32.gmra.mxu0 %v586
        %v803 = vpop.f32.mrf.mxu0
        %v804 = vadd.f32 0.0, %v803
        %v805 = vpop.f32.mrf.mxu0
        %806 = vmatprep.mubr.f32.mxu0 0.0
        %807 = vmatmul.mubr.f32.gmra.mxu0 %v589
        %v808 = vpop.f32.mrf.mxu0
        %v809 = vadd.f32 0.0, %v808
        %v810 = vpop.f32.mrf.mxu0
        %811 = vmatprep.mubr.f32.mxu0 0.0
        %812 = vmatmul.mubr.f32.gmra.mxu0 %v592
        %v813 = vpop.f32.mrf.mxu0
        %v814 = vadd.f32 0.0, %v813
        %v815 = vpop.f32.mrf.mxu0
        %816 = vmatprep.mubr.f32.mxu0 0.0
        %817 = vmatmul.mubr.f32.gmra.mxu0 %v595
        %v818 = vpop.f32.mrf.mxu0
        %v819 = vadd.f32 0.0, %v818
        %v820 = vpop.f32.mrf.mxu0
        %821 = vmatprep.mubr.f32.mxu0 0.0
        %822 = vmatmul.mubr.f32.gmra.mxu0 %v598
        %v823 = vpop.f32.mrf.mxu0
        %v824 = vadd.f32 0.0, %v823
        %v825 = vpop.f32.mrf.mxu0
        %826 = vmatprep.mubr.f32.mxu0 0.0
        %827 = vmatmul.mubr.f32.gmra.mxu0 %v601
        %v828 = vpop.f32.mrf.mxu0
        %v829 = vadd.f32 0.0, %v828
        %v830 = vpop.f32.mrf.mxu0
        %831 = vmatprep.mubr.f32.mxu0 0.0
        %832 = vmatmul.mubr.f32.gmra.mxu0 %v604
        %v833 = vpop.f32.mrf.mxu0
        %v834 = vadd.f32 0.0, %v833
        %v835 = vpop.f32.mrf.mxu0
        %836 = vmatprep.mubr.f32.mxu0 0.0
        %837 = vmatmul.mubr.f32.gmra.mxu0 %v607
        %v838 = vpop.f32.mrf.mxu0
        %v839 = vadd.f32 0.0, %v838
        %v840 = vpop.f32.mrf.mxu0
        %841 = vmatprep.mubr.f32.mxu0 0.0
        %842 = vmatmul.mubr.f32.gmra.mxu0 %v610
        %v843 = vpop.f32.mrf.mxu0
        %v844 = vadd.f32 0.0, %v843
        %v845 = vpop.f32.mrf.mxu0
        %846 = vmatprep.mubr.f32.mxu0 0.0
        %847 = vmatmul.mubr.f32.gmra.mxu0 %v613
        %v848 = vpop.f32.mrf.mxu0
        %v849 = vadd.f32 0.0, %v848
        %v850 = vpop.f32.mrf.mxu0
        %851 = vmatprep.mubr.f32.mxu0 0.0
        %852 = vmatmul.mubr.f32.gmra.mxu0 %v616
        %v853 = vpop.f32.mrf.mxu0
        %v854 = vadd.f32 0.0, %v853
        %v855 = vpop.f32.mrf.mxu0
        %856 = vmatprep.mubr.f32.mxu0 0.0
        %857 = vmatmul.mubr.f32.gmra.mxu0 %v619
        %v858 = vpop.f32.mrf.mxu0
        %v859 = vadd.f32 0.0, %v858
        %v860 = vpop.f32.mrf.mxu0
        %861 = vmatprep.mubr.f32.mxu0 0.0
        %862 = vmatmul.mubr.f32.gmra.mxu0 %v622
        %v863 = vpop.f32.mrf.mxu0
        %v864 = vadd.f32 0.0, %v863
        %v865 = vpop.f32.mrf.mxu0
        %866 = vmatprep.mubr.f32.mxu0 0.0
        %867 = vmatmul.mubr.f32.gmra.mxu0 %v625
        %v868 = vpop.f32.mrf.mxu0
        %v869 = vadd.f32 0.0, %v868
        %v870 = vpop.f32.mrf.mxu0
        %871 = vmatprep.mubr.f32.mxu0 0.0
        %872 = vmatmul.mubr.f32.gmra.mxu0 %v628
        %v873 = vpop.f32.mrf.mxu0
        %v874 = vadd.f32 0.0, %v873
        %v875 = vpop.f32.mrf.mxu0
        %876 = vmatprep.mubr.f32.mxu0 0.0
        %877 = vmatmul.mubr.f32.gmra.mxu0 %v631
        %v878 = vpop.f32.mrf.mxu0
        %v879 = vadd.f32 0.0, %v878
        %v880 = vpop.f32.mrf.mxu0
        %881 = vmatprep.mubr.f32.mxu0 0.0
        %882 = vmatmul.mubr.f32.gmra.mxu0 %v634
        %v883 = vpop.f32.mrf.mxu0
        %v884 = vadd.f32 0.0, %v883
        %v885 = vpop.f32.mrf.mxu0
        %886 = vmatprep.mubr.f32.mxu0 0.0
        %887 = vmatmul.mubr.f32.gmra.mxu0 %v637
        %v888 = vpop.f32.mrf.mxu0
        %v889 = vadd.f32 0.0, %v888
        %v890 = vpop.f32.mrf.mxu0
        %891 = vmatprep.mubr.f32.mxu0 0.0
        %892 = vmatmul.mubr.f32.gmra.mxu0 %v640
        %v893 = vpop.f32.mrf.mxu0
        %v894 = vadd.f32 0.0, %v893
        %v895 = vpop.f32.mrf.mxu0
        %896 = vmatprep.mubr.f32.mxu0 0.0
        %897 = vmatmul.mubr.f32.gmra.mxu0 %v643
        %v898 = vpop.f32.mrf.mxu0
        %v899 = vadd.f32 0.0, %v898
        %v900 = vpop.f32.mrf.mxu0
        %901 = vmatprep.mubr.f32.mxu0 0.0
        %902 = vmatmul.mubr.f32.gmra.mxu0 %v646
        %v903 = vpop.f32.mrf.mxu0
        %v904 = vadd.f32 0.0, %v903
        %v905 = vpop.f32.mrf.mxu0
        %906 = vmatprep.mubr.f32.mxu0 0.0
        %907 = vmatmul.mubr.f32.gmra.mxu0 %v649
        %v908 = vpop.f32.mrf.mxu0
        %v909 = vadd.f32 0.0, %v908
        %v910 = vpop.f32.mrf.mxu0
        %911 = vmatprep.mubr.f32.mxu0 0.0
        %912 = vmatmul.mubr.f32.gmra.mxu0 %v652
        %v913 = vpop.f32.mrf.mxu0
        %v914 = vadd.f32 0.0, %v913
        %v915 = vpop.f32.mrf.mxu0
        %916 = vmatprep.mubr.f32.mxu0 0.0
        %917 = vmatmul.mubr.f32.gmra.mxu0 %v655
        %v918 = vpop.f32.mrf.mxu0
        %v919 = vadd.f32 0.0, %v918
        %v920 = vpop.f32.mrf.mxu0
        %921 = vmatprep.mubr.f32.mxu0 0.0
        %922 = vmatmul.mubr.f32.gmra.mxu0 %v658
        %v923 = vpop.f32.mrf.mxu0
        %v924 = vadd.f32 0.0, %v923
        %v925 = vpop.f32.mrf.mxu0
        %926 = vmatprep.mubr.f32.mxu0 0.0
        %927 = vmatmul.mubr.f32.gmra.mxu0 %v661
        %v928 = vpop.f32.mrf.mxu0
        %v929 = vadd.f32 0.0, %v928
        %v930 = vpop.f32.mrf.mxu0
        %931 = vmatprep.mubr.f32.mxu0 0.0
        %932 = vmatmul.mubr.f32.gmra.mxu0 %v664
        %v933 = vpop.f32.mrf.mxu0
        %v934 = vadd.f32 0.0, %v933
        %v935 = vpop.f32.mrf.mxu0
        %936 = vmatprep.mubr.f32.mxu0 0.0
        %937 = vmatmul.mubr.f32.gmra.mxu0 %v667
        %v938 = vpop.f32.mrf.mxu0
        %v939 = vadd.f32 0.0, %v938
        %v940 = vpop.f32.mrf.mxu0
        %941 = vmatprep.mubr.f32.mxu0 0.0
        %942 = vmatmul.mubr.f32.gmra.mxu0 %v670
        %v943 = vpop.f32.mrf.mxu0
        %v944 = vadd.f32 0.0, %v943
        %v945 = vpop.f32.mrf.mxu0
        %946 = vmatprep.mubr.f32.mxu0 0.0
        %947 = vmatmul.mubr.f32.gmra.mxu0 %v673
        %v948 = vpop.f32.mrf.mxu0
        %v949 = vadd.f32 0.0, %v948
        %v950 = vpop.f32.mrf.mxu0
        %951 = vmatprep.mubr.f32.mxu0 0.0
        %952 = vmatmul.mubr.f32.gmra.mxu0 %v676
        %v953 = vpop.f32.mrf.mxu0
        %v954 = vadd.f32 0.0, %v953
        %v955 = vpop.f32.mrf.mxu0
        %956 = vmatprep.mubr.f32.mxu0 0.0
        %957 = vmatmul.mubr.f32.gmra.mxu0 %v679
        %v958 = vpop.f32.mrf.mxu0
        %v959 = vadd.f32 0.0, %v958
        %v960 = vpop.f32.mrf.mxu0
        %961 = vmatprep.mubr.f32.mxu0 0.0
        %962 = vmatmul.mubr.f32.gmra.mxu0 %v682
        %v963 = vpop.f32.mrf.mxu0
        %v964 = vadd.f32 0.0, %v963
        %v965 = vpop.f32.mrf.mxu0
        %966 = vmatprep.mubr.f32.mxu0 0.0
        %967 = vmatmul.mubr.f32.gmra.mxu0 %v685
        %v968 = vpop.f32.mrf.mxu0
        %v969 = vadd.f32 0.0, %v968
        %v970 = vpop.f32.mrf.mxu0
        %971 = vmatprep.mubr.f32.mxu0 0.0
        %972 = vmatmul.mubr.f32.gmra.mxu0 %v688
        %v973 = vpop.f32.mrf.mxu0
        %v974 = vadd.f32 0.0, %v973
        %v975 = vpop.f32.mrf.mxu0
        %976 = vmatprep.mubr.f32.mxu0 0.0
        %977 = vmatmul.mubr.f32.gmra.mxu0 %v691
        %v978 = vpop.f32.mrf.mxu0
        %v979 = vadd.f32 0.0, %v978
        %v980 = vpop.f32.mrf.mxu0
        %981 = vmatprep.mubr.f32.mxu0 0.0
        %982 = vmatmul.mubr.f32.gmra.mxu0 %v694
        %v983 = vpop.f32.mrf.mxu0
        %v984 = vadd.f32 0.0, %v983
        %v985 = vpop.f32.mrf.mxu0
        %986 = vmatprep.mubr.f32.mxu0 0.0
        %987 = vmatmul.mubr.f32.gmra.mxu0 %v697
        %v988 = vpop.f32.mrf.mxu0
        %v989 = vadd.f32 0.0, %v988
        %v990 = vpop.f32.mrf.mxu0
        %991 = vmatprep.mubr.f32.mxu0 0.0
        %992 = vmatmul.mubr.f32.gmra.mxu0 %v700
        %v993 = vpop.f32.mrf.mxu0
        %v994 = vadd.f32 0.0, %v993
        %v995 = vpop.f32.mrf.mxu0
        %996 = vmatprep.mubr.f32.mxu0 0.0
        %997 = vmatmul.mubr.f32.gmra.mxu0 %v703
        %v998 = vpop.f32.mrf.mxu0
        %v999 = vadd.f32 0.0, %v998
        %v1000 = vpop.f32.mrf.mxu0
        %1001 = vmatprep.mubr.f32.mxu0 0.0
        %1002 = vmatmul.mubr.f32.gmra.mxu0 %v706
        %v1003 = vpop.f32.mrf.mxu0
        %v1004 = vadd.f32 0.0, %v1003
        %v1005 = vpop.f32.mrf.mxu0
        %1006 = vmatprep.mubr.f32.mxu0 0.0
        %1007 = vmatmul.mubr.f32.gmra.mxu0 %v709
        %v1008 = vpop.f32.mrf.mxu0
        %v1009 = vadd.f32 0.0, %v1008
        %v1010 = vpop.f32.mrf.mxu0
        %1011 = vmatprep.mubr.f32.mxu0 0.0
        %1012 = vmatmul.mubr.f32.gmra.mxu0 %v712
        %v1013 = vpop.f32.mrf.mxu0
        %v1014 = vadd.f32 0.0, %v1013
        %v1015 = vpop.f32.mrf.mxu0
        %1016 = vmatprep.mubr.f32.mxu0 0.0
        %1017 = vmatmul.mubr.f32.gmra.mxu0 %v715
        %v1018 = vpop.f32.mrf.mxu0
        %v1019 = vadd.f32 0.0, %v1018
        %v1020 = vpop.f32.mrf.mxu0
        %1021 = vdwg.mxu0
        %v1022 = vmul.f32 %v784, %v784
        %v1023 = vmul.f32 %v789, %v789
        %v1024 = vmul.f32 %v794, %v794
        %v1025 = vmul.f32 %v799, %v799
        %v1026 = vmul.f32 %v804, %v804
        %v1027 = vmul.f32 %v809, %v809
        %v1028 = vmul.f32 %v814, %v814
        %v1029 = vmul.f32 %v819, %v819
        %v1030 = vmul.f32 %v824, %v824
        %v1031 = vmul.f32 %v829, %v829
        %v1032 = vmul.f32 %v834, %v834
        %v1033 = vmul.f32 %v839, %v839
        %v1034 = vmul.f32 %v844, %v844
        %v1035 = vmul.f32 %v849, %v849
        %v1036 = vmul.f32 %v854, %v854
        %v1037 = vmul.f32 %v859, %v859
        %v1038 = vmul.f32 %v864, %v864
        %v1039 = vmul.f32 %v869, %v869
        %v1040 = vmul.f32 %v874, %v874
        %v1041 = vmul.f32 %v879, %v879
        %v1042 = vmul.f32 %v884, %v884
        %v1043 = vmul.f32 %v889, %v889
        %v1044 = vmul.f32 %v894, %v894
        %v1045 = vmul.f32 %v899, %v899
        %v1046 = vmul.f32 %v904, %v904
        %v1047 = vmul.f32 %v909, %v909
        %v1048 = vmul.f32 %v914, %v914
        %v1049 = vmul.f32 %v919, %v919
        %v1050 = vmul.f32 %v924, %v924
        %v1051 = vmul.f32 %v929, %v929
        %v1052 = vmul.f32 %v934, %v934
        %v1053 = vmul.f32 %v939, %v939
        %v1054 = vmul.f32 %v944, %v944
        %v1055 = vmul.f32 %v949, %v949
        %v1056 = vmul.f32 %v954, %v954
        %v1057 = vmul.f32 %v959, %v959
        %v1058 = vmul.f32 %v964, %v964
        %v1059 = vmul.f32 %v969, %v969
        %v1060 = vmul.f32 %v974, %v974
        %v1061 = vmul.f32 %v979, %v979
        %v1062 = vmul.f32 %v984, %v984
        %v1063 = vmul.f32 %v989, %v989
        %v1064 = vmul.f32 %v994, %v994
        %v1065 = vmul.f32 %v999, %v999
        %v1066 = vmul.f32 %v1004, %v1004
        %v1067 = vmul.f32 %v1009, %v1009
        %v1068 = vmul.f32 %v1014, %v1014
        %v1069 = vmul.f32 %v1019, %v1019
        %v1070 = vadd.f32 %v1022, %v1038
        %v1071 = vadd.f32 %v1023, %v1039
        %v1072 = vadd.f32 %v1024, %v1040
        %v1073 = vadd.f32 %v1025, %v1041
        %v1074 = vadd.f32 %v1026, %v1042
        %v1075 = vadd.f32 %v1027, %v1043
        %v1076 = vadd.f32 %v1028, %v1044
        %v1077 = vadd.f32 %v1029, %v1045
        %v1078 = vadd.f32 %v1030, %v1046
        %v1079 = vadd.f32 %v1031, %v1047
        %v1080 = vadd.f32 %v1032, %v1048
        %v1081 = vadd.f32 %v1033, %v1049
        %v1082 = vadd.f32 %v1034, %v1050
        %v1083 = vadd.f32 %v1035, %v1051
        %v1084 = vadd.f32 %v1036, %v1052
        %v1085 = vadd.f32 %v1037, %v1053
        %v1086 = vadd.f32 %v1070, %v1054
        %v1087 = vadd.f32 %v1071, %v1055
        %v1088 = vadd.f32 %v1072, %v1056
        %v1089 = vadd.f32 %v1073, %v1057
        %v1090 = vadd.f32 %v1074, %v1058
        %v1091 = vadd.f32 %v1075, %v1059
        %v1092 = vadd.f32 %v1076, %v1060
        %v1093 = vadd.f32 %v1077, %v1061
        %v1094 = vadd.f32 %v1078, %v1062
        %v1095 = vadd.f32 %v1079, %v1063
        %v1096 = vadd.f32 %v1080, %v1064
        %v1097 = vadd.f32 %v1081, %v1065
        %v1098 = vadd.f32 %v1082, %v1066
        %v1099 = vadd.f32 %v1083, %v1067
        %v1100 = vadd.f32 %v1084, %v1068
        %v1101 = vadd.f32 %v1085, %v1069
        %v1102 = vadd.f32 %v1086, 1e-08
        %v1103 = vadd.f32 %v1087, 1e-08
        %v1104 = vadd.f32 %v1088, 1e-08
        %v1105 = vadd.f32 %v1089, 1e-08
        %v1106 = vadd.f32 %v1090, 1e-08
        %v1107 = vadd.f32 %v1091, 1e-08
        %v1108 = vadd.f32 %v1092, 1e-08
        %v1109 = vadd.f32 %v1093, 1e-08
        %v1110 = vadd.f32 %v1094, 1e-08
        %v1111 = vadd.f32 %v1095, 1e-08
        %v1112 = vadd.f32 %v1096, 1e-08
        %v1113 = vadd.f32 %v1097, 1e-08
        %v1114 = vadd.f32 %v1098, 1e-08
        %v1115 = vadd.f32 %v1099, 1e-08
        %v1116 = vadd.f32 %v1100, 1e-08
        %v1117 = vadd.f32 %v1101, 1e-08
        %v1118 = vrsqrt.pop %v1102
        %v1119 = vmul.f32 %v1102, %v1118
        %vm1120 = vcmp.eq.f32.partialorder %v1102, inf
        %v1121 = vsel %vm1120, %v1102, %v1119
        %vm1122 = vcmp.eq.f32.partialorder %v1102, 0.0
        %v1123 = vand.u32 %v1102, 2147483648
        %v1124 = vsel %vm1122, %v1123, %v1121
        %v1125 = vrsqrt.pop %v1103
        %v1126 = vmul.f32 %v1103, %v1125
        %vm1127 = vcmp.eq.f32.partialorder %v1103, inf
        %v1128 = vsel %vm1127, %v1103, %v1126
        %vm1129 = vcmp.eq.f32.partialorder %v1103, 0.0
        %v1130 = vand.u32 %v1103, 2147483648
        %v1131 = vsel %vm1129, %v1130, %v1128
        %v1132 = vrsqrt.pop %v1104
        %v1133 = vmul.f32 %v1104, %v1132
        %vm1134 = vcmp.eq.f32.partialorder %v1104, inf
        %v1135 = vsel %vm1134, %v1104, %v1133
        %vm1136 = vcmp.eq.f32.partialorder %v1104, 0.0
        %v1137 = vand.u32 %v1104, 2147483648
        %v1138 = vsel %vm1136, %v1137, %v1135
        %v1139 = vrsqrt.pop %v1105
        %v1140 = vmul.f32 %v1105, %v1139
        %vm1141 = vcmp.eq.f32.partialorder %v1105, inf
        %v1142 = vsel %vm1141, %v1105, %v1140
        %vm1143 = vcmp.eq.f32.partialorder %v1105, 0.0
        %v1144 = vand.u32 %v1105, 2147483648
        %v1145 = vsel %vm1143, %v1144, %v1142
        %v1146 = vrsqrt.pop %v1106
        %v1147 = vmul.f32 %v1106, %v1146
        %vm1148 = vcmp.eq.f32.partialorder %v1106, inf
        %v1149 = vsel %vm1148, %v1106, %v1147
        %vm1150 = vcmp.eq.f32.partialorder %v1106, 0.0
        %v1151 = vand.u32 %v1106, 2147483648
        %v1152 = vsel %vm1150, %v1151, %v1149
        %v1153 = vrsqrt.pop %v1107
        %v1154 = vmul.f32 %v1107, %v1153
        %vm1155 = vcmp.eq.f32.partialorder %v1107, inf
        %v1156 = vsel %vm1155, %v1107, %v1154
        %vm1157 = vcmp.eq.f32.partialorder %v1107, 0.0
        %v1158 = vand.u32 %v1107, 2147483648
        %v1159 = vsel %vm1157, %v1158, %v1156
        %v1160 = vrsqrt.pop %v1108
        %v1161 = vmul.f32 %v1108, %v1160
        %vm1162 = vcmp.eq.f32.partialorder %v1108, inf
        %v1163 = vsel %vm1162, %v1108, %v1161
        %vm1164 = vcmp.eq.f32.partialorder %v1108, 0.0
        %v1165 = vand.u32 %v1108, 2147483648
        %v1166 = vsel %vm1164, %v1165, %v1163
        %v1167 = vrsqrt.pop %v1109
        %v1168 = vmul.f32 %v1109, %v1167
        %vm1169 = vcmp.eq.f32.partialorder %v1109, inf
        %v1170 = vsel %vm1169, %v1109, %v1168
        %vm1171 = vcmp.eq.f32.partialorder %v1109, 0.0
        %v1172 = vand.u32 %v1109, 2147483648
        %v1173 = vsel %vm1171, %v1172, %v1170
        %v1174 = vrsqrt.pop %v1110
        %v1175 = vmul.f32 %v1110, %v1174
        %vm1176 = vcmp.eq.f32.partialorder %v1110, inf
        %v1177 = vsel %vm1176, %v1110, %v1175
        %vm1178 = vcmp.eq.f32.partialorder %v1110, 0.0
        %v1179 = vand.u32 %v1110, 2147483648
        %v1180 = vsel %vm1178, %v1179, %v1177
        %v1181 = vrsqrt.pop %v1111
        %v1182 = vmul.f32 %v1111, %v1181
        %vm1183 = vcmp.eq.f32.partialorder %v1111, inf
        %v1184 = vsel %vm1183, %v1111, %v1182
        %vm1185 = vcmp.eq.f32.partialorder %v1111, 0.0
        %v1186 = vand.u32 %v1111, 2147483648
        %v1187 = vsel %vm1185, %v1186, %v1184
        %v1188 = vrsqrt.pop %v1112
        %v1189 = vmul.f32 %v1112, %v1188
        %vm1190 = vcmp.eq.f32.partialorder %v1112, inf
        %v1191 = vsel %vm1190, %v1112, %v1189
        %vm1192 = vcmp.eq.f32.partialorder %v1112, 0.0
        %v1193 = vand.u32 %v1112, 2147483648
        %v1194 = vsel %vm1192, %v1193, %v1191
        %v1195 = vrsqrt.pop %v1113
        %v1196 = vmul.f32 %v1113, %v1195
        %vm1197 = vcmp.eq.f32.partialorder %v1113, inf
        %v1198 = vsel %vm1197, %v1113, %v1196
        %vm1199 = vcmp.eq.f32.partialorder %v1113, 0.0
        %v1200 = vand.u32 %v1113, 2147483648
        %v1201 = vsel %vm1199, %v1200, %v1198
        %v1202 = vrsqrt.pop %v1114
        %v1203 = vmul.f32 %v1114, %v1202
        %vm1204 = vcmp.eq.f32.partialorder %v1114, inf
        %v1205 = vsel %vm1204, %v1114, %v1203
        %vm1206 = vcmp.eq.f32.partialorder %v1114, 0.0
        %v1207 = vand.u32 %v1114, 2147483648
        %v1208 = vsel %vm1206, %v1207, %v1205
        %v1209 = vrsqrt.pop %v1115
        %v1210 = vmul.f32 %v1115, %v1209
        %vm1211 = vcmp.eq.f32.partialorder %v1115, inf
        %v1212 = vsel %vm1211, %v1115, %v1210
        %vm1213 = vcmp.eq.f32.partialorder %v1115, 0.0
        %v1214 = vand.u32 %v1115, 2147483648
        %v1215 = vsel %vm1213, %v1214, %v1212
        %v1216 = vrsqrt.pop %v1116
        %v1217 = vmul.f32 %v1116, %v1216
        %vm1218 = vcmp.eq.f32.partialorder %v1116, inf
        %v1219 = vsel %vm1218, %v1116, %v1217
        %vm1220 = vcmp.eq.f32.partialorder %v1116, 0.0
        %v1221 = vand.u32 %v1116, 2147483648
        %v1222 = vsel %vm1220, %v1221, %v1219
        %v1223 = vrsqrt.pop %v1117
        %v1224 = vmul.f32 %v1117, %v1223
        %vm1225 = vcmp.eq.f32.partialorder %v1117, inf
        %v1226 = vsel %vm1225, %v1117, %v1224
        %vm1227 = vcmp.eq.f32.partialorder %v1117, 0.0
        %v1228 = vand.u32 %v1117, 2147483648
        %v1229 = vsel %vm1227, %v1228, %v1226
        %v1230 = vld [vmem:[%s510] sm:$0xff]
        %v1231 = vld [vmem:[%s510 + $0x8] sm:$0xff]
        %v1232 = vld [vmem:[%s510 + $0x10] sm:$0xff]
        %v1233 = vld [vmem:[%s510 + $0x18] sm:$0xff]
        %v1234 = vld [vmem:[%s510 + $0x20] sm:$0xff]
        %v1235 = vld [vmem:[%s510 + $0x28] sm:$0xff]
        %v1236 = vld [vmem:[%s510 + $0x30] sm:$0xff]
        %v1237 = vld [vmem:[%s510 + $0x38] sm:$0xff]
        %v1238 = vld [vmem:[%s510 + $0x40] sm:$0xff]
        %v1239 = vld [vmem:[%s510 + $0x48] sm:$0xff]
        %v1240 = vld [vmem:[%s510 + $0x50] sm:$0xff]
        %v1241 = vld [vmem:[%s510 + $0x58] sm:$0xff]
        %v1242 = vld [vmem:[%s510 + $0x60] sm:$0xff]
        %v1243 = vld [vmem:[%s510 + $0x68] sm:$0xff]
        %v1244 = vld [vmem:[%s510 + $0x70] sm:$0xff]
        %v1245 = vld [vmem:[%s510 + $0x78] sm:$0xff]
        %v1246 = vld [vmem:[%s4] sm:$0xff]
        %v1247 = vld [vmem:[%s4 + $0x8] sm:$0xff]
        %v1248 = vld [vmem:[%s4 + $0x10] sm:$0xff]
        %v1249 = vld [vmem:[%s4 + $0x18] sm:$0xff]
        %v1250 = vld [vmem:[%s4 + $0x20] sm:$0xff]
        %v1251 = vld [vmem:[%s4 + $0x28] sm:$0xff]
        %v1253 = vsel %vm572, %v1124, 0
        %v1256 = vsel %vm572, %v1131, 0
        %v1259 = vsel %vm572, %v1138, 0
        %v1262 = vsel %vm572, %v1145, 0
        %v1265 = vsel %vm572, %v1152, 0
        %v1268 = vsel %vm572, %v1159, 0
        %v1271 = vsel %vm572, %v1166, 0
        %v1274 = vsel %vm572, %v1173, 0
        %v1277 = vsel %vm572, %v1180, 0
        %v1280 = vsel %vm572, %v1187, 0
        %v1283 = vsel %vm572, %v1194, 0
        %v1286 = vsel %vm572, %v1201, 0
        %v1289 = vsel %vm572, %v1208, 0
        %v1292 = vsel %vm572, %v1215, 0
        %v1295 = vsel %vm572, %v1222, 0
        %v1298 = vsel %vm572, %v1229, 0
        %1300 = vmatprep.subr.mxu0 0.0
        %1301 = vmatpush1.msra.mxu0 0.0
        %1302 = vmatprep.subr.mxu0 0.0
        %1303 = vmatpush1.msra.mxu0 0.0
        %1304 = vmatprep.subr.mxu0 0.0
        %1305 = vmatpush1.msra.mxu0 0.0
        %1306 = vmatprep.subr.mxu0 0.0
        %1307 = vmatpush1.msra.mxu0 0.0
        %1308 = vmatprep.subr.mxu0 0.0
        %1309 = vmatpush1.msra.mxu0 0.0
        %1310 = vmatprep.subr.mxu0 0.0
        %1311 = vmatpush1.msra.mxu0 0.0
        %1312 = vmatprep.subr.mxu0 0.0
        %1313 = vmatpush1.msra.mxu0 0.0
        %1314 = vmatprep.subr.mxu0 0.0
        %1315 = vmatpush1.msra.mxu0 0.0
        %1316 = vmatprep.subr.mxu0 0.0
        %1317 = vmatpush1.msra.mxu0 0.0
        %1318 = vmatprep.subr.mxu0 0.0
        %1319 = vmatpush1.msra.mxu0 0.0
        %1320 = vmatprep.subr.mxu0 0.0
        %1321 = vmatpush1.msra.mxu0 0.0
        %1322 = vmatprep.subr.mxu0 0.0
        %1323 = vmatpush1.msra.mxu0 0.0
        %1324 = vmatprep.subr.mxu0 0.0
        %1325 = vmatpush1.msra.mxu0 0.0
        %1326 = vmatprep.subr.mxu0 0.0
        %1327 = vmatpush1.msra.mxu0 0.0
        %1328 = vmatprep.subr.mxu0 0.0
        %1329 = vmatpush1.msra.mxu0 %v1251
        %1330 = vmatprep.subr.mxu0 0.0
        %1331 = vmatpush1.msra.mxu0 %v1250
        %1332 = vmatprep.subr.mxu0 0.0
        %1333 = vmatpush2.msra.mxu0 0.0
        %1334 = vmatprep.subr.mxu0 0.0
        %1335 = vmatpush2.msra.mxu0 0.0
        %1336 = vmatprep.subr.mxu0 0.0
        %1337 = vmatpush2.msra.mxu0 0.0
        %1338 = vmatprep.subr.mxu0 0.0
        %1339 = vmatpush2.msra.mxu0 0.0
        %1340 = vmatprep.subr.mxu0 0.0
        %1341 = vmatpush2.msra.mxu0 0.0
        %1342 = vmatprep.subr.mxu0 0.0
        %1343 = vmatpush2.msra.mxu0 0.0
        %1344 = vmatprep.subr.mxu0 0.0
        %1345 = vmatpush2.msra.mxu0 0.0
        %1346 = vmatprep.subr.mxu0 0.0
        %1347 = vmatpush2.msra.mxu0 0.0
        %1348 = vmatprep.subr.mxu0 0.0
        %1349 = vmatpush2.msra.mxu0 0.0
        %1350 = vmatprep.subr.mxu0 0.0
        %1351 = vmatpush2.msra.mxu0 0.0
        %1352 = vmatprep.subr.mxu0 0.0
        %1353 = vmatpush2.msra.mxu0 0.0
        %1354 = vmatprep.subr.mxu0 0.0
        %1355 = vmatpush2.msra.mxu0 0.0
        %1356 = vmatprep.subr.mxu0 0.0
        %1357 = vmatpush2.msra.mxu0 0.0
        %1358 = vmatprep.subr.mxu0 0.0
        %1359 = vmatpush2.msra.mxu0 0.0
        %1360 = vmatprep.subr.mxu0 0.0
        %1361 = vmatpush2.msra.mxu0 0.0
        %1362 = vmatprep.subr.mxu0 0.0
        %1363 = vmatpush2.msra.mxu0 0.0
        %1364 = vmatprep.mubr.f32.mxu0 0.0
        %1365 = vmatmul.mubr.f32.gmra.mxu0 %v1253
        %v1366 = vpop.f32.mrf.mxu0
        %v1367 = vadd.f32 0.0, %v1366
        %v1368 = vpop.f32.mrf.mxu0
        %1369 = vmatprep.mubr.f32.mxu0 0.0
        %1370 = vmatmul.mubr.f32.gmra.mxu0 %v1256
        %v1371 = vpop.f32.mrf.mxu0
        %v1372 = vadd.f32 0.0, %v1371
        %v1373 = vpop.f32.mrf.mxu0
        %1374 = vmatprep.mubr.f32.mxu0 0.0
        %1375 = vmatmul.mubr.f32.gmra.mxu0 %v1259
        %v1376 = vpop.f32.mrf.mxu0
        %v1377 = vadd.f32 0.0, %v1376
        %v1378 = vpop.f32.mrf.mxu0
        %1379 = vmatprep.mubr.f32.mxu0 0.0
        %1380 = vmatmul.mubr.f32.gmra.mxu0 %v1262
        %v1381 = vpop.f32.mrf.mxu0
        %v1382 = vadd.f32 0.0, %v1381
        %v1383 = vpop.f32.mrf.mxu0
        %1384 = vmatprep.mubr.f32.mxu0 0.0
        %1385 = vmatmul.mubr.f32.gmra.mxu0 %v1265
        %v1386 = vpop.f32.mrf.mxu0
        %v1387 = vadd.f32 0.0, %v1386
        %v1388 = vpop.f32.mrf.mxu0
        %1389 = vmatprep.mubr.f32.mxu0 0.0
        %1390 = vmatmul.mubr.f32.gmra.mxu0 %v1268
        %v1391 = vpop.f32.mrf.mxu0
        %v1392 = vadd.f32 0.0, %v1391
        %v1393 = vpop.f32.mrf.mxu0
        %1394 = vmatprep.mubr.f32.mxu0 0.0
        %1395 = vmatmul.mubr.f32.gmra.mxu0 %v1271
        %v1396 = vpop.f32.mrf.mxu0
        %v1397 = vadd.f32 0.0, %v1396
        %v1398 = vpop.f32.mrf.mxu0
        %1399 = vmatprep.mubr.f32.mxu0 0.0
        %1400 = vmatmul.mubr.f32.gmra.mxu0 %v1274
        %v1401 = vpop.f32.mrf.mxu0
        %v1402 = vadd.f32 0.0, %v1401
        %v1403 = vpop.f32.mrf.mxu0
        %1404 = vmatprep.mubr.f32.mxu0 0.0
        %1405 = vmatmul.mubr.f32.gmra.mxu0 %v1277
        %v1406 = vpop.f32.mrf.mxu0
        %v1407 = vadd.f32 0.0, %v1406
        %v1408 = vpop.f32.mrf.mxu0
        %1409 = vmatprep.mubr.f32.mxu0 0.0
        %1410 = vmatmul.mubr.f32.gmra.mxu0 %v1280
        %v1411 = vpop.f32.mrf.mxu0
        %v1412 = vadd.f32 0.0, %v1411
        %v1413 = vpop.f32.mrf.mxu0
        %1414 = vmatprep.mubr.f32.mxu0 0.0
        %1415 = vmatmul.mubr.f32.gmra.mxu0 %v1283
        %v1416 = vpop.f32.mrf.mxu0
        %v1417 = vadd.f32 0.0, %v1416
        %v1418 = vpop.f32.mrf.mxu0
        %1419 = vmatprep.mubr.f32.mxu0 0.0
        %1420 = vmatmul.mubr.f32.gmra.mxu0 %v1286
        %v1421 = vpop.f32.mrf.mxu0
        %v1422 = vadd.f32 0.0, %v1421
        %v1423 = vpop.f32.mrf.mxu0
        %1424 = vmatprep.mubr.f32.mxu0 0.0
        %1425 = vmatmul.mubr.f32.gmra.mxu0 %v1289
        %v1426 = vpop.f32.mrf.mxu0
        %v1427 = vadd.f32 0.0, %v1426
        %v1428 = vpop.f32.mrf.mxu0
        %1429 = vmatprep.mubr.f32.mxu0 0.0
        %1430 = vmatmul.mubr.f32.gmra.mxu0 %v1292
        %v1431 = vpop.f32.mrf.mxu0
        %v1432 = vadd.f32 0.0, %v1431
        %v1433 = vpop.f32.mrf.mxu0
        %1434 = vmatprep.mubr.f32.mxu0 0.0
        %1435 = vmatmul.mubr.f32.gmra.mxu0 %v1295
        %v1436 = vpop.f32.mrf.mxu0
        %v1437 = vadd.f32 0.0, %v1436
        %v1438 = vpop.f32.mrf.mxu0
        %1439 = vmatprep.mubr.f32.mxu0 0.0
        %1440 = vmatmul.mubr.f32.gmra.mxu0 %v1298
        %v1441 = vpop.f32.mrf.mxu0
        %v1442 = vadd.f32 0.0, %v1441
        %v1443 = vpop.f32.mrf.mxu0
        %1444 = vdwg.mxu0
        %vm1445 = vcmask 261120
        %v1447 = vsel %vm1445, %v1230, 0
        %v1450 = vsel %vm1445, %v1231, 0
        %v1453 = vsel %vm1445, %v1232, 0
        %v1456 = vsel %vm1445, %v1233, 0
        %v1459 = vsel %vm1445, %v1234, 0
        %v1462 = vsel %vm1445, %v1235, 0
        %v1465 = vsel %vm1445, %v1236, 0
        %v1468 = vsel %vm1445, %v1237, 0
        %v1471 = vsel %vm1445, %v1238, 0
        %v1474 = vsel %vm1445, %v1239, 0
        %v1477 = vsel %vm1445, %v1240, 0
        %v1480 = vsel %vm1445, %v1241, 0
        %v1483 = vsel %vm1445, %v1242, 0
        %v1486 = vsel %vm1445, %v1243, 0
        %v1489 = vsel %vm1445, %v1244, 0
        %v1492 = vsel %vm1445, %v1245, 0
        %1494 = vmatprep.subr.mxu0 0.0
        %1495 = vmatpush1.msra.mxu0 0.0
        %1496 = vmatprep.subr.mxu0 0.0
        %1497 = vmatpush1.msra.mxu0 0.0
        %1498 = vmatprep.subr.mxu0 0.0
        %1499 = vmatpush1.msra.mxu0 0.0
        %1500 = vmatprep.subr.mxu0 0.0
        %1501 = vmatpush1.msra.mxu0 0.0
        %1502 = vmatprep.subr.mxu0 0.0
        %1503 = vmatpush1.msra.mxu0 0.0
        %1504 = vmatprep.subr.mxu0 0.0
        %1505 = vmatpush1.msra.mxu0 0.0
        %1506 = vmatprep.subr.mxu0 0.0
        %1507 = vmatpush1.msra.mxu0 0.0
        %1508 = vmatprep.subr.mxu0 0.0
        %1509 = vmatpush1.msra.mxu0 0.0
        %1510 = vmatprep.subr.mxu0 0.0
        %1511 = vmatpush1.msra.mxu0 0.0
        %1512 = vmatprep.subr.mxu0 0.0
        %1513 = vmatpush1.msra.mxu0 0.0
        %1514 = vmatprep.subr.mxu0 0.0
        %1515 = vmatpush1.msra.mxu0 0.0
        %1516 = vmatprep.subr.mxu0 0.0
        %1517 = vmatpush1.msra.mxu0 0.0
        %1518 = vmatprep.subr.mxu0 0.0
        %1519 = vmatpush1.msra.mxu0 %v1249
        %1520 = vmatprep.subr.mxu0 0.0
        %1521 = vmatpush1.msra.mxu0 %v1248
        %1522 = vmatprep.subr.mxu0 0.0
        %1523 = vmatpush1.msra.mxu0 %v1247
        %1524 = vmatprep.subr.mxu0 0.0
        %1525 = vmatpush1.msra.mxu0 %v1246
        %1526 = vmatprep.subr.mxu0 0.0
        %1527 = vmatpush2.msra.mxu0 0.0
        %1528 = vmatprep.subr.mxu0 0.0
        %1529 = vmatpush2.msra.mxu0 0.0
        %1530 = vmatprep.subr.mxu0 0.0
        %1531 = vmatpush2.msra.mxu0 0.0
        %1532 = vmatprep.subr.mxu0 0.0
        %1533 = vmatpush2.msra.mxu0 0.0
        %1534 = vmatprep.subr.mxu0 0.0
        %1535 = vmatpush2.msra.mxu0 0.0
        %1536 = vmatprep.subr.mxu0 0.0
        %1537 = vmatpush2.msra.mxu0 0.0
        %1538 = vmatprep.subr.mxu0 0.0
        %1539 = vmatpush2.msra.mxu0 0.0
        %1540 = vmatprep.subr.mxu0 0.0
        %1541 = vmatpush2.msra.mxu0 0.0
        %1542 = vmatprep.subr.mxu0 0.0
        %1543 = vmatpush2.msra.mxu0 0.0
        %1544 = vmatprep.subr.mxu0 0.0
        %1545 = vmatpush2.msra.mxu0 0.0
        %1546 = vmatprep.subr.mxu0 0.0
        %1547 = vmatpush2.msra.mxu0 0.0
        %1548 = vmatprep.subr.mxu0 0.0
        %1549 = vmatpush2.msra.mxu0 0.0
        %1550 = vmatprep.subr.mxu0 0.0
        %1551 = vmatpush2.msra.mxu0 0.0
        %1552 = vmatprep.subr.mxu0 0.0
        %1553 = vmatpush2.msra.mxu0 0.0
        %1554 = vmatprep.subr.mxu0 0.0
        %1555 = vmatpush2.msra.mxu0 0.0
        %1556 = vmatprep.subr.mxu0 0.0
        %1557 = vmatpush2.msra.mxu0 0.0
        %1558 = vmatprep.mubr.f32.mxu0 0.0
        %1559 = vmatmul.mubr.f32.gmra.mxu0 %v1447
        %v1560 = vpop.f32.mrf.mxu0
        %v1561 = vadd.f32 %v1367, %v1560
        %v1562 = vpop.f32.mrf.mxu0
        %1563 = vmatprep.mubr.f32.mxu0 0.0
        %1564 = vmatmul.mubr.f32.gmra.mxu0 %v1450
        %v1565 = vpop.f32.mrf.mxu0
        %v1566 = vadd.f32 %v1372, %v1565
        %v1567 = vpop.f32.mrf.mxu0
        %1568 = vmatprep.mubr.f32.mxu0 0.0
        %1569 = vmatmul.mubr.f32.gmra.mxu0 %v1453
        %v1570 = vpop.f32.mrf.mxu0
        %v1571 = vadd.f32 %v1377, %v1570
        %v1572 = vpop.f32.mrf.mxu0
        %1573 = vmatprep.mubr.f32.mxu0 0.0
        %1574 = vmatmul.mubr.f32.gmra.mxu0 %v1456
        %v1575 = vpop.f32.mrf.mxu0
        %v1576 = vadd.f32 %v1382, %v1575
        %v1577 = vpop.f32.mrf.mxu0
        %1578 = vmatprep.mubr.f32.mxu0 0.0
        %1579 = vmatmul.mubr.f32.gmra.mxu0 %v1459
        %v1580 = vpop.f32.mrf.mxu0
        %v1581 = vadd.f32 %v1387, %v1580
        %v1582 = vpop.f32.mrf.mxu0
        %1583 = vmatprep.mubr.f32.mxu0 0.0
        %1584 = vmatmul.mubr.f32.gmra.mxu0 %v1462
        %v1585 = vpop.f32.mrf.mxu0
        %v1586 = vadd.f32 %v1392, %v1585
        %v1587 = vpop.f32.mrf.mxu0
        %1588 = vmatprep.mubr.f32.mxu0 0.0
        %1589 = vmatmul.mubr.f32.gmra.mxu0 %v1465
        %v1590 = vpop.f32.mrf.mxu0
        %v1591 = vadd.f32 %v1397, %v1590
        %v1592 = vpop.f32.mrf.mxu0
        %1593 = vmatprep.mubr.f32.mxu0 0.0
        %1594 = vmatmul.mubr.f32.gmra.mxu0 %v1468
        %v1595 = vpop.f32.mrf.mxu0
        %v1596 = vadd.f32 %v1402, %v1595
        %v1597 = vpop.f32.mrf.mxu0
        %1598 = vmatprep.mubr.f32.mxu0 0.0
        %1599 = vmatmul.mubr.f32.gmra.mxu0 %v1471
        %v1600 = vpop.f32.mrf.mxu0
        %v1601 = vadd.f32 %v1407, %v1600
        %v1602 = vpop.f32.mrf.mxu0
        %1603 = vmatprep.mubr.f32.mxu0 0.0
        %1604 = vmatmul.mubr.f32.gmra.mxu0 %v1474
        %v1605 = vpop.f32.mrf.mxu0
        %v1606 = vadd.f32 %v1412, %v1605
        %v1607 = vpop.f32.mrf.mxu0
        %1608 = vmatprep.mubr.f32.mxu0 0.0
        %1609 = vmatmul.mubr.f32.gmra.mxu0 %v1477
        %v1610 = vpop.f32.mrf.mxu0
        %v1611 = vadd.f32 %v1417, %v1610
        %v1612 = vpop.f32.mrf.mxu0
        %1613 = vmatprep.mubr.f32.mxu0 0.0
        %1614 = vmatmul.mubr.f32.gmra.mxu0 %v1480
        %v1615 = vpop.f32.mrf.mxu0
        %v1616 = vadd.f32 %v1422, %v1615
        %v1617 = vpop.f32.mrf.mxu0
        %1618 = vmatprep.mubr.f32.mxu0 0.0
        %1619 = vmatmul.mubr.f32.gmra.mxu0 %v1483
        %v1620 = vpop.f32.mrf.mxu0
        %v1621 = vadd.f32 %v1427, %v1620
        %v1622 = vpop.f32.mrf.mxu0
        %1623 = vmatprep.mubr.f32.mxu0 0.0
        %1624 = vmatmul.mubr.f32.gmra.mxu0 %v1486
        %v1625 = vpop.f32.mrf.mxu0
        %v1626 = vadd.f32 %v1432, %v1625
        %v1627 = vpop.f32.mrf.mxu0
        %1628 = vmatprep.mubr.f32.mxu0 0.0
        %1629 = vmatmul.mubr.f32.gmra.mxu0 %v1489
        %v1630 = vpop.f32.mrf.mxu0
        %v1631 = vadd.f32 %v1437, %v1630
        %v1632 = vpop.f32.mrf.mxu0
        %1633 = vmatprep.mubr.f32.mxu0 0.0
        %1634 = vmatmul.mubr.f32.gmra.mxu0 %v1492
        %v1635 = vpop.f32.mrf.mxu0
        %v1636 = vadd.f32 %v1442, %v1635
        %v1637 = vpop.f32.mrf.mxu0
        %1638 = vdwg.mxu0
        %v1639 = vld [vmem:[%s4 + $0x39] sm:$0x1]
        %v1640 = vlaneseq
        %v1641 = vshrl.u32 %v1640, 7
        %v1642 = vsub.s32 0, %v1641
        %v1643 = vrot.slane %v1639, %v1642
        %v1644 = vadd.f32 %v1561, %v1643
        %v1645 = vadd.f32 %v1566, %v1643
        %v1646 = vadd.f32 %v1571, %v1643
        %v1647 = vadd.f32 %v1576, %v1643
        %v1648 = vadd.f32 %v1581, %v1643
        %v1649 = vadd.f32 %v1586, %v1643
        %v1650 = vadd.f32 %v1591, %v1643
        %v1651 = vadd.f32 %v1596, %v1643
        %v1652 = vadd.f32 %v1601, %v1643
        %v1653 = vadd.f32 %v1606, %v1643
        %v1654 = vadd.f32 %v1611, %v1643
        %v1655 = vadd.f32 %v1616, %v1643
        %v1656 = vadd.f32 %v1621, %v1643
        %v1657 = vadd.f32 %v1626, %v1643
        %v1658 = vadd.f32 %v1631, %v1643
        %v1659 = vadd.f32 %v1636, %v1643
        %v1660 = vld [vmem:[%s517] sm:$0xff]
        %v1661 = vld [vmem:[%s517 + $0x8] sm:$0xff]
        %v1662 = vld [vmem:[%s517 + $0x10] sm:$0xff]
        %v1663 = vld [vmem:[%s517 + $0x18] sm:$0xff]
        %v1664 = vld [vmem:[%s517 + $0x20] sm:$0xff]
        %v1665 = vld [vmem:[%s517 + $0x28] sm:$0xff]
        %v1666 = vld [vmem:[%s517 + $0x30] sm:$0xff]
        %v1667 = vld [vmem:[%s517 + $0x38] sm:$0xff]
        %v1668 = vld [vmem:[%s517 + $0x40] sm:$0xff]
        %v1669 = vld [vmem:[%s517 + $0x48] sm:$0xff]
        %v1670 = vld [vmem:[%s517 + $0x50] sm:$0xff]
        %v1671 = vld [vmem:[%s517 + $0x58] sm:$0xff]
        %v1672 = vld [vmem:[%s517 + $0x60] sm:$0xff]
        %v1673 = vld [vmem:[%s517 + $0x68] sm:$0xff]
        %v1674 = vld [vmem:[%s517 + $0x70] sm:$0xff]
        %v1675 = vld [vmem:[%s517 + $0x78] sm:$0xff]
        %1692 = vrot.lane.b32.xlu0 %v1660, 16
        %v1693 = vpop.permute.xlu0 %1692
        %1694 = vrot.lane.b32.xlu0 %v1661, 16
        %v1695 = vpop.permute.xlu0 %1694
        %1696 = vrot.lane.b32.xlu0 %v1662, 16
        %v1697 = vpop.permute.xlu0 %1696
        %1698 = vrot.lane.b32.xlu0 %v1663, 16
        %v1699 = vpop.permute.xlu0 %1698
        %1700 = vrot.lane.b32.xlu0 %v1664, 16
        %v1701 = vpop.permute.xlu0 %1700
        %1702 = vrot.lane.b32.xlu0 %v1665, 16
        %v1703 = vpop.permute.xlu0 %1702
        %1704 = vrot.lane.b32.xlu0 %v1666, 16
        %v1705 = vpop.permute.xlu0 %1704
        %1706 = vrot.lane.b32.xlu0 %v1667, 16
        %v1707 = vpop.permute.xlu0 %1706
        %1708 = vrot.lane.b32.xlu0 %v1668, 16
        %v1709 = vpop.permute.xlu0 %1708
        %1710 = vrot.lane.b32.xlu0 %v1669, 16
        %v1711 = vpop.permute.xlu0 %1710
        %1712 = vrot.lane.b32.xlu0 %v1670, 16
        %v1713 = vpop.permute.xlu0 %1712
        %1714 = vrot.lane.b32.xlu0 %v1671, 16
        %v1715 = vpop.permute.xlu0 %1714
        %1716 = vrot.lane.b32.xlu0 %v1672, 16
        %v1717 = vpop.permute.xlu0 %1716
        %1718 = vrot.lane.b32.xlu0 %v1673, 16
        %v1719 = vpop.permute.xlu0 %1718
        %1720 = vrot.lane.b32.xlu0 %v1674, 16
        %v1721 = vpop.permute.xlu0 %1720
        %1722 = vrot.lane.b32.xlu0 %v1675, 16
        %v1723 = vpop.permute.xlu0 %1722
        %v1740 = vmul.f32 %v784, %v1693
        %v1741 = vmul.f32 %v789, %v1695
        %v1742 = vmul.f32 %v794, %v1697
        %v1743 = vmul.f32 %v799, %v1699
        %v1744 = vmul.f32 %v804, %v1701
        %v1745 = vmul.f32 %v809, %v1703
        %v1746 = vmul.f32 %v814, %v1705
        %v1747 = vmul.f32 %v819, %v1707
        %v1748 = vmul.f32 %v824, %v1709
        %v1749 = vmul.f32 %v829, %v1711
        %v1750 = vmul.f32 %v834, %v1713
        %v1751 = vmul.f32 %v839, %v1715
        %v1752 = vmul.f32 %v844, %v1717
        %v1753 = vmul.f32 %v849, %v1719
        %v1754 = vmul.f32 %v854, %v1721
        %v1755 = vmul.f32 %v859, %v1723
        %1756 = vrot.lane.b32.xlu0 %v1660, 15
        %v1757 = vpop.permute.xlu0 %1756
        %1758 = vrot.lane.b32.xlu0 %v1661, 15
        %v1759 = vpop.permute.xlu0 %1758
        %1760 = vrot.lane.b32.xlu0 %v1662, 15
        %v1761 = vpop.permute.xlu0 %1760
        %1762 = vrot.lane.b32.xlu0 %v1663, 15
        %v1763 = vpop.permute.xlu0 %1762
        %1764 = vrot.lane.b32.xlu0 %v1664, 15
        %v1765 = vpop.permute.xlu0 %1764
        %1766 = vrot.lane.b32.xlu0 %v1665, 15
        %v1767 = vpop.permute.xlu0 %1766
        %1768 = vrot.lane.b32.xlu0 %v1666, 15
        %v1769 = vpop.permute.xlu0 %1768
        %1770 = vrot.lane.b32.xlu0 %v1667, 15
        %v1771 = vpop.permute.xlu0 %1770
        %1772 = vrot.lane.b32.xlu0 %v1668, 15
        %v1773 = vpop.permute.xlu0 %1772
        %1774 = vrot.lane.b32.xlu0 %v1669, 15
        %v1775 = vpop.permute.xlu0 %1774
        %1776 = vrot.lane.b32.xlu0 %v1670, 15
        %v1777 = vpop.permute.xlu0 %1776
        %1778 = vrot.lane.b32.xlu0 %v1671, 15
        %v1779 = vpop.permute.xlu0 %1778
        %1780 = vrot.lane.b32.xlu0 %v1672, 15
        %v1781 = vpop.permute.xlu0 %1780
        %1782 = vrot.lane.b32.xlu0 %v1673, 15
        %v1783 = vpop.permute.xlu0 %1782
        %1784 = vrot.lane.b32.xlu0 %v1674, 15
        %v1785 = vpop.permute.xlu0 %1784
        %1786 = vrot.lane.b32.xlu0 %v1675, 15
        %v1787 = vpop.permute.xlu0 %1786
        %v1804 = vmul.f32 %v864, %v1757
        %v1805 = vmul.f32 %v869, %v1759
        %v1806 = vmul.f32 %v874, %v1761
        %v1807 = vmul.f32 %v879, %v1763
        %v1808 = vmul.f32 %v884, %v1765
        %v1809 = vmul.f32 %v889, %v1767
        %v1810 = vmul.f32 %v894, %v1769
        %v1811 = vmul.f32 %v899, %v1771
        %v1812 = vmul.f32 %v904, %v1773
        %v1813 = vmul.f32 %v909, %v1775
        %v1814 = vmul.f32 %v914, %v1777
        %v1815 = vmul.f32 %v919, %v1779
        %v1816 = vmul.f32 %v924, %v1781
        %v1817 = vmul.f32 %v929, %v1783
        %v1818 = vmul.f32 %v934, %v1785
        %v1819 = vmul.f32 %v939, %v1787
        %v1820 = vadd.f32 %v1740, %v1804
        %v1821 = vadd.f32 %v1741, %v1805
        %v1822 = vadd.f32 %v1742, %v1806
        %v1823 = vadd.f32 %v1743, %v1807
        %v1824 = vadd.f32 %v1744, %v1808
        %v1825 = vadd.f32 %v1745, %v1809
        %v1826 = vadd.f32 %v1746, %v1810
        %v1827 = vadd.f32 %v1747, %v1811
        %v1828 = vadd.f32 %v1748, %v1812
        %v1829 = vadd.f32 %v1749, %v1813
        %v1830 = vadd.f32 %v1750, %v1814
        %v1831 = vadd.f32 %v1751, %v1815
        %v1832 = vadd.f32 %v1752, %v1816
        %v1833 = vadd.f32 %v1753, %v1817
        %v1834 = vadd.f32 %v1754, %v1818
        %v1835 = vadd.f32 %v1755, %v1819
        %1836 = vrot.lane.b32.xlu0 %v1660, 14
        %v1837 = vpop.permute.xlu0 %1836
        %1838 = vrot.lane.b32.xlu0 %v1661, 14
        %v1839 = vpop.permute.xlu0 %1838
        %1840 = vrot.lane.b32.xlu0 %v1662, 14
        %v1841 = vpop.permute.xlu0 %1840
        %1842 = vrot.lane.b32.xlu0 %v1663, 14
        %v1843 = vpop.permute.xlu0 %1842
        %1844 = vrot.lane.b32.xlu0 %v1664, 14
        %v1845 = vpop.permute.xlu0 %1844
        %1846 = vrot.lane.b32.xlu0 %v1665, 14
        %v1847 = vpop.permute.xlu0 %1846
        %1848 = vrot.lane.b32.xlu0 %v1666, 14
        %v1849 = vpop.permute.xlu0 %1848
        %1850 = vrot.lane.b32.xlu0 %v1667, 14
        %v1851 = vpop.permute.xlu0 %1850
        %1852 = vrot.lane.b32.xlu0 %v1668, 14
        %v1853 = vpop.permute.xlu0 %1852
        %1854 = vrot.lane.b32.xlu0 %v1669, 14
        %v1855 = vpop.permute.xlu0 %1854
        %1856 = vrot.lane.b32.xlu0 %v1670, 14
        %v1857 = vpop.permute.xlu0 %1856
        %1858 = vrot.lane.b32.xlu0 %v1671, 14
        %v1859 = vpop.permute.xlu0 %1858
        %1860 = vrot.lane.b32.xlu0 %v1672, 14
        %v1861 = vpop.permute.xlu0 %1860
        %1862 = vrot.lane.b32.xlu0 %v1673, 14
        %v1863 = vpop.permute.xlu0 %1862
        %1864 = vrot.lane.b32.xlu0 %v1674, 14
        %v1865 = vpop.permute.xlu0 %1864
        %1866 = vrot.lane.b32.xlu0 %v1675, 14
        %v1867 = vpop.permute.xlu0 %1866
        %v1884 = vmul.f32 %v944, %v1837
        %v1885 = vmul.f32 %v949, %v1839
        %v1886 = vmul.f32 %v954, %v1841
        %v1887 = vmul.f32 %v959, %v1843
        %v1888 = vmul.f32 %v964, %v1845
        %v1889 = vmul.f32 %v969, %v1847
        %v1890 = vmul.f32 %v974, %v1849
        %v1891 = vmul.f32 %v979, %v1851
        %v1892 = vmul.f32 %v984, %v1853
        %v1893 = vmul.f32 %v989, %v1855
        %v1894 = vmul.f32 %v994, %v1857
        %v1895 = vmul.f32 %v999, %v1859
        %v1896 = vmul.f32 %v1004, %v1861
        %v1897 = vmul.f32 %v1009, %v1863
        %v1898 = vmul.f32 %v1014, %v1865
        %v1899 = vmul.f32 %v1019, %v1867
        %v1900 = vadd.f32 %v1820, %v1884
        %v1901 = vadd.f32 %v1821, %v1885
        %v1902 = vadd.f32 %v1822, %v1886
        %v1903 = vadd.f32 %v1823, %v1887
        %v1904 = vadd.f32 %v1824, %v1888
        %v1905 = vadd.f32 %v1825, %v1889
        %v1906 = vadd.f32 %v1826, %v1890
        %v1907 = vadd.f32 %v1827, %v1891
        %v1908 = vadd.f32 %v1828, %v1892
        %v1909 = vadd.f32 %v1829, %v1893
        %v1910 = vadd.f32 %v1830, %v1894
        %v1911 = vadd.f32 %v1831, %v1895
        %v1912 = vadd.f32 %v1832, %v1896
        %v1913 = vadd.f32 %v1833, %v1897
        %v1914 = vadd.f32 %v1834, %v1898
        %v1915 = vadd.f32 %v1835, %v1899
        %v1916 = vld [vmem:[%s4 + $0x30] sm:$0x1]
        %1918 = vset.pattern.permute.xlu0 16
        %1919 = vperm.xlu0 %1918, %v1900
        %v1920 = vpop.permute.xlu0 %1919
        %1923 = vset.pattern.permute.xlu0 16
        %1924 = vperm.xlu0 %1923, %v1901
        %v1925 = vpop.permute.xlu0 %1924
        %1928 = vset.pattern.permute.xlu0 16
        %1929 = vperm.xlu0 %1928, %v1902
        %v1930 = vpop.permute.xlu0 %1929
        %1933 = vset.pattern.permute.xlu0 16
        %1934 = vperm.xlu0 %1933, %v1903
        %v1935 = vpop.permute.xlu0 %1934
        %1938 = vset.pattern.permute.xlu0 16
        %1939 = vperm.xlu0 %1938, %v1904
        %v1940 = vpop.permute.xlu0 %1939
        %1943 = vset.pattern.permute.xlu0 16
        %1944 = vperm.xlu0 %1943, %v1905
        %v1945 = vpop.permute.xlu0 %1944
        %1948 = vset.pattern.permute.xlu0 16
        %1949 = vperm.xlu0 %1948, %v1906
        %v1950 = vpop.permute.xlu0 %1949
        %1953 = vset.pattern.permute.xlu0 16
        %1954 = vperm.xlu0 %1953, %v1907
        %v1955 = vpop.permute.xlu0 %1954
        %1958 = vset.pattern.permute.xlu0 16
        %1959 = vperm.xlu0 %1958, %v1908
        %v1960 = vpop.permute.xlu0 %1959
        %1963 = vset.pattern.permute.xlu0 16
        %1964 = vperm.xlu0 %1963, %v1909
        %v1965 = vpop.permute.xlu0 %1964
        %1968 = vset.pattern.permute.xlu0 16
        %1969 = vperm.xlu0 %1968, %v1910
        %v1970 = vpop.permute.xlu0 %1969
        %1973 = vset.pattern.permute.xlu0 16
        %1974 = vperm.xlu0 %1973, %v1911
        %v1975 = vpop.permute.xlu0 %1974
        %1978 = vset.pattern.permute.xlu0 16
        %1979 = vperm.xlu0 %1978, %v1912
        %v1980 = vpop.permute.xlu0 %1979
        %1983 = vset.pattern.permute.xlu0 16
        %1984 = vperm.xlu0 %1983, %v1913
        %v1985 = vpop.permute.xlu0 %1984
        %1988 = vset.pattern.permute.xlu0 16
        %1989 = vperm.xlu0 %1988, %v1914
        %v1990 = vpop.permute.xlu0 %1989
        %1993 = vset.pattern.permute.xlu0 16
        %1994 = vperm.xlu0 %1993, %v1915
        %v1995 = vpop.permute.xlu0 %1994
        %v1997 = vlaneseq
        %v1998 = vshrl.u32 %v1997, 7
        %v1999 = vsub.s32 0, %v1998
        %v2000 = vrot.slane %v1916, %v1999
        %v2001 = vmul.f32 %v1920, %v2000
        %v2002 = vmul.f32 %v1925, %v2000
        %v2003 = vmul.f32 %v1930, %v2000
        %v2004 = vmul.f32 %v1935, %v2000
        %v2005 = vmul.f32 %v1940, %v2000
        %v2006 = vmul.f32 %v1945, %v2000
        %v2007 = vmul.f32 %v1950, %v2000
        %v2008 = vmul.f32 %v1955, %v2000
        %v2009 = vmul.f32 %v1960, %v2000
        %v2010 = vmul.f32 %v1965, %v2000
        %v2011 = vmul.f32 %v1970, %v2000
        %v2012 = vmul.f32 %v1975, %v2000
        %v2013 = vmul.f32 %v1980, %v2000
        %v2014 = vmul.f32 %v1985, %v2000
        %v2015 = vmul.f32 %v1990, %v2000
        %v2016 = vmul.f32 %v1995, %v2000
        %v2017 = vadd.f32 %v1644, %v2001
        %v2018 = vadd.f32 %v1645, %v2002
        %v2019 = vadd.f32 %v1646, %v2003
        %v2020 = vadd.f32 %v1647, %v2004
        %v2021 = vadd.f32 %v1648, %v2005
        %v2022 = vadd.f32 %v1649, %v2006
        %v2023 = vadd.f32 %v1650, %v2007
        %v2024 = vadd.f32 %v1651, %v2008
        %v2025 = vadd.f32 %v1652, %v2009
        %v2026 = vadd.f32 %v1653, %v2010
        %v2027 = vadd.f32 %v1654, %v2011
        %v2028 = vadd.f32 %v1655, %v2012
        %v2029 = vadd.f32 %v1656, %v2013
        %v2030 = vadd.f32 %v1657, %v2014
        %v2031 = vadd.f32 %v1658, %v2015
        %v2032 = vadd.f32 %v1659, %v2016
        %2033 = vrot.lane.b32.xlu0 %v1660, 13
        %v2034 = vpop.permute.xlu0 %2033
        %2035 = vrot.lane.b32.xlu0 %v1661, 13
        %v2036 = vpop.permute.xlu0 %2035
        %2037 = vrot.lane.b32.xlu0 %v1662, 13
        %v2038 = vpop.permute.xlu0 %2037
        %2039 = vrot.lane.b32.xlu0 %v1663, 13
        %v2040 = vpop.permute.xlu0 %2039
        %2041 = vrot.lane.b32.xlu0 %v1664, 13
        %v2042 = vpop.permute.xlu0 %2041
        %2043 = vrot.lane.b32.xlu0 %v1665, 13
        %v2044 = vpop.permute.xlu0 %2043
        %2045 = vrot.lane.b32.xlu0 %v1666, 13
        %v2046 = vpop.permute.xlu0 %2045
        %2047 = vrot.lane.b32.xlu0 %v1667, 13
        %v2048 = vpop.permute.xlu0 %2047
        %2049 = vrot.lane.b32.xlu0 %v1668, 13
        %v2050 = vpop.permute.xlu0 %2049
        %2051 = vrot.lane.b32.xlu0 %v1669, 13
        %v2052 = vpop.permute.xlu0 %2051
        %2053 = vrot.lane.b32.xlu0 %v1670, 13
        %v2054 = vpop.permute.xlu0 %2053
        %2055 = vrot.lane.b32.xlu0 %v1671, 13
        %v2056 = vpop.permute.xlu0 %2055
        %2057 = vrot.lane.b32.xlu0 %v1672, 13
        %v2058 = vpop.permute.xlu0 %2057
        %2059 = vrot.lane.b32.xlu0 %v1673, 13
        %v2060 = vpop.permute.xlu0 %2059
        %2061 = vrot.lane.b32.xlu0 %v1674, 13
        %v2062 = vpop.permute.xlu0 %2061
        %2063 = vrot.lane.b32.xlu0 %v1675, 13
        %v2064 = vpop.permute.xlu0 %2063
        %v2081 = vmul.f32 %v784, %v2034
        %v2082 = vmul.f32 %v789, %v2036
        %v2083 = vmul.f32 %v794, %v2038
        %v2084 = vmul.f32 %v799, %v2040
        %v2085 = vmul.f32 %v804, %v2042
        %v2086 = vmul.f32 %v809, %v2044
        %v2087 = vmul.f32 %v814, %v2046
        %v2088 = vmul.f32 %v819, %v2048
        %v2089 = vmul.f32 %v824, %v2050
        %v2090 = vmul.f32 %v829, %v2052
        %v2091 = vmul.f32 %v834, %v2054
        %v2092 = vmul.f32 %v839, %v2056
        %v2093 = vmul.f32 %v844, %v2058
        %v2094 = vmul.f32 %v849, %v2060
        %v2095 = vmul.f32 %v854, %v2062
        %v2096 = vmul.f32 %v859, %v2064
        %2097 = vrot.lane.b32.xlu0 %v1660, 12
        %v2098 = vpop.permute.xlu0 %2097
        %2099 = vrot.lane.b32.xlu0 %v1661, 12
        %v2100 = vpop.permute.xlu0 %2099
        %2101 = vrot.lane.b32.xlu0 %v1662, 12
        %v2102 = vpop.permute.xlu0 %2101
        %2103 = vrot.lane.b32.xlu0 %v1663, 12
        %v2104 = vpop.permute.xlu0 %2103
        %2105 = vrot.lane.b32.xlu0 %v1664, 12
        %v2106 = vpop.permute.xlu0 %2105
        %2107 = vrot.lane.b32.xlu0 %v1665, 12
        %v2108 = vpop.permute.xlu0 %2107
        %2109 = vrot.lane.b32.xlu0 %v1666, 12
        %v2110 = vpop.permute.xlu0 %2109
        %2111 = vrot.lane.b32.xlu0 %v1667, 12
        %v2112 = vpop.permute.xlu0 %2111
        %2113 = vrot.lane.b32.xlu0 %v1668, 12
        %v2114 = vpop.permute.xlu0 %2113
        %2115 = vrot.lane.b32.xlu0 %v1669, 12
        %v2116 = vpop.permute.xlu0 %2115
        %2117 = vrot.lane.b32.xlu0 %v1670, 12
        %v2118 = vpop.permute.xlu0 %2117
        %2119 = vrot.lane.b32.xlu0 %v1671, 12
        %v2120 = vpop.permute.xlu0 %2119
        %2121 = vrot.lane.b32.xlu0 %v1672, 12
        %v2122 = vpop.permute.xlu0 %2121
        %2123 = vrot.lane.b32.xlu0 %v1673, 12
        %v2124 = vpop.permute.xlu0 %2123
        %2125 = vrot.lane.b32.xlu0 %v1674, 12
        %v2126 = vpop.permute.xlu0 %2125
        %2127 = vrot.lane.b32.xlu0 %v1675, 12
        %v2128 = vpop.permute.xlu0 %2127
        %v2145 = vmul.f32 %v864, %v2098
        %v2146 = vmul.f32 %v869, %v2100
        %v2147 = vmul.f32 %v874, %v2102
        %v2148 = vmul.f32 %v879, %v2104
        %v2149 = vmul.f32 %v884, %v2106
        %v2150 = vmul.f32 %v889, %v2108
        %v2151 = vmul.f32 %v894, %v2110
        %v2152 = vmul.f32 %v899, %v2112
        %v2153 = vmul.f32 %v904, %v2114
        %v2154 = vmul.f32 %v909, %v2116
        %v2155 = vmul.f32 %v914, %v2118
        %v2156 = vmul.f32 %v919, %v2120
        %v2157 = vmul.f32 %v924, %v2122
        %v2158 = vmul.f32 %v929, %v2124
        %v2159 = vmul.f32 %v934, %v2126
        %v2160 = vmul.f32 %v939, %v2128
        %v2161 = vadd.f32 %v2081, %v2145
        %v2162 = vadd.f32 %v2082, %v2146
        %v2163 = vadd.f32 %v2083, %v2147
        %v2164 = vadd.f32 %v2084, %v2148
        %v2165 = vadd.f32 %v2085, %v2149
        %v2166 = vadd.f32 %v2086, %v2150
        %v2167 = vadd.f32 %v2087, %v2151
        %v2168 = vadd.f32 %v2088, %v2152
        %v2169 = vadd.f32 %v2089, %v2153
        %v2170 = vadd.f32 %v2090, %v2154
        %v2171 = vadd.f32 %v2091, %v2155
        %v2172 = vadd.f32 %v2092, %v2156
        %v2173 = vadd.f32 %v2093, %v2157
        %v2174 = vadd.f32 %v2094, %v2158
        %v2175 = vadd.f32 %v2095, %v2159
        %v2176 = vadd.f32 %v2096, %v2160
        %2177 = vrot.lane.b32.xlu0 %v1660, 11
        %v2178 = vpop.permute.xlu0 %2177
        %2179 = vrot.lane.b32.xlu0 %v1661, 11
        %v2180 = vpop.permute.xlu0 %2179
        %2181 = vrot.lane.b32.xlu0 %v1662, 11
        %v2182 = vpop.permute.xlu0 %2181
        %2183 = vrot.lane.b32.xlu0 %v1663, 11
        %v2184 = vpop.permute.xlu0 %2183
        %2185 = vrot.lane.b32.xlu0 %v1664, 11
        %v2186 = vpop.permute.xlu0 %2185
        %2187 = vrot.lane.b32.xlu0 %v1665, 11
        %v2188 = vpop.permute.xlu0 %2187
        %2189 = vrot.lane.b32.xlu0 %v1666, 11
        %v2190 = vpop.permute.xlu0 %2189
        %2191 = vrot.lane.b32.xlu0 %v1667, 11
        %v2192 = vpop.permute.xlu0 %2191
        %2193 = vrot.lane.b32.xlu0 %v1668, 11
        %v2194 = vpop.permute.xlu0 %2193
        %2195 = vrot.lane.b32.xlu0 %v1669, 11
        %v2196 = vpop.permute.xlu0 %2195
        %2197 = vrot.lane.b32.xlu0 %v1670, 11
        %v2198 = vpop.permute.xlu0 %2197
        %2199 = vrot.lane.b32.xlu0 %v1671, 11
        %v2200 = vpop.permute.xlu0 %2199
        %2201 = vrot.lane.b32.xlu0 %v1672, 11
        %v2202 = vpop.permute.xlu0 %2201
        %2203 = vrot.lane.b32.xlu0 %v1673, 11
        %v2204 = vpop.permute.xlu0 %2203
        %2205 = vrot.lane.b32.xlu0 %v1674, 11
        %v2206 = vpop.permute.xlu0 %2205
        %2207 = vrot.lane.b32.xlu0 %v1675, 11
        %v2208 = vpop.permute.xlu0 %2207
        %v2225 = vmul.f32 %v944, %v2178
        %v2226 = vmul.f32 %v949, %v2180
        %v2227 = vmul.f32 %v954, %v2182
        %v2228 = vmul.f32 %v959, %v2184
        %v2229 = vmul.f32 %v964, %v2186
        %v2230 = vmul.f32 %v969, %v2188
        %v2231 = vmul.f32 %v974, %v2190
        %v2232 = vmul.f32 %v979, %v2192
        %v2233 = vmul.f32 %v984, %v2194
        %v2234 = vmul.f32 %v989, %v2196
        %v2235 = vmul.f32 %v994, %v2198
        %v2236 = vmul.f32 %v999, %v2200
        %v2237 = vmul.f32 %v1004, %v2202
        %v2238 = vmul.f32 %v1009, %v2204
        %v2239 = vmul.f32 %v1014, %v2206
        %v2240 = vmul.f32 %v1019, %v2208
        %v2241 = vadd.f32 %v2161, %v2225
        %v2242 = vadd.f32 %v2162, %v2226
        %v2243 = vadd.f32 %v2163, %v2227
        %v2244 = vadd.f32 %v2164, %v2228
        %v2245 = vadd.f32 %v2165, %v2229
        %v2246 = vadd.f32 %v2166, %v2230
        %v2247 = vadd.f32 %v2167, %v2231
        %v2248 = vadd.f32 %v2168, %v2232
        %v2249 = vadd.f32 %v2169, %v2233
        %v2250 = vadd.f32 %v2170, %v2234
        %v2251 = vadd.f32 %v2171, %v2235
        %v2252 = vadd.f32 %v2172, %v2236
        %v2253 = vadd.f32 %v2173, %v2237
        %v2254 = vadd.f32 %v2174, %v2238
        %v2255 = vadd.f32 %v2175, %v2239
        %v2256 = vadd.f32 %v2176, %v2240
        %v2257 = vld [vmem:[%s4 + $0x31] sm:$0x1]
        %2259 = vset.pattern.permute.xlu0 16
        %2260 = vperm.xlu0 %2259, %v2241
        %v2261 = vpop.permute.xlu0 %2260
        %2264 = vset.pattern.permute.xlu0 16
        %2265 = vperm.xlu0 %2264, %v2242
        %v2266 = vpop.permute.xlu0 %2265
        %2269 = vset.pattern.permute.xlu0 16
        %2270 = vperm.xlu0 %2269, %v2243
        %v2271 = vpop.permute.xlu0 %2270
        %2274 = vset.pattern.permute.xlu0 16
        %2275 = vperm.xlu0 %2274, %v2244
        %v2276 = vpop.permute.xlu0 %2275
        %2279 = vset.pattern.permute.xlu0 16
        %2280 = vperm.xlu0 %2279, %v2245
        %v2281 = vpop.permute.xlu0 %2280
        %2284 = vset.pattern.permute.xlu0 16
        %2285 = vperm.xlu0 %2284, %v2246
        %v2286 = vpop.permute.xlu0 %2285
        %2289 = vset.pattern.permute.xlu0 16
        %2290 = vperm.xlu0 %2289, %v2247
        %v2291 = vpop.permute.xlu0 %2290
        %2294 = vset.pattern.permute.xlu0 16
        %2295 = vperm.xlu0 %2294, %v2248
        %v2296 = vpop.permute.xlu0 %2295
        %2299 = vset.pattern.permute.xlu0 16
        %2300 = vperm.xlu0 %2299, %v2249
        %v2301 = vpop.permute.xlu0 %2300
        %2304 = vset.pattern.permute.xlu0 16
        %2305 = vperm.xlu0 %2304, %v2250
        %v2306 = vpop.permute.xlu0 %2305
        %2309 = vset.pattern.permute.xlu0 16
        %2310 = vperm.xlu0 %2309, %v2251
        %v2311 = vpop.permute.xlu0 %2310
        %2314 = vset.pattern.permute.xlu0 16
        %2315 = vperm.xlu0 %2314, %v2252
        %v2316 = vpop.permute.xlu0 %2315
        %2319 = vset.pattern.permute.xlu0 16
        %2320 = vperm.xlu0 %2319, %v2253
        %v2321 = vpop.permute.xlu0 %2320
        %2324 = vset.pattern.permute.xlu0 16
        %2325 = vperm.xlu0 %2324, %v2254
        %v2326 = vpop.permute.xlu0 %2325
        %2329 = vset.pattern.permute.xlu0 16
        %2330 = vperm.xlu0 %2329, %v2255
        %v2331 = vpop.permute.xlu0 %2330
        %2334 = vset.pattern.permute.xlu0 16
        %2335 = vperm.xlu0 %2334, %v2256
        %v2336 = vpop.permute.xlu0 %2335
        %v2338 = vlaneseq
        %v2339 = vshrl.u32 %v2338, 7
        %v2340 = vsub.s32 0, %v2339
        %v2341 = vrot.slane %v2257, %v2340
        %v2342 = vmul.f32 %v2261, %v2341
        %v2343 = vmul.f32 %v2266, %v2341
        %v2344 = vmul.f32 %v2271, %v2341
        %v2345 = vmul.f32 %v2276, %v2341
        %v2346 = vmul.f32 %v2281, %v2341
        %v2347 = vmul.f32 %v2286, %v2341
        %v2348 = vmul.f32 %v2291, %v2341
        %v2349 = vmul.f32 %v2296, %v2341
        %v2350 = vmul.f32 %v2301, %v2341
        %v2351 = vmul.f32 %v2306, %v2341
        %v2352 = vmul.f32 %v2311, %v2341
        %v2353 = vmul.f32 %v2316, %v2341
        %v2354 = vmul.f32 %v2321, %v2341
        %v2355 = vmul.f32 %v2326, %v2341
        %v2356 = vmul.f32 %v2331, %v2341
        %v2357 = vmul.f32 %v2336, %v2341
        %v2358 = vadd.f32 %v2017, %v2342
        %v2359 = vadd.f32 %v2018, %v2343
        %v2360 = vadd.f32 %v2019, %v2344
        %v2361 = vadd.f32 %v2020, %v2345
        %v2362 = vadd.f32 %v2021, %v2346
        %v2363 = vadd.f32 %v2022, %v2347
        %v2364 = vadd.f32 %v2023, %v2348
        %v2365 = vadd.f32 %v2024, %v2349
        %v2366 = vadd.f32 %v2025, %v2350
        %v2367 = vadd.f32 %v2026, %v2351
        %v2368 = vadd.f32 %v2027, %v2352
        %v2369 = vadd.f32 %v2028, %v2353
        %v2370 = vadd.f32 %v2029, %v2354
        %v2371 = vadd.f32 %v2030, %v2355
        %v2372 = vadd.f32 %v2031, %v2356
        %v2373 = vadd.f32 %v2032, %v2357
        %2374 = vrot.lane.b32.xlu0 %v1660, 10
        %v2375 = vpop.permute.xlu0 %2374
        %2376 = vrot.lane.b32.xlu0 %v1661, 10
        %v2377 = vpop.permute.xlu0 %2376
        %2378 = vrot.lane.b32.xlu0 %v1662, 10
        %v2379 = vpop.permute.xlu0 %2378
        %2380 = vrot.lane.b32.xlu0 %v1663, 10
        %v2381 = vpop.permute.xlu0 %2380
        %2382 = vrot.lane.b32.xlu0 %v1664, 10
        %v2383 = vpop.permute.xlu0 %2382
        %2384 = vrot.lane.b32.xlu0 %v1665, 10
        %v2385 = vpop.permute.xlu0 %2384
        %2386 = vrot.lane.b32.xlu0 %v1666, 10
        %v2387 = vpop.permute.xlu0 %2386
        %2388 = vrot.lane.b32.xlu0 %v1667, 10
        %v2389 = vpop.permute.xlu0 %2388
        %2390 = vrot.lane.b32.xlu0 %v1668, 10
        %v2391 = vpop.permute.xlu0 %2390
        %2392 = vrot.lane.b32.xlu0 %v1669, 10
        %v2393 = vpop.permute.xlu0 %2392
        %2394 = vrot.lane.b32.xlu0 %v1670, 10
        %v2395 = vpop.permute.xlu0 %2394
        %2396 = vrot.lane.b32.xlu0 %v1671, 10
        %v2397 = vpop.permute.xlu0 %2396
        %2398 = vrot.lane.b32.xlu0 %v1672, 10
        %v2399 = vpop.permute.xlu0 %2398
        %2400 = vrot.lane.b32.xlu0 %v1673, 10
        %v2401 = vpop.permute.xlu0 %2400
        %2402 = vrot.lane.b32.xlu0 %v1674, 10
        %v2403 = vpop.permute.xlu0 %2402
        %2404 = vrot.lane.b32.xlu0 %v1675, 10
        %v2405 = vpop.permute.xlu0 %2404
        %v2422 = vmul.f32 %v784, %v2375
        %v2423 = vmul.f32 %v789, %v2377
        %v2424 = vmul.f32 %v794, %v2379
        %v2425 = vmul.f32 %v799, %v2381
        %v2426 = vmul.f32 %v804, %v2383
        %v2427 = vmul.f32 %v809, %v2385
        %v2428 = vmul.f32 %v814, %v2387
        %v2429 = vmul.f32 %v819, %v2389
        %v2430 = vmul.f32 %v824, %v2391
        %v2431 = vmul.f32 %v829, %v2393
        %v2432 = vmul.f32 %v834, %v2395
        %v2433 = vmul.f32 %v839, %v2397
        %v2434 = vmul.f32 %v844, %v2399
        %v2435 = vmul.f32 %v849, %v2401
        %v2436 = vmul.f32 %v854, %v2403
        %v2437 = vmul.f32 %v859, %v2405
        %2438 = vrot.lane.b32.xlu0 %v1660, 9
        %v2439 = vpop.permute.xlu0 %2438
        %2440 = vrot.lane.b32.xlu0 %v1661, 9
        %v2441 = vpop.permute.xlu0 %2440
        %2442 = vrot.lane.b32.xlu0 %v1662, 9
        %v2443 = vpop.permute.xlu0 %2442
        %2444 = vrot.lane.b32.xlu0 %v1663, 9
        %v2445 = vpop.permute.xlu0 %2444
        %2446 = vrot.lane.b32.xlu0 %v1664, 9
        %v2447 = vpop.permute.xlu0 %2446
        %2448 = vrot.lane.b32.xlu0 %v1665, 9
        %v2449 = vpop.permute.xlu0 %2448
        %2450 = vrot.lane.b32.xlu0 %v1666, 9
        %v2451 = vpop.permute.xlu0 %2450
        %2452 = vrot.lane.b32.xlu0 %v1667, 9
        %v2453 = vpop.permute.xlu0 %2452
        %2454 = vrot.lane.b32.xlu0 %v1668, 9
        %v2455 = vpop.permute.xlu0 %2454
        %2456 = vrot.lane.b32.xlu0 %v1669, 9
        %v2457 = vpop.permute.xlu0 %2456
        %2458 = vrot.lane.b32.xlu0 %v1670, 9
        %v2459 = vpop.permute.xlu0 %2458
        %2460 = vrot.lane.b32.xlu0 %v1671, 9
        %v2461 = vpop.permute.xlu0 %2460
        %2462 = vrot.lane.b32.xlu0 %v1672, 9
        %v2463 = vpop.permute.xlu0 %2462
        %2464 = vrot.lane.b32.xlu0 %v1673, 9
        %v2465 = vpop.permute.xlu0 %2464
        %2466 = vrot.lane.b32.xlu0 %v1674, 9
        %v2467 = vpop.permute.xlu0 %2466
        %2468 = vrot.lane.b32.xlu0 %v1675, 9
        %v2469 = vpop.permute.xlu0 %2468
        %v2486 = vmul.f32 %v864, %v2439
        %v2487 = vmul.f32 %v869, %v2441
        %v2488 = vmul.f32 %v874, %v2443
        %v2489 = vmul.f32 %v879, %v2445
        %v2490 = vmul.f32 %v884, %v2447
        %v2491 = vmul.f32 %v889, %v2449
        %v2492 = vmul.f32 %v894, %v2451
        %v2493 = vmul.f32 %v899, %v2453
        %v2494 = vmul.f32 %v904, %v2455
        %v2495 = vmul.f32 %v909, %v2457
        %v2496 = vmul.f32 %v914, %v2459
        %v2497 = vmul.f32 %v919, %v2461
        %v2498 = vmul.f32 %v924, %v2463
        %v2499 = vmul.f32 %v929, %v2465
        %v2500 = vmul.f32 %v934, %v2467
        %v2501 = vmul.f32 %v939, %v2469
        %v2502 = vadd.f32 %v2422, %v2486
        %v2503 = vadd.f32 %v2423, %v2487
        %v2504 = vadd.f32 %v2424, %v2488
        %v2505 = vadd.f32 %v2425, %v2489
        %v2506 = vadd.f32 %v2426, %v2490
        %v2507 = vadd.f32 %v2427, %v2491
        %v2508 = vadd.f32 %v2428, %v2492
        %v2509 = vadd.f32 %v2429, %v2493
        %v2510 = vadd.f32 %v2430, %v2494
        %v2511 = vadd.f32 %v2431, %v2495
        %v2512 = vadd.f32 %v2432, %v2496
        %v2513 = vadd.f32 %v2433, %v2497
        %v2514 = vadd.f32 %v2434, %v2498
        %v2515 = vadd.f32 %v2435, %v2499
        %v2516 = vadd.f32 %v2436, %v2500
        %v2517 = vadd.f32 %v2437, %v2501
        %2518 = vrot.lane.b32.xlu0 %v1660, 8
        %v2519 = vpop.permute.xlu0 %2518
        %2520 = vrot.lane.b32.xlu0 %v1661, 8
        %v2521 = vpop.permute.xlu0 %2520
        %2522 = vrot.lane.b32.xlu0 %v1662, 8
        %v2523 = vpop.permute.xlu0 %2522
        %2524 = vrot.lane.b32.xlu0 %v1663, 8
        %v2525 = vpop.permute.xlu0 %2524
        %2526 = vrot.lane.b32.xlu0 %v1664, 8
        %v2527 = vpop.permute.xlu0 %2526
        %2528 = vrot.lane.b32.xlu0 %v1665, 8
        %v2529 = vpop.permute.xlu0 %2528
        %2530 = vrot.lane.b32.xlu0 %v1666, 8
        %v2531 = vpop.permute.xlu0 %2530
        %2532 = vrot.lane.b32.xlu0 %v1667, 8
        %v2533 = vpop.permute.xlu0 %2532
        %2534 = vrot.lane.b32.xlu0 %v1668, 8
        %v2535 = vpop.permute.xlu0 %2534
        %2536 = vrot.lane.b32.xlu0 %v1669, 8
        %v2537 = vpop.permute.xlu0 %2536
        %2538 = vrot.lane.b32.xlu0 %v1670, 8
        %v2539 = vpop.permute.xlu0 %2538
        %2540 = vrot.lane.b32.xlu0 %v1671, 8
        %v2541 = vpop.permute.xlu0 %2540
        %2542 = vrot.lane.b32.xlu0 %v1672, 8
        %v2543 = vpop.permute.xlu0 %2542
        %2544 = vrot.lane.b32.xlu0 %v1673, 8
        %v2545 = vpop.permute.xlu0 %2544
        %2546 = vrot.lane.b32.xlu0 %v1674, 8
        %v2547 = vpop.permute.xlu0 %2546
        %2548 = vrot.lane.b32.xlu0 %v1675, 8
        %v2549 = vpop.permute.xlu0 %2548
        %v2566 = vmul.f32 %v944, %v2519
        %v2567 = vmul.f32 %v949, %v2521
        %v2568 = vmul.f32 %v954, %v2523
        %v2569 = vmul.f32 %v959, %v2525
        %v2570 = vmul.f32 %v964, %v2527
        %v2571 = vmul.f32 %v969, %v2529
        %v2572 = vmul.f32 %v974, %v2531
        %v2573 = vmul.f32 %v979, %v2533
        %v2574 = vmul.f32 %v984, %v2535
        %v2575 = vmul.f32 %v989, %v2537
        %v2576 = vmul.f32 %v994, %v2539
        %v2577 = vmul.f32 %v999, %v2541
        %v2578 = vmul.f32 %v1004, %v2543
        %v2579 = vmul.f32 %v1009, %v2545
        %v2580 = vmul.f32 %v1014, %v2547
        %v2581 = vmul.f32 %v1019, %v2549
        %v2582 = vadd.f32 %v2502, %v2566
        %v2583 = vadd.f32 %v2503, %v2567
        %v2584 = vadd.f32 %v2504, %v2568
        %v2585 = vadd.f32 %v2505, %v2569
        %v2586 = vadd.f32 %v2506, %v2570
        %v2587 = vadd.f32 %v2507, %v2571
        %v2588 = vadd.f32 %v2508, %v2572
        %v2589 = vadd.f32 %v2509, %v2573
        %v2590 = vadd.f32 %v2510, %v2574
        %v2591 = vadd.f32 %v2511, %v2575
        %v2592 = vadd.f32 %v2512, %v2576
        %v2593 = vadd.f32 %v2513, %v2577
        %v2594 = vadd.f32 %v2514, %v2578
        %v2595 = vadd.f32 %v2515, %v2579
        %v2596 = vadd.f32 %v2516, %v2580
        %v2597 = vadd.f32 %v2517, %v2581
        %v2598 = vld [vmem:[%s4 + $0x32] sm:$0x1]
        %2600 = vset.pattern.permute.xlu0 16
        %2601 = vperm.xlu0 %2600, %v2582
        %v2602 = vpop.permute.xlu0 %2601
        %2605 = vset.pattern.permute.xlu0 16
        %2606 = vperm.xlu0 %2605, %v2583
        %v2607 = vpop.permute.xlu0 %2606
        %2610 = vset.pattern.permute.xlu0 16
        %2611 = vperm.xlu0 %2610, %v2584
        %v2612 = vpop.permute.xlu0 %2611
        %2615 = vset.pattern.permute.xlu0 16
        %2616 = vperm.xlu0 %2615, %v2585
        %v2617 = vpop.permute.xlu0 %2616
        %2620 = vset.pattern.permute.xlu0 16
        %2621 = vperm.xlu0 %2620, %v2586
        %v2622 = vpop.permute.xlu0 %2621
        %2625 = vset.pattern.permute.xlu0 16
        %2626 = vperm.xlu0 %2625, %v2587
        %v2627 = vpop.permute.xlu0 %2626
        %2630 = vset.pattern.permute.xlu0 16
        %2631 = vperm.xlu0 %2630, %v2588
        %v2632 = vpop.permute.xlu0 %2631
        %2635 = vset.pattern.permute.xlu0 16
        %2636 = vperm.xlu0 %2635, %v2589
        %v2637 = vpop.permute.xlu0 %2636
        %2640 = vset.pattern.permute.xlu0 16
        %2641 = vperm.xlu0 %2640, %v2590
        %v2642 = vpop.permute.xlu0 %2641
        %2645 = vset.pattern.permute.xlu0 16
        %2646 = vperm.xlu0 %2645, %v2591
        %v2647 = vpop.permute.xlu0 %2646
        %2650 = vset.pattern.permute.xlu0 16
        %2651 = vperm.xlu0 %2650, %v2592
        %v2652 = vpop.permute.xlu0 %2651
        %2655 = vset.pattern.permute.xlu0 16
        %2656 = vperm.xlu0 %2655, %v2593
        %v2657 = vpop.permute.xlu0 %2656
        %2660 = vset.pattern.permute.xlu0 16
        %2661 = vperm.xlu0 %2660, %v2594
        %v2662 = vpop.permute.xlu0 %2661
        %2665 = vset.pattern.permute.xlu0 16
        %2666 = vperm.xlu0 %2665, %v2595
        %v2667 = vpop.permute.xlu0 %2666
        %2670 = vset.pattern.permute.xlu0 16
        %2671 = vperm.xlu0 %2670, %v2596
        %v2672 = vpop.permute.xlu0 %2671
        %2675 = vset.pattern.permute.xlu0 16
        %2676 = vperm.xlu0 %2675, %v2597
        %v2677 = vpop.permute.xlu0 %2676
        %v2679 = vlaneseq
        %v2680 = vshrl.u32 %v2679, 7
        %v2681 = vsub.s32 0, %v2680
        %v2682 = vrot.slane %v2598, %v2681
        %v2683 = vmul.f32 %v2602, %v2682
        %v2684 = vmul.f32 %v2607, %v2682
        %v2685 = vmul.f32 %v2612, %v2682
        %v2686 = vmul.f32 %v2617, %v2682
        %v2687 = vmul.f32 %v2622, %v2682
        %v2688 = vmul.f32 %v2627, %v2682
        %v2689 = vmul.f32 %v2632, %v2682
        %v2690 = vmul.f32 %v2637, %v2682
        %v2691 = vmul.f32 %v2642, %v2682
        %v2692 = vmul.f32 %v2647, %v2682
        %v2693 = vmul.f32 %v2652, %v2682
        %v2694 = vmul.f32 %v2657, %v2682
        %v2695 = vmul.f32 %v2662, %v2682
        %v2696 = vmul.f32 %v2667, %v2682
        %v2697 = vmul.f32 %v2672, %v2682
        %v2698 = vmul.f32 %v2677, %v2682
        %v2699 = vadd.f32 %v2358, %v2683
        %v2700 = vadd.f32 %v2359, %v2684
        %v2701 = vadd.f32 %v2360, %v2685
        %v2702 = vadd.f32 %v2361, %v2686
        %v2703 = vadd.f32 %v2362, %v2687
        %v2704 = vadd.f32 %v2363, %v2688
        %v2705 = vadd.f32 %v2364, %v2689
        %v2706 = vadd.f32 %v2365, %v2690
        %v2707 = vadd.f32 %v2366, %v2691
        %v2708 = vadd.f32 %v2367, %v2692
        %v2709 = vadd.f32 %v2368, %v2693
        %v2710 = vadd.f32 %v2369, %v2694
        %v2711 = vadd.f32 %v2370, %v2695
        %v2712 = vadd.f32 %v2371, %v2696
        %v2713 = vadd.f32 %v2372, %v2697
        %v2714 = vadd.f32 %v2373, %v2698
        %2715 = vrot.lane.b32.xlu0 %v1660, 17
        %v2716 = vpop.permute.xlu0 %2715
        %2717 = vrot.lane.b32.xlu0 %v1661, 17
        %v2718 = vpop.permute.xlu0 %2717
        %2719 = vrot.lane.b32.xlu0 %v1662, 17
        %v2720 = vpop.permute.xlu0 %2719
        %2721 = vrot.lane.b32.xlu0 %v1663, 17
        %v2722 = vpop.permute.xlu0 %2721
        %2723 = vrot.lane.b32.xlu0 %v1664, 17
        %v2724 = vpop.permute.xlu0 %2723
        %2725 = vrot.lane.b32.xlu0 %v1665, 17
        %v2726 = vpop.permute.xlu0 %2725
        %2727 = vrot.lane.b32.xlu0 %v1666, 17
        %v2728 = vpop.permute.xlu0 %2727
        %2729 = vrot.lane.b32.xlu0 %v1667, 17
        %v2730 = vpop.permute.xlu0 %2729
        %2731 = vrot.lane.b32.xlu0 %v1668, 17
        %v2732 = vpop.permute.xlu0 %2731
        %2733 = vrot.lane.b32.xlu0 %v1669, 17
        %v2734 = vpop.permute.xlu0 %2733
        %2735 = vrot.lane.b32.xlu0 %v1670, 17
        %v2736 = vpop.permute.xlu0 %2735
        %2737 = vrot.lane.b32.xlu0 %v1671, 17
        %v2738 = vpop.permute.xlu0 %2737
        %2739 = vrot.lane.b32.xlu0 %v1672, 17
        %v2740 = vpop.permute.xlu0 %2739
        %2741 = vrot.lane.b32.xlu0 %v1673, 17
        %v2742 = vpop.permute.xlu0 %2741
        %2743 = vrot.lane.b32.xlu0 %v1674, 17
        %v2744 = vpop.permute.xlu0 %2743
        %2745 = vrot.lane.b32.xlu0 %v1675, 17
        %v2746 = vpop.permute.xlu0 %2745
        %v2763 = vmul.f32 %v784, %v2716
        %v2764 = vmul.f32 %v789, %v2718
        %v2765 = vmul.f32 %v794, %v2720
        %v2766 = vmul.f32 %v799, %v2722
        %v2767 = vmul.f32 %v804, %v2724
        %v2768 = vmul.f32 %v809, %v2726
        %v2769 = vmul.f32 %v814, %v2728
        %v2770 = vmul.f32 %v819, %v2730
        %v2771 = vmul.f32 %v824, %v2732
        %v2772 = vmul.f32 %v829, %v2734
        %v2773 = vmul.f32 %v834, %v2736
        %v2774 = vmul.f32 %v839, %v2738
        %v2775 = vmul.f32 %v844, %v2740
        %v2776 = vmul.f32 %v849, %v2742
        %v2777 = vmul.f32 %v854, %v2744
        %v2778 = vmul.f32 %v859, %v2746
        %v2779 = vmul.f32 %v864, %v1693
        %v2780 = vmul.f32 %v869, %v1695
        %v2781 = vmul.f32 %v874, %v1697
        %v2782 = vmul.f32 %v879, %v1699
        %v2783 = vmul.f32 %v884, %v1701
        %v2784 = vmul.f32 %v889, %v1703
        %v2785 = vmul.f32 %v894, %v1705
        %v2786 = vmul.f32 %v899, %v1707
        %v2787 = vmul.f32 %v904, %v1709
        %v2788 = vmul.f32 %v909, %v1711
        %v2789 = vmul.f32 %v914, %v1713
        %v2790 = vmul.f32 %v919, %v1715
        %v2791 = vmul.f32 %v924, %v1717
        %v2792 = vmul.f32 %v929, %v1719
        %v2793 = vmul.f32 %v934, %v1721
        %v2794 = vmul.f32 %v939, %v1723
        %v2795 = vadd.f32 %v2763, %v2779
        %v2796 = vadd.f32 %v2764, %v2780
        %v2797 = vadd.f32 %v2765, %v2781
        %v2798 = vadd.f32 %v2766, %v2782
        %v2799 = vadd.f32 %v2767, %v2783
        %v2800 = vadd.f32 %v2768, %v2784
        %v2801 = vadd.f32 %v2769, %v2785
        %v2802 = vadd.f32 %v2770, %v2786
        %v2803 = vadd.f32 %v2771, %v2787
        %v2804 = vadd.f32 %v2772, %v2788
        %v2805 = vadd.f32 %v2773, %v2789
        %v2806 = vadd.f32 %v2774, %v2790
        %v2807 = vadd.f32 %v2775, %v2791
        %v2808 = vadd.f32 %v2776, %v2792
        %v2809 = vadd.f32 %v2777, %v2793
        %v2810 = vadd.f32 %v2778, %v2794
        %v2811 = vmul.f32 %v944, %v1757
        %v2812 = vmul.f32 %v949, %v1759
        %v2813 = vmul.f32 %v954, %v1761
        %v2814 = vmul.f32 %v959, %v1763
        %v2815 = vmul.f32 %v964, %v1765
        %v2816 = vmul.f32 %v969, %v1767
        %v2817 = vmul.f32 %v974, %v1769
        %v2818 = vmul.f32 %v979, %v1771
        %v2819 = vmul.f32 %v984, %v1773
        %v2820 = vmul.f32 %v989, %v1775
        %v2821 = vmul.f32 %v994, %v1777
        %v2822 = vmul.f32 %v999, %v1779
        %v2823 = vmul.f32 %v1004, %v1781
        %v2824 = vmul.f32 %v1009, %v1783
        %v2825 = vmul.f32 %v1014, %v1785
        %v2826 = vmul.f32 %v1019, %v1787
        %v2827 = vadd.f32 %v2795, %v2811
        %v2828 = vadd.f32 %v2796, %v2812
        %v2829 = vadd.f32 %v2797, %v2813
        %v2830 = vadd.f32 %v2798, %v2814
        %v2831 = vadd.f32 %v2799, %v2815
        %v2832 = vadd.f32 %v2800, %v2816
        %v2833 = vadd.f32 %v2801, %v2817
        %v2834 = vadd.f32 %v2802, %v2818
        %v2835 = vadd.f32 %v2803, %v2819
        %v2836 = vadd.f32 %v2804, %v2820
        %v2837 = vadd.f32 %v2805, %v2821
        %v2838 = vadd.f32 %v2806, %v2822
        %v2839 = vadd.f32 %v2807, %v2823
        %v2840 = vadd.f32 %v2808, %v2824
        %v2841 = vadd.f32 %v2809, %v2825
        %v2842 = vadd.f32 %v2810, %v2826
        %v2843 = vld [vmem:[%s4 + $0x33] sm:$0x1]
        %2845 = vset.pattern.permute.xlu0 17
        %2846 = vperm.xlu0 %2845, %v2827
        %v2847 = vpop.permute.xlu0 %2846
        %2850 = vset.pattern.permute.xlu0 17
        %2851 = vperm.xlu0 %2850, %v2828
        %v2852 = vpop.permute.xlu0 %2851
        %2855 = vset.pattern.permute.xlu0 17
        %2856 = vperm.xlu0 %2855, %v2829
        %v2857 = vpop.permute.xlu0 %2856
        %2860 = vset.pattern.permute.xlu0 17
        %2861 = vperm.xlu0 %2860, %v2830
        %v2862 = vpop.permute.xlu0 %2861
        %2865 = vset.pattern.permute.xlu0 17
        %2866 = vperm.xlu0 %2865, %v2831
        %v2867 = vpop.permute.xlu0 %2866
        %2870 = vset.pattern.permute.xlu0 17
        %2871 = vperm.xlu0 %2870, %v2832
        %v2872 = vpop.permute.xlu0 %2871
        %2875 = vset.pattern.permute.xlu0 17
        %2876 = vperm.xlu0 %2875, %v2833
        %v2877 = vpop.permute.xlu0 %2876
        %2880 = vset.pattern.permute.xlu0 17
        %2881 = vperm.xlu0 %2880, %v2834
        %v2882 = vpop.permute.xlu0 %2881
        %2885 = vset.pattern.permute.xlu0 17
        %2886 = vperm.xlu0 %2885, %v2835
        %v2887 = vpop.permute.xlu0 %2886
        %2890 = vset.pattern.permute.xlu0 17
        %2891 = vperm.xlu0 %2890, %v2836
        %v2892 = vpop.permute.xlu0 %2891
        %2895 = vset.pattern.permute.xlu0 17
        %2896 = vperm.xlu0 %2895, %v2837
        %v2897 = vpop.permute.xlu0 %2896
        %2900 = vset.pattern.permute.xlu0 17
        %2901 = vperm.xlu0 %2900, %v2838
        %v2902 = vpop.permute.xlu0 %2901
        %2905 = vset.pattern.permute.xlu0 17
        %2906 = vperm.xlu0 %2905, %v2839
        %v2907 = vpop.permute.xlu0 %2906
        %2910 = vset.pattern.permute.xlu0 17
        %2911 = vperm.xlu0 %2910, %v2840
        %v2912 = vpop.permute.xlu0 %2911
        %2915 = vset.pattern.permute.xlu0 17
        %2916 = vperm.xlu0 %2915, %v2841
        %v2917 = vpop.permute.xlu0 %2916
        %2920 = vset.pattern.permute.xlu0 17
        %2921 = vperm.xlu0 %2920, %v2842
        %v2922 = vpop.permute.xlu0 %2921
        %v2924 = vlaneseq
        %v2925 = vshrl.u32 %v2924, 7
        %v2926 = vsub.s32 0, %v2925
        %v2927 = vrot.slane %v2843, %v2926
        %v2928 = vmul.f32 %v2847, %v2927
        %v2929 = vmul.f32 %v2852, %v2927
        %v2930 = vmul.f32 %v2857, %v2927
        %v2931 = vmul.f32 %v2862, %v2927
        %v2932 = vmul.f32 %v2867, %v2927
        %v2933 = vmul.f32 %v2872, %v2927
        %v2934 = vmul.f32 %v2877, %v2927
        %v2935 = vmul.f32 %v2882, %v2927
        %v2936 = vmul.f32 %v2887, %v2927
        %v2937 = vmul.f32 %v2892, %v2927
        %v2938 = vmul.f32 %v2897, %v2927
        %v2939 = vmul.f32 %v2902, %v2927
        %v2940 = vmul.f32 %v2907, %v2927
        %v2941 = vmul.f32 %v2912, %v2927
        %v2942 = vmul.f32 %v2917, %v2927
        %v2943 = vmul.f32 %v2922, %v2927
        %v2944 = vadd.f32 %v2699, %v2928
        %v2945 = vadd.f32 %v2700, %v2929
        %v2946 = vadd.f32 %v2701, %v2930
        %v2947 = vadd.f32 %v2702, %v2931
        %v2948 = vadd.f32 %v2703, %v2932
        %v2949 = vadd.f32 %v2704, %v2933
        %v2950 = vadd.f32 %v2705, %v2934
        %v2951 = vadd.f32 %v2706, %v2935
        %v2952 = vadd.f32 %v2707, %v2936
        %v2953 = vadd.f32 %v2708, %v2937
        %v2954 = vadd.f32 %v2709, %v2938
        %v2955 = vadd.f32 %v2710, %v2939
        %v2956 = vadd.f32 %v2711, %v2940
        %v2957 = vadd.f32 %v2712, %v2941
        %v2958 = vadd.f32 %v2713, %v2942
        %v2959 = vadd.f32 %v2714, %v2943
        %v2960 = vmul.f32 %v784, %v1837
        %v2961 = vmul.f32 %v789, %v1839
        %v2962 = vmul.f32 %v794, %v1841
        %v2963 = vmul.f32 %v799, %v1843
        %v2964 = vmul.f32 %v804, %v1845
        %v2965 = vmul.f32 %v809, %v1847
        %v2966 = vmul.f32 %v814, %v1849
        %v2967 = vmul.f32 %v819, %v1851
        %v2968 = vmul.f32 %v824, %v1853
        %v2969 = vmul.f32 %v829, %v1855
        %v2970 = vmul.f32 %v834, %v1857
        %v2971 = vmul.f32 %v839, %v1859
        %v2972 = vmul.f32 %v844, %v1861
        %v2973 = vmul.f32 %v849, %v1863
        %v2974 = vmul.f32 %v854, %v1865
        %v2975 = vmul.f32 %v859, %v1867
        %v2976 = vmul.f32 %v864, %v2034
        %v2977 = vmul.f32 %v869, %v2036
        %v2978 = vmul.f32 %v874, %v2038
        %v2979 = vmul.f32 %v879, %v2040
        %v2980 = vmul.f32 %v884, %v2042
        %v2981 = vmul.f32 %v889, %v2044
        %v2982 = vmul.f32 %v894, %v2046
        %v2983 = vmul.f32 %v899, %v2048
        %v2984 = vmul.f32 %v904, %v2050
        %v2985 = vmul.f32 %v909, %v2052
        %v2986 = vmul.f32 %v914, %v2054
        %v2987 = vmul.f32 %v919, %v2056
        %v2988 = vmul.f32 %v924, %v2058
        %v2989 = vmul.f32 %v929, %v2060
        %v2990 = vmul.f32 %v934, %v2062
        %v2991 = vmul.f32 %v939, %v2064
        %v2992 = vadd.f32 %v2960, %v2976
        %v2993 = vadd.f32 %v2961, %v2977
        %v2994 = vadd.f32 %v2962, %v2978
        %v2995 = vadd.f32 %v2963, %v2979
        %v2996 = vadd.f32 %v2964, %v2980
        %v2997 = vadd.f32 %v2965, %v2981
        %v2998 = vadd.f32 %v2966, %v2982
        %v2999 = vadd.f32 %v2967, %v2983
        %v3000 = vadd.f32 %v2968, %v2984
        %v3001 = vadd.f32 %v2969, %v2985
        %v3002 = vadd.f32 %v2970, %v2986
        %v3003 = vadd.f32 %v2971, %v2987
        %v3004 = vadd.f32 %v2972, %v2988
        %v3005 = vadd.f32 %v2973, %v2989
        %v3006 = vadd.f32 %v2974, %v2990
        %v3007 = vadd.f32 %v2975, %v2991
        %v3008 = vmul.f32 %v944, %v2098
        %v3009 = vmul.f32 %v949, %v2100
        %v3010 = vmul.f32 %v954, %v2102
        %v3011 = vmul.f32 %v959, %v2104
        %v3012 = vmul.f32 %v964, %v2106
        %v3013 = vmul.f32 %v969, %v2108
        %v3014 = vmul.f32 %v974, %v2110
        %v3015 = vmul.f32 %v979, %v2112
        %v3016 = vmul.f32 %v984, %v2114
        %v3017 = vmul.f32 %v989, %v2116
        %v3018 = vmul.f32 %v994, %v2118
        %v3019 = vmul.f32 %v999, %v2120
        %v3020 = vmul.f32 %v1004, %v2122
        %v3021 = vmul.f32 %v1009, %v2124
        %v3022 = vmul.f32 %v1014, %v2126
        %v3023 = vmul.f32 %v1019, %v2128
        %v3024 = vadd.f32 %v2992, %v3008
        %v3025 = vadd.f32 %v2993, %v3009
        %v3026 = vadd.f32 %v2994, %v3010
        %v3027 = vadd.f32 %v2995, %v3011
        %v3028 = vadd.f32 %v2996, %v3012
        %v3029 = vadd.f32 %v2997, %v3013
        %v3030 = vadd.f32 %v2998, %v3014
        %v3031 = vadd.f32 %v2999, %v3015
        %v3032 = vadd.f32 %v3000, %v3016
        %v3033 = vadd.f32 %v3001, %v3017
        %v3034 = vadd.f32 %v3002, %v3018
        %v3035 = vadd.f32 %v3003, %v3019
        %v3036 = vadd.f32 %v3004, %v3020
        %v3037 = vadd.f32 %v3005, %v3021
        %v3038 = vadd.f32 %v3006, %v3022
        %v3039 = vadd.f32 %v3007, %v3023
        %v3040 = vld [vmem:[%s4 + $0x34] sm:$0x1]
        %3042 = vset.pattern.permute.xlu0 17
        %3043 = vperm.xlu0 %3042, %v3024
        %v3044 = vpop.permute.xlu0 %3043
        %3047 = vset.pattern.permute.xlu0 17
        %3048 = vperm.xlu0 %3047, %v3025
        %v3049 = vpop.permute.xlu0 %3048
        %3052 = vset.pattern.permute.xlu0 17
        %3053 = vperm.xlu0 %3052, %v3026
        %v3054 = vpop.permute.xlu0 %3053
        %3057 = vset.pattern.permute.xlu0 17
        %3058 = vperm.xlu0 %3057, %v3027
        %v3059 = vpop.permute.xlu0 %3058
        %3062 = vset.pattern.permute.xlu0 17
        %3063 = vperm.xlu0 %3062, %v3028
        %v3064 = vpop.permute.xlu0 %3063
        %3067 = vset.pattern.permute.xlu0 17
        %3068 = vperm.xlu0 %3067, %v3029
        %v3069 = vpop.permute.xlu0 %3068
        %3072 = vset.pattern.permute.xlu0 17
        %3073 = vperm.xlu0 %3072, %v3030
        %v3074 = vpop.permute.xlu0 %3073
        %3077 = vset.pattern.permute.xlu0 17
        %3078 = vperm.xlu0 %3077, %v3031
        %v3079 = vpop.permute.xlu0 %3078
        %3082 = vset.pattern.permute.xlu0 17
        %3083 = vperm.xlu0 %3082, %v3032
        %v3084 = vpop.permute.xlu0 %3083
        %3087 = vset.pattern.permute.xlu0 17
        %3088 = vperm.xlu0 %3087, %v3033
        %v3089 = vpop.permute.xlu0 %3088
        %3092 = vset.pattern.permute.xlu0 17
        %3093 = vperm.xlu0 %3092, %v3034
        %v3094 = vpop.permute.xlu0 %3093
        %3097 = vset.pattern.permute.xlu0 17
        %3098 = vperm.xlu0 %3097, %v3035
        %v3099 = vpop.permute.xlu0 %3098
        %3102 = vset.pattern.permute.xlu0 17
        %3103 = vperm.xlu0 %3102, %v3036
        %v3104 = vpop.permute.xlu0 %3103
        %3107 = vset.pattern.permute.xlu0 17
        %3108 = vperm.xlu0 %3107, %v3037
        %v3109 = vpop.permute.xlu0 %3108
        %3112 = vset.pattern.permute.xlu0 17
        %3113 = vperm.xlu0 %3112, %v3038
        %v3114 = vpop.permute.xlu0 %3113
        %3117 = vset.pattern.permute.xlu0 17
        %3118 = vperm.xlu0 %3117, %v3039
        %v3119 = vpop.permute.xlu0 %3118
        %v3121 = vlaneseq
        %v3122 = vshrl.u32 %v3121, 7
        %v3123 = vsub.s32 0, %v3122
        %v3124 = vrot.slane %v3040, %v3123
        %v3125 = vmul.f32 %v3044, %v3124
        %v3126 = vmul.f32 %v3049, %v3124
        %v3127 = vmul.f32 %v3054, %v3124
        %v3128 = vmul.f32 %v3059, %v3124
        %v3129 = vmul.f32 %v3064, %v3124
        %v3130 = vmul.f32 %v3069, %v3124
        %v3131 = vmul.f32 %v3074, %v3124
        %v3132 = vmul.f32 %v3079, %v3124
        %v3133 = vmul.f32 %v3084, %v3124
        %v3134 = vmul.f32 %v3089, %v3124
        %v3135 = vmul.f32 %v3094, %v3124
        %v3136 = vmul.f32 %v3099, %v3124
        %v3137 = vmul.f32 %v3104, %v3124
        %v3138 = vmul.f32 %v3109, %v3124
        %v3139 = vmul.f32 %v3114, %v3124
        %v3140 = vmul.f32 %v3119, %v3124
        %v3141 = vadd.f32 %v2944, %v3125
        %v3142 = vadd.f32 %v2945, %v3126
        %v3143 = vadd.f32 %v2946, %v3127
        %v3144 = vadd.f32 %v2947, %v3128
        %v3145 = vadd.f32 %v2948, %v3129
        %v3146 = vadd.f32 %v2949, %v3130
        %v3147 = vadd.f32 %v2950, %v3131
        %v3148 = vadd.f32 %v2951, %v3132
        %v3149 = vadd.f32 %v2952, %v3133
        %v3150 = vadd.f32 %v2953, %v3134
        %v3151 = vadd.f32 %v2954, %v3135
        %v3152 = vadd.f32 %v2955, %v3136
        %v3153 = vadd.f32 %v2956, %v3137
        %v3154 = vadd.f32 %v2957, %v3138
        %v3155 = vadd.f32 %v2958, %v3139
        %v3156 = vadd.f32 %v2959, %v3140
        %v3157 = vmul.f32 %v784, %v2178
        %v3158 = vmul.f32 %v789, %v2180
        %v3159 = vmul.f32 %v794, %v2182
        %v3160 = vmul.f32 %v799, %v2184
        %v3161 = vmul.f32 %v804, %v2186
        %v3162 = vmul.f32 %v809, %v2188
        %v3163 = vmul.f32 %v814, %v2190
        %v3164 = vmul.f32 %v819, %v2192
        %v3165 = vmul.f32 %v824, %v2194
        %v3166 = vmul.f32 %v829, %v2196
        %v3167 = vmul.f32 %v834, %v2198
        %v3168 = vmul.f32 %v839, %v2200
        %v3169 = vmul.f32 %v844, %v2202
        %v3170 = vmul.f32 %v849, %v2204
        %v3171 = vmul.f32 %v854, %v2206
        %v3172 = vmul.f32 %v859, %v2208
        %v3173 = vmul.f32 %v864, %v2375
        %v3174 = vmul.f32 %v869, %v2377
        %v3175 = vmul.f32 %v874, %v2379
        %v3176 = vmul.f32 %v879, %v2381
        %v3177 = vmul.f32 %v884, %v2383
        %v3178 = vmul.f32 %v889, %v2385
        %v3179 = vmul.f32 %v894, %v2387
        %v3180 = vmul.f32 %v899, %v2389
        %v3181 = vmul.f32 %v904, %v2391
        %v3182 = vmul.f32 %v909, %v2393
        %v3183 = vmul.f32 %v914, %v2395
        %v3184 = vmul.f32 %v919, %v2397
        %v3185 = vmul.f32 %v924, %v2399
        %v3186 = vmul.f32 %v929, %v2401
        %v3187 = vmul.f32 %v934, %v2403
        %v3188 = vmul.f32 %v939, %v2405
        %v3189 = vadd.f32 %v3157, %v3173
        %v3190 = vadd.f32 %v3158, %v3174
        %v3191 = vadd.f32 %v3159, %v3175
        %v3192 = vadd.f32 %v3160, %v3176
        %v3193 = vadd.f32 %v3161, %v3177
        %v3194 = vadd.f32 %v3162, %v3178
        %v3195 = vadd.f32 %v3163, %v3179
        %v3196 = vadd.f32 %v3164, %v3180
        %v3197 = vadd.f32 %v3165, %v3181
        %v3198 = vadd.f32 %v3166, %v3182
        %v3199 = vadd.f32 %v3167, %v3183
        %v3200 = vadd.f32 %v3168, %v3184
        %v3201 = vadd.f32 %v3169, %v3185
        %v3202 = vadd.f32 %v3170, %v3186
        %v3203 = vadd.f32 %v3171, %v3187
        %v3204 = vadd.f32 %v3172, %v3188
        %v3205 = vmul.f32 %v944, %v2439
        %v3206 = vmul.f32 %v949, %v2441
        %v3207 = vmul.f32 %v954, %v2443
        %v3208 = vmul.f32 %v959, %v2445
        %v3209 = vmul.f32 %v964, %v2447
        %v3210 = vmul.f32 %v969, %v2449
        %v3211 = vmul.f32 %v974, %v2451
        %v3212 = vmul.f32 %v979, %v2453
        %v3213 = vmul.f32 %v984, %v2455
        %v3214 = vmul.f32 %v989, %v2457
        %v3215 = vmul.f32 %v994, %v2459
        %v3216 = vmul.f32 %v999, %v2461
        %v3217 = vmul.f32 %v1004, %v2463
        %v3218 = vmul.f32 %v1009, %v2465
        %v3219 = vmul.f32 %v1014, %v2467
        %v3220 = vmul.f32 %v1019, %v2469
        %v3221 = vadd.f32 %v3189, %v3205
        %v3222 = vadd.f32 %v3190, %v3206
        %v3223 = vadd.f32 %v3191, %v3207
        %v3224 = vadd.f32 %v3192, %v3208
        %v3225 = vadd.f32 %v3193, %v3209
        %v3226 = vadd.f32 %v3194, %v3210
        %v3227 = vadd.f32 %v3195, %v3211
        %v3228 = vadd.f32 %v3196, %v3212
        %v3229 = vadd.f32 %v3197, %v3213
        %v3230 = vadd.f32 %v3198, %v3214
        %v3231 = vadd.f32 %v3199, %v3215
        %v3232 = vadd.f32 %v3200, %v3216
        %v3233 = vadd.f32 %v3201, %v3217
        %v3234 = vadd.f32 %v3202, %v3218
        %v3235 = vadd.f32 %v3203, %v3219
        %v3236 = vadd.f32 %v3204, %v3220
        %v3237 = vld [vmem:[%s4 + $0x35] sm:$0x1]
        %3239 = vset.pattern.permute.xlu0 17
        %3240 = vperm.xlu0 %3239, %v3221
        %v3241 = vpop.permute.xlu0 %3240
        %3244 = vset.pattern.permute.xlu0 17
        %3245 = vperm.xlu0 %3244, %v3222
        %v3246 = vpop.permute.xlu0 %3245
        %3249 = vset.pattern.permute.xlu0 17
        %3250 = vperm.xlu0 %3249, %v3223
        %v3251 = vpop.permute.xlu0 %3250
        %3254 = vset.pattern.permute.xlu0 17
        %3255 = vperm.xlu0 %3254, %v3224
        %v3256 = vpop.permute.xlu0 %3255
        %3259 = vset.pattern.permute.xlu0 17
        %3260 = vperm.xlu0 %3259, %v3225
        %v3261 = vpop.permute.xlu0 %3260
        %3264 = vset.pattern.permute.xlu0 17
        %3265 = vperm.xlu0 %3264, %v3226
        %v3266 = vpop.permute.xlu0 %3265
        %3269 = vset.pattern.permute.xlu0 17
        %3270 = vperm.xlu0 %3269, %v3227
        %v3271 = vpop.permute.xlu0 %3270
        %3274 = vset.pattern.permute.xlu0 17
        %3275 = vperm.xlu0 %3274, %v3228
        %v3276 = vpop.permute.xlu0 %3275
        %3279 = vset.pattern.permute.xlu0 17
        %3280 = vperm.xlu0 %3279, %v3229
        %v3281 = vpop.permute.xlu0 %3280
        %3284 = vset.pattern.permute.xlu0 17
        %3285 = vperm.xlu0 %3284, %v3230
        %v3286 = vpop.permute.xlu0 %3285
        %3289 = vset.pattern.permute.xlu0 17
        %3290 = vperm.xlu0 %3289, %v3231
        %v3291 = vpop.permute.xlu0 %3290
        %3294 = vset.pattern.permute.xlu0 17
        %3295 = vperm.xlu0 %3294, %v3232
        %v3296 = vpop.permute.xlu0 %3295
        %3299 = vset.pattern.permute.xlu0 17
        %3300 = vperm.xlu0 %3299, %v3233
        %v3301 = vpop.permute.xlu0 %3300
        %3304 = vset.pattern.permute.xlu0 17
        %3305 = vperm.xlu0 %3304, %v3234
        %v3306 = vpop.permute.xlu0 %3305
        %3309 = vset.pattern.permute.xlu0 17
        %3310 = vperm.xlu0 %3309, %v3235
        %v3311 = vpop.permute.xlu0 %3310
        %3314 = vset.pattern.permute.xlu0 17
        %3315 = vperm.xlu0 %3314, %v3236
        %v3316 = vpop.permute.xlu0 %3315
        %v3318 = vlaneseq
        %v3319 = vshrl.u32 %v3318, 7
        %v3320 = vsub.s32 0, %v3319
        %v3321 = vrot.slane %v3237, %v3320
        %v3322 = vmul.f32 %v3241, %v3321
        %v3323 = vmul.f32 %v3246, %v3321
        %v3324 = vmul.f32 %v3251, %v3321
        %v3325 = vmul.f32 %v3256, %v3321
        %v3326 = vmul.f32 %v3261, %v3321
        %v3327 = vmul.f32 %v3266, %v3321
        %v3328 = vmul.f32 %v3271, %v3321
        %v3329 = vmul.f32 %v3276, %v3321
        %v3330 = vmul.f32 %v3281, %v3321
        %v3331 = vmul.f32 %v3286, %v3321
        %v3332 = vmul.f32 %v3291, %v3321
        %v3333 = vmul.f32 %v3296, %v3321
        %v3334 = vmul.f32 %v3301, %v3321
        %v3335 = vmul.f32 %v3306, %v3321
        %v3336 = vmul.f32 %v3311, %v3321
        %v3337 = vmul.f32 %v3316, %v3321
        %v3338 = vadd.f32 %v3141, %v3322
        %v3339 = vadd.f32 %v3142, %v3323
        %v3340 = vadd.f32 %v3143, %v3324
        %v3341 = vadd.f32 %v3144, %v3325
        %v3342 = vadd.f32 %v3145, %v3326
        %v3343 = vadd.f32 %v3146, %v3327
        %v3344 = vadd.f32 %v3147, %v3328
        %v3345 = vadd.f32 %v3148, %v3329
        %v3346 = vadd.f32 %v3149, %v3330
        %v3347 = vadd.f32 %v3150, %v3331
        %v3348 = vadd.f32 %v3151, %v3332
        %v3349 = vadd.f32 %v3152, %v3333
        %v3350 = vadd.f32 %v3153, %v3334
        %v3351 = vadd.f32 %v3154, %v3335
        %v3352 = vadd.f32 %v3155, %v3336
        %v3353 = vadd.f32 %v3156, %v3337
        %3354 = vrot.lane.b32.xlu0 %v1660, 18
        %v3355 = vpop.permute.xlu0 %3354
        %3356 = vrot.lane.b32.xlu0 %v1661, 18
        %v3357 = vpop.permute.xlu0 %3356
        %3358 = vrot.lane.b32.xlu0 %v1662, 18
        %v3359 = vpop.permute.xlu0 %3358
        %3360 = vrot.lane.b32.xlu0 %v1663, 18
        %v3361 = vpop.permute.xlu0 %3360
        %3362 = vrot.lane.b32.xlu0 %v1664, 18
        %v3363 = vpop.permute.xlu0 %3362
        %3364 = vrot.lane.b32.xlu0 %v1665, 18
        %v3365 = vpop.permute.xlu0 %3364
        %3366 = vrot.lane.b32.xlu0 %v1666, 18
        %v3367 = vpop.permute.xlu0 %3366
        %3368 = vrot.lane.b32.xlu0 %v1667, 18
        %v3369 = vpop.permute.xlu0 %3368
        %3370 = vrot.lane.b32.xlu0 %v1668, 18
        %v3371 = vpop.permute.xlu0 %3370
        %3372 = vrot.lane.b32.xlu0 %v1669, 18
        %v3373 = vpop.permute.xlu0 %3372
        %3374 = vrot.lane.b32.xlu0 %v1670, 18
        %v3375 = vpop.permute.xlu0 %3374
        %3376 = vrot.lane.b32.xlu0 %v1671, 18
        %v3377 = vpop.permute.xlu0 %3376
        %3378 = vrot.lane.b32.xlu0 %v1672, 18
        %v3379 = vpop.permute.xlu0 %3378
        %3380 = vrot.lane.b32.xlu0 %v1673, 18
        %v3381 = vpop.permute.xlu0 %3380
        %3382 = vrot.lane.b32.xlu0 %v1674, 18
        %v3383 = vpop.permute.xlu0 %3382
        %3384 = vrot.lane.b32.xlu0 %v1675, 18
        %v3385 = vpop.permute.xlu0 %3384
        %v3402 = vmul.f32 %v784, %v3355
        %v3403 = vmul.f32 %v789, %v3357
        %v3404 = vmul.f32 %v794, %v3359
        %v3405 = vmul.f32 %v799, %v3361
        %v3406 = vmul.f32 %v804, %v3363
        %v3407 = vmul.f32 %v809, %v3365
        %v3408 = vmul.f32 %v814, %v3367
        %v3409 = vmul.f32 %v819, %v3369
        %v3410 = vmul.f32 %v824, %v3371
        %v3411 = vmul.f32 %v829, %v3373
        %v3412 = vmul.f32 %v834, %v3375
        %v3413 = vmul.f32 %v839, %v3377
        %v3414 = vmul.f32 %v844, %v3379
        %v3415 = vmul.f32 %v849, %v3381
        %v3416 = vmul.f32 %v854, %v3383
        %v3417 = vmul.f32 %v859, %v3385
        %v3418 = vmul.f32 %v864, %v2716
        %v3419 = vmul.f32 %v869, %v2718
        %v3420 = vmul.f32 %v874, %v2720
        %v3421 = vmul.f32 %v879, %v2722
        %v3422 = vmul.f32 %v884, %v2724
        %v3423 = vmul.f32 %v889, %v2726
        %v3424 = vmul.f32 %v894, %v2728
        %v3425 = vmul.f32 %v899, %v2730
        %v3426 = vmul.f32 %v904, %v2732
        %v3427 = vmul.f32 %v909, %v2734
        %v3428 = vmul.f32 %v914, %v2736
        %v3429 = vmul.f32 %v919, %v2738
        %v3430 = vmul.f32 %v924, %v2740
        %v3431 = vmul.f32 %v929, %v2742
        %v3432 = vmul.f32 %v934, %v2744
        %v3433 = vmul.f32 %v939, %v2746
        %v3434 = vadd.f32 %v3402, %v3418
        %v3435 = vadd.f32 %v3403, %v3419
        %v3436 = vadd.f32 %v3404, %v3420
        %v3437 = vadd.f32 %v3405, %v3421
        %v3438 = vadd.f32 %v3406, %v3422
        %v3439 = vadd.f32 %v3407, %v3423
        %v3440 = vadd.f32 %v3408, %v3424
        %v3441 = vadd.f32 %v3409, %v3425
        %v3442 = vadd.f32 %v3410, %v3426
        %v3443 = vadd.f32 %v3411, %v3427
        %v3444 = vadd.f32 %v3412, %v3428
        %v3445 = vadd.f32 %v3413, %v3429
        %v3446 = vadd.f32 %v3414, %v3430
        %v3447 = vadd.f32 %v3415, %v3431
        %v3448 = vadd.f32 %v3416, %v3432
        %v3449 = vadd.f32 %v3417, %v3433
        %v3450 = vmul.f32 %v944, %v1693
        %v3451 = vmul.f32 %v949, %v1695
        %v3452 = vmul.f32 %v954, %v1697
        %v3453 = vmul.f32 %v959, %v1699
        %v3454 = vmul.f32 %v964, %v1701
        %v3455 = vmul.f32 %v969, %v1703
        %v3456 = vmul.f32 %v974, %v1705
        %v3457 = vmul.f32 %v979, %v1707
        %v3458 = vmul.f32 %v984, %v1709
        %v3459 = vmul.f32 %v989, %v1711
        %v3460 = vmul.f32 %v994, %v1713
        %v3461 = vmul.f32 %v999, %v1715
        %v3462 = vmul.f32 %v1004, %v1717
        %v3463 = vmul.f32 %v1009, %v1719
        %v3464 = vmul.f32 %v1014, %v1721
        %v3465 = vmul.f32 %v1019, %v1723
        %v3466 = vadd.f32 %v3434, %v3450
        %v3467 = vadd.f32 %v3435, %v3451
        %v3468 = vadd.f32 %v3436, %v3452
        %v3469 = vadd.f32 %v3437, %v3453
        %v3470 = vadd.f32 %v3438, %v3454
        %v3471 = vadd.f32 %v3439, %v3455
        %v3472 = vadd.f32 %v3440, %v3456
        %v3473 = vadd.f32 %v3441, %v3457
        %v3474 = vadd.f32 %v3442, %v3458
        %v3475 = vadd.f32 %v3443, %v3459
        %v3476 = vadd.f32 %v3444, %v3460
        %v3477 = vadd.f32 %v3445, %v3461
        %v3478 = vadd.f32 %v3446, %v3462
        %v3479 = vadd.f32 %v3447, %v3463
        %v3480 = vadd.f32 %v3448, %v3464
        %v3481 = vadd.f32 %v3449, %v3465
        %v3482 = vld [vmem:[%s4 + $0x36] sm:$0x1]
        %3484 = vset.pattern.permute.xlu0 18
        %3485 = vperm.xlu0 %3484, %v3466
        %v3486 = vpop.permute.xlu0 %3485
        %3489 = vset.pattern.permute.xlu0 18
        %3490 = vperm.xlu0 %3489, %v3467
        %v3491 = vpop.permute.xlu0 %3490
        %3494 = vset.pattern.permute.xlu0 18
        %3495 = vperm.xlu0 %3494, %v3468
        %v3496 = vpop.permute.xlu0 %3495
        %3499 = vset.pattern.permute.xlu0 18
        %3500 = vperm.xlu0 %3499, %v3469
        %v3501 = vpop.permute.xlu0 %3500
        %3504 = vset.pattern.permute.xlu0 18
        %3505 = vperm.xlu0 %3504, %v3470
        %v3506 = vpop.permute.xlu0 %3505
        %3509 = vset.pattern.permute.xlu0 18
        %3510 = vperm.xlu0 %3509, %v3471
        %v3511 = vpop.permute.xlu0 %3510
        %3514 = vset.pattern.permute.xlu0 18
        %3515 = vperm.xlu0 %3514, %v3472
        %v3516 = vpop.permute.xlu0 %3515
        %3519 = vset.pattern.permute.xlu0 18
        %3520 = vperm.xlu0 %3519, %v3473
        %v3521 = vpop.permute.xlu0 %3520
        %3524 = vset.pattern.permute.xlu0 18
        %3525 = vperm.xlu0 %3524, %v3474
        %v3526 = vpop.permute.xlu0 %3525
        %3529 = vset.pattern.permute.xlu0 18
        %3530 = vperm.xlu0 %3529, %v3475
        %v3531 = vpop.permute.xlu0 %3530
        %3534 = vset.pattern.permute.xlu0 18
        %3535 = vperm.xlu0 %3534, %v3476
        %v3536 = vpop.permute.xlu0 %3535
        %3539 = vset.pattern.permute.xlu0 18
        %3540 = vperm.xlu0 %3539, %v3477
        %v3541 = vpop.permute.xlu0 %3540
        %3544 = vset.pattern.permute.xlu0 18
        %3545 = vperm.xlu0 %3544, %v3478
        %v3546 = vpop.permute.xlu0 %3545
        %3549 = vset.pattern.permute.xlu0 18
        %3550 = vperm.xlu0 %3549, %v3479
        %v3551 = vpop.permute.xlu0 %3550
        %3554 = vset.pattern.permute.xlu0 18
        %3555 = vperm.xlu0 %3554, %v3480
        %v3556 = vpop.permute.xlu0 %3555
        %3559 = vset.pattern.permute.xlu0 18
        %3560 = vperm.xlu0 %3559, %v3481
        %v3561 = vpop.permute.xlu0 %3560
        %v3563 = vlaneseq
        %v3564 = vshrl.u32 %v3563, 7
        %v3565 = vsub.s32 0, %v3564
        %v3566 = vrot.slane %v3482, %v3565
        %v3567 = vmul.f32 %v3486, %v3566
        %v3568 = vmul.f32 %v3491, %v3566
        %v3569 = vmul.f32 %v3496, %v3566
        %v3570 = vmul.f32 %v3501, %v3566
        %v3571 = vmul.f32 %v3506, %v3566
        %v3572 = vmul.f32 %v3511, %v3566
        %v3573 = vmul.f32 %v3516, %v3566
        %v3574 = vmul.f32 %v3521, %v3566
        %v3575 = vmul.f32 %v3526, %v3566
        %v3576 = vmul.f32 %v3531, %v3566
        %v3577 = vmul.f32 %v3536, %v3566
        %v3578 = vmul.f32 %v3541, %v3566
        %v3579 = vmul.f32 %v3546, %v3566
        %v3580 = vmul.f32 %v3551, %v3566
        %v3581 = vmul.f32 %v3556, %v3566
        %v3582 = vmul.f32 %v3561, %v3566
        %v3583 = vadd.f32 %v3338, %v3567
        %v3584 = vadd.f32 %v3339, %v3568
        %v3585 = vadd.f32 %v3340, %v3569
        %v3586 = vadd.f32 %v3341, %v3570
        %v3587 = vadd.f32 %v3342, %v3571
        %v3588 = vadd.f32 %v3343, %v3572
        %v3589 = vadd.f32 %v3344, %v3573
        %v3590 = vadd.f32 %v3345, %v3574
        %v3591 = vadd.f32 %v3346, %v3575
        %v3592 = vadd.f32 %v3347, %v3576
        %v3593 = vadd.f32 %v3348, %v3577
        %v3594 = vadd.f32 %v3349, %v3578
        %v3595 = vadd.f32 %v3350, %v3579
        %v3596 = vadd.f32 %v3351, %v3580
        %v3597 = vadd.f32 %v3352, %v3581
        %v3598 = vadd.f32 %v3353, %v3582
        %v3599 = vmul.f32 %v784, %v1757
        %v3600 = vmul.f32 %v789, %v1759
        %v3601 = vmul.f32 %v794, %v1761
        %v3602 = vmul.f32 %v799, %v1763
        %v3603 = vmul.f32 %v804, %v1765
        %v3604 = vmul.f32 %v809, %v1767
        %v3605 = vmul.f32 %v814, %v1769
        %v3606 = vmul.f32 %v819, %v1771
        %v3607 = vmul.f32 %v824, %v1773
        %v3608 = vmul.f32 %v829, %v1775
        %v3609 = vmul.f32 %v834, %v1777
        %v3610 = vmul.f32 %v839, %v1779
        %v3611 = vmul.f32 %v844, %v1781
        %v3612 = vmul.f32 %v849, %v1783
        %v3613 = vmul.f32 %v854, %v1785
        %v3614 = vmul.f32 %v859, %v1787
        %v3615 = vmul.f32 %v864, %v1837
        %v3616 = vmul.f32 %v869, %v1839
        %v3617 = vmul.f32 %v874, %v1841
        %v3618 = vmul.f32 %v879, %v1843
        %v3619 = vmul.f32 %v884, %v1845
        %v3620 = vmul.f32 %v889, %v1847
        %v3621 = vmul.f32 %v894, %v1849
        %v3622 = vmul.f32 %v899, %v1851
        %v3623 = vmul.f32 %v904, %v1853
        %v3624 = vmul.f32 %v909, %v1855
        %v3625 = vmul.f32 %v914, %v1857
        %v3626 = vmul.f32 %v919, %v1859
        %v3627 = vmul.f32 %v924, %v1861
        %v3628 = vmul.f32 %v929, %v1863
        %v3629 = vmul.f32 %v934, %v1865
        %v3630 = vmul.f32 %v939, %v1867
        %v3631 = vadd.f32 %v3599, %v3615
        %v3632 = vadd.f32 %v3600, %v3616
        %v3633 = vadd.f32 %v3601, %v3617
        %v3634 = vadd.f32 %v3602, %v3618
        %v3635 = vadd.f32 %v3603, %v3619
        %v3636 = vadd.f32 %v3604, %v3620
        %v3637 = vadd.f32 %v3605, %v3621
        %v3638 = vadd.f32 %v3606, %v3622
        %v3639 = vadd.f32 %v3607, %v3623
        %v3640 = vadd.f32 %v3608, %v3624
        %v3641 = vadd.f32 %v3609, %v3625
        %v3642 = vadd.f32 %v3610, %v3626
        %v3643 = vadd.f32 %v3611, %v3627
        %v3644 = vadd.f32 %v3612, %v3628
        %v3645 = vadd.f32 %v3613, %v3629
        %v3646 = vadd.f32 %v3614, %v3630
        %v3647 = vmul.f32 %v944, %v2034
        %v3648 = vmul.f32 %v949, %v2036
        %v3649 = vmul.f32 %v954, %v2038
        %v3650 = vmul.f32 %v959, %v2040
        %v3651 = vmul.f32 %v964, %v2042
        %v3652 = vmul.f32 %v969, %v2044
        %v3653 = vmul.f32 %v974, %v2046
        %v3654 = vmul.f32 %v979, %v2048
        %v3655 = vmul.f32 %v984, %v2050
        %v3656 = vmul.f32 %v989, %v2052
        %v3657 = vmul.f32 %v994, %v2054
        %v3658 = vmul.f32 %v999, %v2056
        %v3659 = vmul.f32 %v1004, %v2058
        %v3660 = vmul.f32 %v1009, %v2060
        %v3661 = vmul.f32 %v1014, %v2062
        %v3662 = vmul.f32 %v1019, %v2064
        %v3663 = vadd.f32 %v3631, %v3647
        %v3664 = vadd.f32 %v3632, %v3648
        %v3665 = vadd.f32 %v3633, %v3649
        %v3666 = vadd.f32 %v3634, %v3650
        %v3667 = vadd.f32 %v3635, %v3651
        %v3668 = vadd.f32 %v3636, %v3652
        %v3669 = vadd.f32 %v3637, %v3653
        %v3670 = vadd.f32 %v3638, %v3654
        %v3671 = vadd.f32 %v3639, %v3655
        %v3672 = vadd.f32 %v3640, %v3656
        %v3673 = vadd.f32 %v3641, %v3657
        %v3674 = vadd.f32 %v3642, %v3658
        %v3675 = vadd.f32 %v3643, %v3659
        %v3676 = vadd.f32 %v3644, %v3660
        %v3677 = vadd.f32 %v3645, %v3661
        %v3678 = vadd.f32 %v3646, %v3662
        %v3679 = vld [vmem:[%s4 + $0x37] sm:$0x1]
        %3681 = vset.pattern.permute.xlu0 18
        %3682 = vperm.xlu0 %3681, %v3663
        %v3683 = vpop.permute.xlu0 %3682
        %3686 = vset.pattern.permute.xlu0 18
        %3687 = vperm.xlu0 %3686, %v3664
        %v3688 = vpop.permute.xlu0 %3687
        %3691 = vset.pattern.permute.xlu0 18
        %3692 = vperm.xlu0 %3691, %v3665
        %v3693 = vpop.permute.xlu0 %3692
        %3696 = vset.pattern.permute.xlu0 18
        %3697 = vperm.xlu0 %3696, %v3666
        %v3698 = vpop.permute.xlu0 %3697
        %3701 = vset.pattern.permute.xlu0 18
        %3702 = vperm.xlu0 %3701, %v3667
        %v3703 = vpop.permute.xlu0 %3702
        %3706 = vset.pattern.permute.xlu0 18
        %3707 = vperm.xlu0 %3706, %v3668
        %v3708 = vpop.permute.xlu0 %3707
        %3711 = vset.pattern.permute.xlu0 18
        %3712 = vperm.xlu0 %3711, %v3669
        %v3713 = vpop.permute.xlu0 %3712
        %3716 = vset.pattern.permute.xlu0 18
        %3717 = vperm.xlu0 %3716, %v3670
        %v3718 = vpop.permute.xlu0 %3717
        %3721 = vset.pattern.permute.xlu0 18
        %3722 = vperm.xlu0 %3721, %v3671
        %v3723 = vpop.permute.xlu0 %3722
        %3726 = vset.pattern.permute.xlu0 18
        %3727 = vperm.xlu0 %3726, %v3672
        %v3728 = vpop.permute.xlu0 %3727
        %3731 = vset.pattern.permute.xlu0 18
        %3732 = vperm.xlu0 %3731, %v3673
        %v3733 = vpop.permute.xlu0 %3732
        %3736 = vset.pattern.permute.xlu0 18
        %3737 = vperm.xlu0 %3736, %v3674
        %v3738 = vpop.permute.xlu0 %3737
        %3741 = vset.pattern.permute.xlu0 18
        %3742 = vperm.xlu0 %3741, %v3675
        %v3743 = vpop.permute.xlu0 %3742
        %3746 = vset.pattern.permute.xlu0 18
        %3747 = vperm.xlu0 %3746, %v3676
        %v3748 = vpop.permute.xlu0 %3747
        %3751 = vset.pattern.permute.xlu0 18
        %3752 = vperm.xlu0 %3751, %v3677
        %v3753 = vpop.permute.xlu0 %3752
        %3756 = vset.pattern.permute.xlu0 18
        %3757 = vperm.xlu0 %3756, %v3678
        %v3758 = vpop.permute.xlu0 %3757
        %v3760 = vlaneseq
        %v3761 = vshrl.u32 %v3760, 7
        %v3762 = vsub.s32 0, %v3761
        %v3763 = vrot.slane %v3679, %v3762
        %v3764 = vmul.f32 %v3683, %v3763
        %v3765 = vmul.f32 %v3688, %v3763
        %v3766 = vmul.f32 %v3693, %v3763
        %v3767 = vmul.f32 %v3698, %v3763
        %v3768 = vmul.f32 %v3703, %v3763
        %v3769 = vmul.f32 %v3708, %v3763
        %v3770 = vmul.f32 %v3713, %v3763
        %v3771 = vmul.f32 %v3718, %v3763
        %v3772 = vmul.f32 %v3723, %v3763
        %v3773 = vmul.f32 %v3728, %v3763
        %v3774 = vmul.f32 %v3733, %v3763
        %v3775 = vmul.f32 %v3738, %v3763
        %v3776 = vmul.f32 %v3743, %v3763
        %v3777 = vmul.f32 %v3748, %v3763
        %v3778 = vmul.f32 %v3753, %v3763
        %v3779 = vmul.f32 %v3758, %v3763
        %v3780 = vadd.f32 %v3583, %v3764
        %v3781 = vadd.f32 %v3584, %v3765
        %v3782 = vadd.f32 %v3585, %v3766
        %v3783 = vadd.f32 %v3586, %v3767
        %v3784 = vadd.f32 %v3587, %v3768
        %v3785 = vadd.f32 %v3588, %v3769
        %v3786 = vadd.f32 %v3589, %v3770
        %v3787 = vadd.f32 %v3590, %v3771
        %v3788 = vadd.f32 %v3591, %v3772
        %v3789 = vadd.f32 %v3592, %v3773
        %v3790 = vadd.f32 %v3593, %v3774
        %v3791 = vadd.f32 %v3594, %v3775
        %v3792 = vadd.f32 %v3595, %v3776
        %v3793 = vadd.f32 %v3596, %v3777
        %v3794 = vadd.f32 %v3597, %v3778
        %v3795 = vadd.f32 %v3598, %v3779
        %v3796 = vmul.f32 %v784, %v2098
        %v3797 = vmul.f32 %v789, %v2100
        %v3798 = vmul.f32 %v794, %v2102
        %v3799 = vmul.f32 %v799, %v2104
        %v3800 = vmul.f32 %v804, %v2106
        %v3801 = vmul.f32 %v809, %v2108
        %v3802 = vmul.f32 %v814, %v2110
        %v3803 = vmul.f32 %v819, %v2112
        %v3804 = vmul.f32 %v824, %v2114
        %v3805 = vmul.f32 %v829, %v2116
        %v3806 = vmul.f32 %v834, %v2118
        %v3807 = vmul.f32 %v839, %v2120
        %v3808 = vmul.f32 %v844, %v2122
        %v3809 = vmul.f32 %v849, %v2124
        %v3810 = vmul.f32 %v854, %v2126
        %v3811 = vmul.f32 %v859, %v2128
        %v3812 = vmul.f32 %v864, %v2178
        %v3813 = vmul.f32 %v869, %v2180
        %v3814 = vmul.f32 %v874, %v2182
        %v3815 = vmul.f32 %v879, %v2184
        %v3816 = vmul.f32 %v884, %v2186
        %v3817 = vmul.f32 %v889, %v2188
        %v3818 = vmul.f32 %v894, %v2190
        %v3819 = vmul.f32 %v899, %v2192
        %v3820 = vmul.f32 %v904, %v2194
        %v3821 = vmul.f32 %v909, %v2196
        %v3822 = vmul.f32 %v914, %v2198
        %v3823 = vmul.f32 %v919, %v2200
        %v3824 = vmul.f32 %v924, %v2202
        %v3825 = vmul.f32 %v929, %v2204
        %v3826 = vmul.f32 %v934, %v2206
        %v3827 = vmul.f32 %v939, %v2208
        %v3828 = vadd.f32 %v3796, %v3812
        %v3829 = vadd.f32 %v3797, %v3813
        %v3830 = vadd.f32 %v3798, %v3814
        %v3831 = vadd.f32 %v3799, %v3815
        %v3832 = vadd.f32 %v3800, %v3816
        %v3833 = vadd.f32 %v3801, %v3817
        %v3834 = vadd.f32 %v3802, %v3818
        %v3835 = vadd.f32 %v3803, %v3819
        %v3836 = vadd.f32 %v3804, %v3820
        %v3837 = vadd.f32 %v3805, %v3821
        %v3838 = vadd.f32 %v3806, %v3822
        %v3839 = vadd.f32 %v3807, %v3823
        %v3840 = vadd.f32 %v3808, %v3824
        %v3841 = vadd.f32 %v3809, %v3825
        %v3842 = vadd.f32 %v3810, %v3826
        %v3843 = vadd.f32 %v3811, %v3827
        %v3844 = vmul.f32 %v944, %v2375
        %v3845 = vmul.f32 %v949, %v2377
        %v3846 = vmul.f32 %v954, %v2379
        %v3847 = vmul.f32 %v959, %v2381
        %v3848 = vmul.f32 %v964, %v2383
        %v3849 = vmul.f32 %v969, %v2385
        %v3850 = vmul.f32 %v974, %v2387
        %v3851 = vmul.f32 %v979, %v2389
        %v3852 = vmul.f32 %v984, %v2391
        %v3853 = vmul.f32 %v989, %v2393
        %v3854 = vmul.f32 %v994, %v2395
        %v3855 = vmul.f32 %v999, %v2397
        %v3856 = vmul.f32 %v1004, %v2399
        %v3857 = vmul.f32 %v1009, %v2401
        %v3858 = vmul.f32 %v1014, %v2403
        %v3859 = vmul.f32 %v1019, %v2405
        %v3860 = vadd.f32 %v3828, %v3844
        %v3861 = vadd.f32 %v3829, %v3845
        %v3862 = vadd.f32 %v3830, %v3846
        %v3863 = vadd.f32 %v3831, %v3847
        %v3864 = vadd.f32 %v3832, %v3848
        %v3865 = vadd.f32 %v3833, %v3849
        %v3866 = vadd.f32 %v3834, %v3850
        %v3867 = vadd.f32 %v3835, %v3851
        %v3868 = vadd.f32 %v3836, %v3852
        %v3869 = vadd.f32 %v3837, %v3853
        %v3870 = vadd.f32 %v3838, %v3854
        %v3871 = vadd.f32 %v3839, %v3855
        %v3872 = vadd.f32 %v3840, %v3856
        %v3873 = vadd.f32 %v3841, %v3857
        %v3874 = vadd.f32 %v3842, %v3858
        %v3875 = vadd.f32 %v3843, %v3859
        %v3876 = vld [vmem:[%s4 + $0x38] sm:$0x1]
        %3878 = vset.pattern.permute.xlu0 18
        %3879 = vperm.xlu0 %3878, %v3860
        %v3880 = vpop.permute.xlu0 %3879
        %3883 = vset.pattern.permute.xlu0 18
        %3884 = vperm.xlu0 %3883, %v3861
        %v3885 = vpop.permute.xlu0 %3884
        %3888 = vset.pattern.permute.xlu0 18
        %3889 = vperm.xlu0 %3888, %v3862
        %v3890 = vpop.permute.xlu0 %3889
        %3893 = vset.pattern.permute.xlu0 18
        %3894 = vperm.xlu0 %3893, %v3863
        %v3895 = vpop.permute.xlu0 %3894
        %3898 = vset.pattern.permute.xlu0 18
        %3899 = vperm.xlu0 %3898, %v3864
        %v3900 = vpop.permute.xlu0 %3899
        %3903 = vset.pattern.permute.xlu0 18
        %3904 = vperm.xlu0 %3903, %v3865
        %v3905 = vpop.permute.xlu0 %3904
        %3908 = vset.pattern.permute.xlu0 18
        %3909 = vperm.xlu0 %3908, %v3866
        %v3910 = vpop.permute.xlu0 %3909
        %3913 = vset.pattern.permute.xlu0 18
        %3914 = vperm.xlu0 %3913, %v3867
        %v3915 = vpop.permute.xlu0 %3914
        %3918 = vset.pattern.permute.xlu0 18
        %3919 = vperm.xlu0 %3918, %v3868
        %v3920 = vpop.permute.xlu0 %3919
        %3923 = vset.pattern.permute.xlu0 18
        %3924 = vperm.xlu0 %3923, %v3869
        %v3925 = vpop.permute.xlu0 %3924
        %3928 = vset.pattern.permute.xlu0 18
        %3929 = vperm.xlu0 %3928, %v3870
        %v3930 = vpop.permute.xlu0 %3929
        %3933 = vset.pattern.permute.xlu0 18
        %3934 = vperm.xlu0 %3933, %v3871
        %v3935 = vpop.permute.xlu0 %3934
        %3938 = vset.pattern.permute.xlu0 18
        %3939 = vperm.xlu0 %3938, %v3872
        %v3940 = vpop.permute.xlu0 %3939
        %3943 = vset.pattern.permute.xlu0 18
        %3944 = vperm.xlu0 %3943, %v3873
        %v3945 = vpop.permute.xlu0 %3944
        %3948 = vset.pattern.permute.xlu0 18
        %3949 = vperm.xlu0 %3948, %v3874
        %v3950 = vpop.permute.xlu0 %3949
        %3953 = vset.pattern.permute.xlu0 18
        %3954 = vperm.xlu0 %3953, %v3875
        %v3955 = vpop.permute.xlu0 %3954
        %v3957 = vlaneseq
        %v3958 = vshrl.u32 %v3957, 7
        %v3959 = vsub.s32 0, %v3958
        %v3960 = vrot.slane %v3876, %v3959
        %v3961 = vmul.f32 %v3880, %v3960
        %v3962 = vmul.f32 %v3885, %v3960
        %v3963 = vmul.f32 %v3890, %v3960
        %v3964 = vmul.f32 %v3895, %v3960
        %v3965 = vmul.f32 %v3900, %v3960
        %v3966 = vmul.f32 %v3905, %v3960
        %v3967 = vmul.f32 %v3910, %v3960
        %v3968 = vmul.f32 %v3915, %v3960
        %v3969 = vmul.f32 %v3920, %v3960
        %v3970 = vmul.f32 %v3925, %v3960
        %v3971 = vmul.f32 %v3930, %v3960
        %v3972 = vmul.f32 %v3935, %v3960
        %v3973 = vmul.f32 %v3940, %v3960
        %v3974 = vmul.f32 %v3945, %v3960
        %v3975 = vmul.f32 %v3950, %v3960
        %v3976 = vmul.f32 %v3955, %v3960
        %v3977 = vadd.f32 %v3780, %v3961
        %v3978 = vadd.f32 %v3781, %v3962
        %v3979 = vadd.f32 %v3782, %v3963
        %v3980 = vadd.f32 %v3783, %v3964
        %v3981 = vadd.f32 %v3784, %v3965
        %v3982 = vadd.f32 %v3785, %v3966
        %v3983 = vadd.f32 %v3786, %v3967
        %v3984 = vadd.f32 %v3787, %v3968
        %v3985 = vadd.f32 %v3788, %v3969
        %v3986 = vadd.f32 %v3789, %v3970
        %v3987 = vadd.f32 %v3790, %v3971
        %v3988 = vadd.f32 %v3791, %v3972
        %v3989 = vadd.f32 %v3792, %v3973
        %v3990 = vadd.f32 %v3793, %v3974
        %v3991 = vadd.f32 %v3794, %v3975
        %v3992 = vadd.f32 %v3795, %v3976
        %v3993 = vxor.u32 %v3977, 2147483648
        %v3994 = vxor.u32 %v3978, 2147483648
        %v3995 = vxor.u32 %v3979, 2147483648
        %v3996 = vxor.u32 %v3980, 2147483648
        %v3997 = vxor.u32 %v3981, 2147483648
        %v3998 = vxor.u32 %v3982, 2147483648
        %v3999 = vxor.u32 %v3983, 2147483648
        %v4000 = vxor.u32 %v3984, 2147483648
        %v4001 = vxor.u32 %v3985, 2147483648
        %v4002 = vxor.u32 %v3986, 2147483648
        %v4003 = vxor.u32 %v3987, 2147483648
        %v4004 = vxor.u32 %v3988, 2147483648
        %v4005 = vxor.u32 %v3989, 2147483648
        %v4006 = vxor.u32 %v3990, 2147483648
        %v4007 = vxor.u32 %v3991, 2147483648
        %v4008 = vxor.u32 %v3992, 2147483648
        %v4009 = vmul.f32 %v3993, 1.442695
        %v4010 = vpow.pop %v4009
        %v4011 = vmul.f32 %v3994, 1.442695
        %v4012 = vpow.pop %v4011
        %v4013 = vmul.f32 %v3995, 1.442695
        %v4014 = vpow.pop %v4013
        %v4015 = vmul.f32 %v3996, 1.442695
        %v4016 = vpow.pop %v4015
        %v4017 = vmul.f32 %v3997, 1.442695
        %v4018 = vpow.pop %v4017
        %v4019 = vmul.f32 %v3998, 1.442695
        %v4020 = vpow.pop %v4019
        %v4021 = vmul.f32 %v3999, 1.442695
        %v4022 = vpow.pop %v4021
        %v4023 = vmul.f32 %v4000, 1.442695
        %v4024 = vpow.pop %v4023
        %v4025 = vmul.f32 %v4001, 1.442695
        %v4026 = vpow.pop %v4025
        %v4027 = vmul.f32 %v4002, 1.442695
        %v4028 = vpow.pop %v4027
        %v4029 = vmul.f32 %v4003, 1.442695
        %v4030 = vpow.pop %v4029
        %v4031 = vmul.f32 %v4004, 1.442695
        %v4032 = vpow.pop %v4031
        %v4033 = vmul.f32 %v4005, 1.442695
        %v4034 = vpow.pop %v4033
        %v4035 = vmul.f32 %v4006, 1.442695
        %v4036 = vpow.pop %v4035
        %v4037 = vmul.f32 %v4007, 1.442695
        %v4038 = vpow.pop %v4037
        %v4039 = vmul.f32 %v4008, 1.442695
        %v4040 = vpow.pop %v4039
        %v4041 = vadd.f32 %v4010, 1.0
        %v4042 = vadd.f32 %v4012, 1.0
        %v4043 = vadd.f32 %v4014, 1.0
        %v4044 = vadd.f32 %v4016, 1.0
        %v4045 = vadd.f32 %v4018, 1.0
        %v4046 = vadd.f32 %v4020, 1.0
        %v4047 = vadd.f32 %v4022, 1.0
        %v4048 = vadd.f32 %v4024, 1.0
        %v4049 = vadd.f32 %v4026, 1.0
        %v4050 = vadd.f32 %v4028, 1.0
        %v4051 = vadd.f32 %v4030, 1.0
        %v4052 = vadd.f32 %v4032, 1.0
        %v4053 = vadd.f32 %v4034, 1.0
        %v4054 = vadd.f32 %v4036, 1.0
        %v4055 = vadd.f32 %v4038, 1.0
        %v4056 = vadd.f32 %v4040, 1.0
        %v4057 = vrcp.pop %v4041
        %v4058 = vmul.f32 1.0, %v4057
        %v4059 = vrcp.pop %v4042
        %v4060 = vmul.f32 1.0, %v4059
        %v4061 = vrcp.pop %v4043
        %v4062 = vmul.f32 1.0, %v4061
        %v4063 = vrcp.pop %v4044
        %v4064 = vmul.f32 1.0, %v4063
        %v4065 = vrcp.pop %v4045
        %v4066 = vmul.f32 1.0, %v4065
        %v4067 = vrcp.pop %v4046
        %v4068 = vmul.f32 1.0, %v4067
        %v4069 = vrcp.pop %v4047
        %v4070 = vmul.f32 1.0, %v4069
        %v4071 = vrcp.pop %v4048
        %v4072 = vmul.f32 1.0, %v4071
        %v4073 = vrcp.pop %v4049
        %v4074 = vmul.f32 1.0, %v4073
        %v4075 = vrcp.pop %v4050
        %v4076 = vmul.f32 1.0, %v4075
        %v4077 = vrcp.pop %v4051
        %v4078 = vmul.f32 1.0, %v4077
        %v4079 = vrcp.pop %v4052
        %v4080 = vmul.f32 1.0, %v4079
        %v4081 = vrcp.pop %v4053
        %v4082 = vmul.f32 1.0, %v4081
        %v4083 = vrcp.pop %v4054
        %v4084 = vmul.f32 1.0, %v4083
        %v4085 = vrcp.pop %v4055
        %v4086 = vmul.f32 1.0, %v4085
        %v4087 = vrcp.pop %v4056
        %v4088 = vmul.f32 1.0, %v4087
        %v4089 = vmul.f32 %v3977, %v4058
        %v4090 = vmul.f32 %v3978, %v4060
        %v4091 = vmul.f32 %v3979, %v4062
        %v4092 = vmul.f32 %v3980, %v4064
        %v4093 = vmul.f32 %v3981, %v4066
        %v4094 = vmul.f32 %v3982, %v4068
        %v4095 = vmul.f32 %v3983, %v4070
        %v4096 = vmul.f32 %v3984, %v4072
        %v4097 = vmul.f32 %v3985, %v4074
        %v4098 = vmul.f32 %v3986, %v4076
        %v4099 = vmul.f32 %v3987, %v4078
        %v4100 = vmul.f32 %v3988, %v4080
        %v4101 = vmul.f32 %v3989, %v4082
        %v4102 = vmul.f32 %v3990, %v4084
        %v4103 = vmul.f32 %v3991, %v4086
        %v4104 = vmul.f32 %v3992, %v4088
        %v4105 = vld [vmem:[%s5] sm:$0xff]
        %v4106 = vld [vmem:[%s5 + $0x8] sm:$0xff]
        %v4108 = vsel %vm572, %v784, 0
        %v4111 = vsel %vm572, %v789, 0
        %v4114 = vsel %vm572, %v794, 0
        %v4117 = vsel %vm572, %v799, 0
        %v4120 = vsel %vm572, %v804, 0
        %v4123 = vsel %vm572, %v809, 0
        %v4126 = vsel %vm572, %v814, 0
        %v4129 = vsel %vm572, %v819, 0
        %v4132 = vsel %vm572, %v824, 0
        %v4135 = vsel %vm572, %v829, 0
        %v4138 = vsel %vm572, %v834, 0
        %v4141 = vsel %vm572, %v839, 0
        %v4144 = vsel %vm572, %v844, 0
        %v4147 = vsel %vm572, %v849, 0
        %v4150 = vsel %vm572, %v854, 0
        %v4153 = vsel %vm572, %v859, 0
        %v4156 = vsel %vm572, %v864, 0
        %v4159 = vsel %vm572, %v869, 0
        %v4162 = vsel %vm572, %v874, 0
        %v4165 = vsel %vm572, %v879, 0
        %v4168 = vsel %vm572, %v884, 0
        %v4171 = vsel %vm572, %v889, 0
        %v4174 = vsel %vm572, %v894, 0
        %v4177 = vsel %vm572, %v899, 0
        %v4180 = vsel %vm572, %v904, 0
        %v4183 = vsel %vm572, %v909, 0
        %v4186 = vsel %vm572, %v914, 0
        %v4189 = vsel %vm572, %v919, 0
        %v4192 = vsel %vm572, %v924, 0
        %v4195 = vsel %vm572, %v929, 0
        %v4198 = vsel %vm572, %v934, 0
        %v4201 = vsel %vm572, %v939, 0
        %v4204 = vsel %vm572, %v944, 0
        %v4207 = vsel %vm572, %v949, 0
        %v4210 = vsel %vm572, %v954, 0
        %v4213 = vsel %vm572, %v959, 0
        %v4216 = vsel %vm572, %v964, 0
        %v4219 = vsel %vm572, %v969, 0
        %v4222 = vsel %vm572, %v974, 0
        %v4225 = vsel %vm572, %v979, 0
        %v4228 = vsel %vm572, %v984, 0
        %v4231 = vsel %vm572, %v989, 0
        %v4234 = vsel %vm572, %v994, 0
        %v4237 = vsel %vm572, %v999, 0
        %v4240 = vsel %vm572, %v1004, 0
        %v4243 = vsel %vm572, %v1009, 0
        %v4246 = vsel %vm572, %v1014, 0
        %v4249 = vsel %vm572, %v1019, 0
        %4251 = vmatprep.subr.mxu0 0.0
        %4252 = vmatpush1.msra.mxu0 0.0
        %4253 = vmatprep.subr.mxu0 0.0
        %4254 = vmatpush1.msra.mxu0 0.0
        %4255 = vmatprep.subr.mxu0 0.0
        %4256 = vmatpush1.msra.mxu0 0.0
        %4257 = vmatprep.subr.mxu0 0.0
        %4258 = vmatpush1.msra.mxu0 0.0
        %4259 = vmatprep.subr.mxu0 0.0
        %4260 = vmatpush1.msra.mxu0 0.0
        %4261 = vmatprep.subr.mxu0 0.0
        %4262 = vmatpush1.msra.mxu0 0.0
        %4263 = vmatprep.subr.mxu0 0.0
        %4264 = vmatpush1.msra.mxu0 0.0
        %4265 = vmatprep.subr.mxu0 0.0
        %4266 = vmatpush1.msra.mxu0 0.0
        %4267 = vmatprep.subr.mxu0 0.0
        %4268 = vmatpush1.msra.mxu0 0.0
        %4269 = vmatprep.subr.mxu0 0.0
        %4270 = vmatpush1.msra.mxu0 0.0
        %4271 = vmatprep.subr.mxu0 0.0
        %4272 = vmatpush1.msra.mxu0 0.0
        %4273 = vmatprep.subr.mxu0 0.0
        %4274 = vmatpush1.msra.mxu0 0.0
        %4275 = vmatprep.subr.mxu0 0.0
        %4276 = vmatpush1.msra.mxu0 0.0
        %4277 = vmatprep.subr.mxu0 0.0
        %4278 = vmatpush1.msra.mxu0 0.0
        %4279 = vmatprep.subr.mxu0 0.0
        %4280 = vmatpush1.msra.mxu0 %v4106
        %4281 = vmatprep.subr.mxu0 0.0
        %4282 = vmatpush1.msra.mxu0 %v4105
        %4283 = vmatprep.subr.mxu0 0.0
        %4284 = vmatpush2.msra.mxu0 0.0
        %4285 = vmatprep.subr.mxu0 0.0
        %4286 = vmatpush2.msra.mxu0 0.0
        %4287 = vmatprep.subr.mxu0 0.0
        %4288 = vmatpush2.msra.mxu0 0.0
        %4289 = vmatprep.subr.mxu0 0.0
        %4290 = vmatpush2.msra.mxu0 0.0
        %4291 = vmatprep.subr.mxu0 0.0
        %4292 = vmatpush2.msra.mxu0 0.0
        %4293 = vmatprep.subr.mxu0 0.0
        %4294 = vmatpush2.msra.mxu0 0.0
        %4295 = vmatprep.subr.mxu0 0.0
        %4296 = vmatpush2.msra.mxu0 0.0
        %4297 = vmatprep.subr.mxu0 0.0
        %4298 = vmatpush2.msra.mxu0 0.0
        %4299 = vmatprep.subr.mxu0 0.0
        %4300 = vmatpush2.msra.mxu0 0.0
        %4301 = vmatprep.subr.mxu0 0.0
        %4302 = vmatpush2.msra.mxu0 0.0
        %4303 = vmatprep.subr.mxu0 0.0
        %4304 = vmatpush2.msra.mxu0 0.0
        %4305 = vmatprep.subr.mxu0 0.0
        %4306 = vmatpush2.msra.mxu0 0.0
        %4307 = vmatprep.subr.mxu0 0.0
        %4308 = vmatpush2.msra.mxu0 0.0
        %4309 = vmatprep.subr.mxu0 0.0
        %4310 = vmatpush2.msra.mxu0 0.0
        %4311 = vmatprep.subr.mxu0 0.0
        %4312 = vmatpush2.msra.mxu0 0.0
        %4313 = vmatprep.subr.mxu0 0.0
        %4314 = vmatpush2.msra.mxu0 0.0
        %4315 = vmatprep.mubr.f32.mxu0 0.0
        %4316 = vmatmul.mubr.f32.gmra.mxu0 %v4108
        %v4317 = vpop.f32.mrf.mxu0
        %v4318 = vadd.f32 0.0, %v4317
        %v4319 = vpop.f32.mrf.mxu0
        %4320 = vmatprep.mubr.f32.mxu0 0.0
        %4321 = vmatmul.mubr.f32.gmra.mxu0 %v4111
        %v4322 = vpop.f32.mrf.mxu0
        %v4323 = vadd.f32 0.0, %v4322
        %v4324 = vpop.f32.mrf.mxu0
        %4325 = vmatprep.mubr.f32.mxu0 0.0
        %4326 = vmatmul.mubr.f32.gmra.mxu0 %v4114
        %v4327 = vpop.f32.mrf.mxu0
        %v4328 = vadd.f32 0.0, %v4327
        %v4329 = vpop.f32.mrf.mxu0
        %4330 = vmatprep.mubr.f32.mxu0 0.0
        %4331 = vmatmul.mubr.f32.gmra.mxu0 %v4117
        %v4332 = vpop.f32.mrf.mxu0
        %v4333 = vadd.f32 0.0, %v4332
        %v4334 = vpop.f32.mrf.mxu0
        %4335 = vmatprep.mubr.f32.mxu0 0.0
        %4336 = vmatmul.mubr.f32.gmra.mxu0 %v4120
        %v4337 = vpop.f32.mrf.mxu0
        %v4338 = vadd.f32 0.0, %v4337
        %v4339 = vpop.f32.mrf.mxu0
        %4340 = vmatprep.mubr.f32.mxu0 0.0
        %4341 = vmatmul.mubr.f32.gmra.mxu0 %v4123
        %v4342 = vpop.f32.mrf.mxu0
        %v4343 = vadd.f32 0.0, %v4342
        %v4344 = vpop.f32.mrf.mxu0
        %4345 = vmatprep.mubr.f32.mxu0 0.0
        %4346 = vmatmul.mubr.f32.gmra.mxu0 %v4126
        %v4347 = vpop.f32.mrf.mxu0
        %v4348 = vadd.f32 0.0, %v4347
        %v4349 = vpop.f32.mrf.mxu0
        %4350 = vmatprep.mubr.f32.mxu0 0.0
        %4351 = vmatmul.mubr.f32.gmra.mxu0 %v4129
        %v4352 = vpop.f32.mrf.mxu0
        %v4353 = vadd.f32 0.0, %v4352
        %v4354 = vpop.f32.mrf.mxu0
        %4355 = vmatprep.mubr.f32.mxu0 0.0
        %4356 = vmatmul.mubr.f32.gmra.mxu0 %v4132
        %v4357 = vpop.f32.mrf.mxu0
        %v4358 = vadd.f32 0.0, %v4357
        %v4359 = vpop.f32.mrf.mxu0
        %4360 = vmatprep.mubr.f32.mxu0 0.0
        %4361 = vmatmul.mubr.f32.gmra.mxu0 %v4135
        %v4362 = vpop.f32.mrf.mxu0
        %v4363 = vadd.f32 0.0, %v4362
        %v4364 = vpop.f32.mrf.mxu0
        %4365 = vmatprep.mubr.f32.mxu0 0.0
        %4366 = vmatmul.mubr.f32.gmra.mxu0 %v4138
        %v4367 = vpop.f32.mrf.mxu0
        %v4368 = vadd.f32 0.0, %v4367
        %v4369 = vpop.f32.mrf.mxu0
        %4370 = vmatprep.mubr.f32.mxu0 0.0
        %4371 = vmatmul.mubr.f32.gmra.mxu0 %v4141
        %v4372 = vpop.f32.mrf.mxu0
        %v4373 = vadd.f32 0.0, %v4372
        %v4374 = vpop.f32.mrf.mxu0
        %4375 = vmatprep.mubr.f32.mxu0 0.0
        %4376 = vmatmul.mubr.f32.gmra.mxu0 %v4144
        %v4377 = vpop.f32.mrf.mxu0
        %v4378 = vadd.f32 0.0, %v4377
        %v4379 = vpop.f32.mrf.mxu0
        %4380 = vmatprep.mubr.f32.mxu0 0.0
        %4381 = vmatmul.mubr.f32.gmra.mxu0 %v4147
        %v4382 = vpop.f32.mrf.mxu0
        %v4383 = vadd.f32 0.0, %v4382
        %v4384 = vpop.f32.mrf.mxu0
        %4385 = vmatprep.mubr.f32.mxu0 0.0
        %4386 = vmatmul.mubr.f32.gmra.mxu0 %v4150
        %v4387 = vpop.f32.mrf.mxu0
        %v4388 = vadd.f32 0.0, %v4387
        %v4389 = vpop.f32.mrf.mxu0
        %4390 = vmatprep.mubr.f32.mxu0 0.0
        %4391 = vmatmul.mubr.f32.gmra.mxu0 %v4153
        %v4392 = vpop.f32.mrf.mxu0
        %v4393 = vadd.f32 0.0, %v4392
        %v4394 = vpop.f32.mrf.mxu0
        %4395 = vmatprep.mubr.f32.mxu0 0.0
        %4396 = vmatmul.mubr.f32.gmra.mxu0 %v4156
        %v4397 = vpop.f32.mrf.mxu0
        %v4398 = vadd.f32 0.0, %v4397
        %v4399 = vpop.f32.mrf.mxu0
        %4400 = vmatprep.mubr.f32.mxu0 0.0
        %4401 = vmatmul.mubr.f32.gmra.mxu0 %v4159
        %v4402 = vpop.f32.mrf.mxu0
        %v4403 = vadd.f32 0.0, %v4402
        %v4404 = vpop.f32.mrf.mxu0
        %4405 = vmatprep.mubr.f32.mxu0 0.0
        %4406 = vmatmul.mubr.f32.gmra.mxu0 %v4162
        %v4407 = vpop.f32.mrf.mxu0
        %v4408 = vadd.f32 0.0, %v4407
        %v4409 = vpop.f32.mrf.mxu0
        %4410 = vmatprep.mubr.f32.mxu0 0.0
        %4411 = vmatmul.mubr.f32.gmra.mxu0 %v4165
        %v4412 = vpop.f32.mrf.mxu0
        %v4413 = vadd.f32 0.0, %v4412
        %v4414 = vpop.f32.mrf.mxu0
        %4415 = vmatprep.mubr.f32.mxu0 0.0
        %4416 = vmatmul.mubr.f32.gmra.mxu0 %v4168
        %v4417 = vpop.f32.mrf.mxu0
        %v4418 = vadd.f32 0.0, %v4417
        %v4419 = vpop.f32.mrf.mxu0
        %4420 = vmatprep.mubr.f32.mxu0 0.0
        %4421 = vmatmul.mubr.f32.gmra.mxu0 %v4171
        %v4422 = vpop.f32.mrf.mxu0
        %v4423 = vadd.f32 0.0, %v4422
        %v4424 = vpop.f32.mrf.mxu0
        %4425 = vmatprep.mubr.f32.mxu0 0.0
        %4426 = vmatmul.mubr.f32.gmra.mxu0 %v4174
        %v4427 = vpop.f32.mrf.mxu0
        %v4428 = vadd.f32 0.0, %v4427
        %v4429 = vpop.f32.mrf.mxu0
        %4430 = vmatprep.mubr.f32.mxu0 0.0
        %4431 = vmatmul.mubr.f32.gmra.mxu0 %v4177
        %v4432 = vpop.f32.mrf.mxu0
        %v4433 = vadd.f32 0.0, %v4432
        %v4434 = vpop.f32.mrf.mxu0
        %4435 = vmatprep.mubr.f32.mxu0 0.0
        %4436 = vmatmul.mubr.f32.gmra.mxu0 %v4180
        %v4437 = vpop.f32.mrf.mxu0
        %v4438 = vadd.f32 0.0, %v4437
        %v4439 = vpop.f32.mrf.mxu0
        %4440 = vmatprep.mubr.f32.mxu0 0.0
        %4441 = vmatmul.mubr.f32.gmra.mxu0 %v4183
        %v4442 = vpop.f32.mrf.mxu0
        %v4443 = vadd.f32 0.0, %v4442
        %v4444 = vpop.f32.mrf.mxu0
        %4445 = vmatprep.mubr.f32.mxu0 0.0
        %4446 = vmatmul.mubr.f32.gmra.mxu0 %v4186
        %v4447 = vpop.f32.mrf.mxu0
        %v4448 = vadd.f32 0.0, %v4447
        %v4449 = vpop.f32.mrf.mxu0
        %4450 = vmatprep.mubr.f32.mxu0 0.0
        %4451 = vmatmul.mubr.f32.gmra.mxu0 %v4189
        %v4452 = vpop.f32.mrf.mxu0
        %v4453 = vadd.f32 0.0, %v4452
        %v4454 = vpop.f32.mrf.mxu0
        %4455 = vmatprep.mubr.f32.mxu0 0.0
        %4456 = vmatmul.mubr.f32.gmra.mxu0 %v4192
        %v4457 = vpop.f32.mrf.mxu0
        %v4458 = vadd.f32 0.0, %v4457
        %v4459 = vpop.f32.mrf.mxu0
        %4460 = vmatprep.mubr.f32.mxu0 0.0
        %4461 = vmatmul.mubr.f32.gmra.mxu0 %v4195
        %v4462 = vpop.f32.mrf.mxu0
        %v4463 = vadd.f32 0.0, %v4462
        %v4464 = vpop.f32.mrf.mxu0
        %4465 = vmatprep.mubr.f32.mxu0 0.0
        %4466 = vmatmul.mubr.f32.gmra.mxu0 %v4198
        %v4467 = vpop.f32.mrf.mxu0
        %v4468 = vadd.f32 0.0, %v4467
        %v4469 = vpop.f32.mrf.mxu0
        %4470 = vmatprep.mubr.f32.mxu0 0.0
        %4471 = vmatmul.mubr.f32.gmra.mxu0 %v4201
        %v4472 = vpop.f32.mrf.mxu0
        %v4473 = vadd.f32 0.0, %v4472
        %v4474 = vpop.f32.mrf.mxu0
        %4475 = vmatprep.mubr.f32.mxu0 0.0
        %4476 = vmatmul.mubr.f32.gmra.mxu0 %v4204
        %v4477 = vpop.f32.mrf.mxu0
        %v4478 = vadd.f32 0.0, %v4477
        %v4479 = vpop.f32.mrf.mxu0
        %4480 = vmatprep.mubr.f32.mxu0 0.0
        %4481 = vmatmul.mubr.f32.gmra.mxu0 %v4207
        %v4482 = vpop.f32.mrf.mxu0
        %v4483 = vadd.f32 0.0, %v4482
        %v4484 = vpop.f32.mrf.mxu0
        %4485 = vmatprep.mubr.f32.mxu0 0.0
        %4486 = vmatmul.mubr.f32.gmra.mxu0 %v4210
        %v4487 = vpop.f32.mrf.mxu0
        %v4488 = vadd.f32 0.0, %v4487
        %v4489 = vpop.f32.mrf.mxu0
        %4490 = vmatprep.mubr.f32.mxu0 0.0
        %4491 = vmatmul.mubr.f32.gmra.mxu0 %v4213
        %v4492 = vpop.f32.mrf.mxu0
        %v4493 = vadd.f32 0.0, %v4492
        %v4494 = vpop.f32.mrf.mxu0
        %4495 = vmatprep.mubr.f32.mxu0 0.0
        %4496 = vmatmul.mubr.f32.gmra.mxu0 %v4216
        %v4497 = vpop.f32.mrf.mxu0
        %v4498 = vadd.f32 0.0, %v4497
        %v4499 = vpop.f32.mrf.mxu0
        %4500 = vmatprep.mubr.f32.mxu0 0.0
        %4501 = vmatmul.mubr.f32.gmra.mxu0 %v4219
        %v4502 = vpop.f32.mrf.mxu0
        %v4503 = vadd.f32 0.0, %v4502
        %v4504 = vpop.f32.mrf.mxu0
        %4505 = vmatprep.mubr.f32.mxu0 0.0
        %4506 = vmatmul.mubr.f32.gmra.mxu0 %v4222
        %v4507 = vpop.f32.mrf.mxu0
        %v4508 = vadd.f32 0.0, %v4507
        %v4509 = vpop.f32.mrf.mxu0
        %4510 = vmatprep.mubr.f32.mxu0 0.0
        %4511 = vmatmul.mubr.f32.gmra.mxu0 %v4225
        %v4512 = vpop.f32.mrf.mxu0
        %v4513 = vadd.f32 0.0, %v4512
        %v4514 = vpop.f32.mrf.mxu0
        %4515 = vmatprep.mubr.f32.mxu0 0.0
        %4516 = vmatmul.mubr.f32.gmra.mxu0 %v4228
        %v4517 = vpop.f32.mrf.mxu0
        %v4518 = vadd.f32 0.0, %v4517
        %v4519 = vpop.f32.mrf.mxu0
        %4520 = vmatprep.mubr.f32.mxu0 0.0
        %4521 = vmatmul.mubr.f32.gmra.mxu0 %v4231
        %v4522 = vpop.f32.mrf.mxu0
        %v4523 = vadd.f32 0.0, %v4522
        %v4524 = vpop.f32.mrf.mxu0
        %4525 = vmatprep.mubr.f32.mxu0 0.0
        %4526 = vmatmul.mubr.f32.gmra.mxu0 %v4234
        %v4527 = vpop.f32.mrf.mxu0
        %v4528 = vadd.f32 0.0, %v4527
        %v4529 = vpop.f32.mrf.mxu0
        %4530 = vmatprep.mubr.f32.mxu0 0.0
        %4531 = vmatmul.mubr.f32.gmra.mxu0 %v4237
        %v4532 = vpop.f32.mrf.mxu0
        %v4533 = vadd.f32 0.0, %v4532
        %v4534 = vpop.f32.mrf.mxu0
        %4535 = vmatprep.mubr.f32.mxu0 0.0
        %4536 = vmatmul.mubr.f32.gmra.mxu0 %v4240
        %v4537 = vpop.f32.mrf.mxu0
        %v4538 = vadd.f32 0.0, %v4537
        %v4539 = vpop.f32.mrf.mxu0
        %4540 = vmatprep.mubr.f32.mxu0 0.0
        %4541 = vmatmul.mubr.f32.gmra.mxu0 %v4243
        %v4542 = vpop.f32.mrf.mxu0
        %v4543 = vadd.f32 0.0, %v4542
        %v4544 = vpop.f32.mrf.mxu0
        %4545 = vmatprep.mubr.f32.mxu0 0.0
        %4546 = vmatmul.mubr.f32.gmra.mxu0 %v4246
        %v4547 = vpop.f32.mrf.mxu0
        %v4548 = vadd.f32 0.0, %v4547
        %v4549 = vpop.f32.mrf.mxu0
        %4550 = vmatprep.mubr.f32.mxu0 0.0
        %4551 = vmatmul.mubr.f32.gmra.mxu0 %v4249
        %v4552 = vpop.f32.mrf.mxu0
        %v4553 = vadd.f32 0.0, %v4552
        %v4554 = vpop.f32.mrf.mxu0
        %4555 = vdwg.mxu0
        %v4556 = vld [vmem:[%s5 + $0x10] sm:$0xff]
        %v4557 = vld [vmem:[%s5 + $0x18] sm:$0xff]
        %v4558 = vld [vmem:[%s5 + $0x20] sm:$0xff]
        %v4559 = vld [vmem:[%s5 + $0x28] sm:$0xff]
        %v4560 = vld [vmem:[%s5 + $0x30] sm:$0x1]
        %v4561 = vlaneseq
        %v4562 = vshrl.u32 %v4561, 7
        %v4563 = vsub.s32 0, %v4562
        %v4564 = vrot.slane %v4560, %v4563
        %v4566 = vsel %vm1445, %v4089, 0
        %v4569 = vsel %vm1445, %v4090, 0
        %v4572 = vsel %vm1445, %v4091, 0
        %v4575 = vsel %vm1445, %v4092, 0
        %v4578 = vsel %vm1445, %v4093, 0
        %v4581 = vsel %vm1445, %v4094, 0
        %v4584 = vsel %vm1445, %v4095, 0
        %v4587 = vsel %vm1445, %v4096, 0
        %v4590 = vsel %vm1445, %v4097, 0
        %v4593 = vsel %vm1445, %v4098, 0
        %v4596 = vsel %vm1445, %v4099, 0
        %v4599 = vsel %vm1445, %v4100, 0
        %v4602 = vsel %vm1445, %v4101, 0
        %v4605 = vsel %vm1445, %v4102, 0
        %v4608 = vsel %vm1445, %v4103, 0
        %v4611 = vsel %vm1445, %v4104, 0
        %4613 = vmatprep.subr.mxu0 0.0
        %4614 = vmatpush1.msra.mxu0 0.0
        %4615 = vmatprep.subr.mxu0 0.0
        %4616 = vmatpush1.msra.mxu0 0.0
        %4617 = vmatprep.subr.mxu0 0.0
        %4618 = vmatpush1.msra.mxu0 0.0
        %4619 = vmatprep.subr.mxu0 0.0
        %4620 = vmatpush1.msra.mxu0 0.0
        %4621 = vmatprep.subr.mxu0 0.0
        %4622 = vmatpush1.msra.mxu0 0.0
        %4623 = vmatprep.subr.mxu0 0.0
        %4624 = vmatpush1.msra.mxu0 0.0
        %4625 = vmatprep.subr.mxu0 0.0
        %4626 = vmatpush1.msra.mxu0 0.0
        %4627 = vmatprep.subr.mxu0 0.0
        %4628 = vmatpush1.msra.mxu0 0.0
        %4629 = vmatprep.subr.mxu0 0.0
        %4630 = vmatpush1.msra.mxu0 0.0
        %4631 = vmatprep.subr.mxu0 0.0
        %4632 = vmatpush1.msra.mxu0 0.0
        %4633 = vmatprep.subr.mxu0 0.0
        %4634 = vmatpush1.msra.mxu0 0.0
        %4635 = vmatprep.subr.mxu0 0.0
        %4636 = vmatpush1.msra.mxu0 0.0
        %4637 = vmatprep.subr.mxu0 0.0
        %4638 = vmatpush1.msra.mxu0 %v4559
        %4639 = vmatprep.subr.mxu0 0.0
        %4640 = vmatpush1.msra.mxu0 %v4558
        %4641 = vmatprep.subr.mxu0 0.0
        %4642 = vmatpush1.msra.mxu0 %v4557
        %4643 = vmatprep.subr.mxu0 0.0
        %4644 = vmatpush1.msra.mxu0 %v4556
        %4645 = vmatprep.subr.mxu0 0.0
        %4646 = vmatpush2.msra.mxu0 0.0
        %4647 = vmatprep.subr.mxu0 0.0
        %4648 = vmatpush2.msra.mxu0 0.0
        %4649 = vmatprep.subr.mxu0 0.0
        %4650 = vmatpush2.msra.mxu0 0.0
        %4651 = vmatprep.subr.mxu0 0.0
        %4652 = vmatpush2.msra.mxu0 0.0
        %4653 = vmatprep.subr.mxu0 0.0
        %4654 = vmatpush2.msra.mxu0 0.0
        %4655 = vmatprep.subr.mxu0 0.0
        %4656 = vmatpush2.msra.mxu0 0.0
        %4657 = vmatprep.subr.mxu0 0.0
        %4658 = vmatpush2.msra.mxu0 0.0
        %4659 = vmatprep.subr.mxu0 0.0
        %4660 = vmatpush2.msra.mxu0 0.0
        %4661 = vmatprep.subr.mxu0 0.0
        %4662 = vmatpush2.msra.mxu0 0.0
        %4663 = vmatprep.subr.mxu0 0.0
        %4664 = vmatpush2.msra.mxu0 0.0
        %4665 = vmatprep.subr.mxu0 0.0
        %4666 = vmatpush2.msra.mxu0 0.0
        %4667 = vmatprep.subr.mxu0 0.0
        %4668 = vmatpush2.msra.mxu0 0.0
        %4669 = vmatprep.subr.mxu0 0.0
        %4670 = vmatpush2.msra.mxu0 0.0
        %4671 = vmatprep.subr.mxu0 0.0
        %4672 = vmatpush2.msra.mxu0 0.0
        %4673 = vmatprep.subr.mxu0 0.0
        %4674 = vmatpush2.msra.mxu0 0.0
        %4675 = vmatprep.subr.mxu0 0.0
        %4676 = vmatpush2.msra.mxu0 0.0
        %4677 = vmatprep.mubr.f32.mxu0 0.0
        %4678 = vmatmul.mubr.f32.gmra.mxu0 %v4566
        %v4679 = vpop.f32.mrf.mxu0
        %v4680 = vadd.f32 %v4564, %v4679
        %v4681 = vpop.f32.mrf.mxu0
        %4682 = vmatprep.mubr.f32.mxu0 0.0
        %4683 = vmatmul.mubr.f32.gmra.mxu0 %v4569
        %v4684 = vpop.f32.mrf.mxu0
        %v4685 = vadd.f32 %v4564, %v4684
        %v4686 = vpop.f32.mrf.mxu0
        %4687 = vmatprep.mubr.f32.mxu0 0.0
        %4688 = vmatmul.mubr.f32.gmra.mxu0 %v4572
        %v4689 = vpop.f32.mrf.mxu0
        %v4690 = vadd.f32 %v4564, %v4689
        %v4691 = vpop.f32.mrf.mxu0
        %4692 = vmatprep.mubr.f32.mxu0 0.0
        %4693 = vmatmul.mubr.f32.gmra.mxu0 %v4575
        %v4694 = vpop.f32.mrf.mxu0
        %v4695 = vadd.f32 %v4564, %v4694
        %v4696 = vpop.f32.mrf.mxu0
        %4697 = vmatprep.mubr.f32.mxu0 0.0
        %4698 = vmatmul.mubr.f32.gmra.mxu0 %v4578
        %v4699 = vpop.f32.mrf.mxu0
        %v4700 = vadd.f32 %v4564, %v4699
        %v4701 = vpop.f32.mrf.mxu0
        %4702 = vmatprep.mubr.f32.mxu0 0.0
        %4703 = vmatmul.mubr.f32.gmra.mxu0 %v4581
        %v4704 = vpop.f32.mrf.mxu0
        %v4705 = vadd.f32 %v4564, %v4704
        %v4706 = vpop.f32.mrf.mxu0
        %4707 = vmatprep.mubr.f32.mxu0 0.0
        %4708 = vmatmul.mubr.f32.gmra.mxu0 %v4584
        %v4709 = vpop.f32.mrf.mxu0
        %v4710 = vadd.f32 %v4564, %v4709
        %v4711 = vpop.f32.mrf.mxu0
        %4712 = vmatprep.mubr.f32.mxu0 0.0
        %4713 = vmatmul.mubr.f32.gmra.mxu0 %v4587
        %v4714 = vpop.f32.mrf.mxu0
        %v4715 = vadd.f32 %v4564, %v4714
        %v4716 = vpop.f32.mrf.mxu0
        %4717 = vmatprep.mubr.f32.mxu0 0.0
        %4718 = vmatmul.mubr.f32.gmra.mxu0 %v4590
        %v4719 = vpop.f32.mrf.mxu0
        %v4720 = vadd.f32 %v4564, %v4719
        %v4721 = vpop.f32.mrf.mxu0
        %4722 = vmatprep.mubr.f32.mxu0 0.0
        %4723 = vmatmul.mubr.f32.gmra.mxu0 %v4593
        %v4724 = vpop.f32.mrf.mxu0
        %v4725 = vadd.f32 %v4564, %v4724
        %v4726 = vpop.f32.mrf.mxu0
        %4727 = vmatprep.mubr.f32.mxu0 0.0
        %4728 = vmatmul.mubr.f32.gmra.mxu0 %v4596
        %v4729 = vpop.f32.mrf.mxu0
        %v4730 = vadd.f32 %v4564, %v4729
        %v4731 = vpop.f32.mrf.mxu0
        %4732 = vmatprep.mubr.f32.mxu0 0.0
        %4733 = vmatmul.mubr.f32.gmra.mxu0 %v4599
        %v4734 = vpop.f32.mrf.mxu0
        %v4735 = vadd.f32 %v4564, %v4734
        %v4736 = vpop.f32.mrf.mxu0
        %4737 = vmatprep.mubr.f32.mxu0 0.0
        %4738 = vmatmul.mubr.f32.gmra.mxu0 %v4602
        %v4739 = vpop.f32.mrf.mxu0
        %v4740 = vadd.f32 %v4564, %v4739
        %v4741 = vpop.f32.mrf.mxu0
        %4742 = vmatprep.mubr.f32.mxu0 0.0
        %4743 = vmatmul.mubr.f32.gmra.mxu0 %v4605
        %v4744 = vpop.f32.mrf.mxu0
        %v4745 = vadd.f32 %v4564, %v4744
        %v4746 = vpop.f32.mrf.mxu0
        %4747 = vmatprep.mubr.f32.mxu0 0.0
        %4748 = vmatmul.mubr.f32.gmra.mxu0 %v4608
        %v4749 = vpop.f32.mrf.mxu0
        %v4750 = vadd.f32 %v4564, %v4749
        %v4751 = vpop.f32.mrf.mxu0
        %4752 = vmatprep.mubr.f32.mxu0 0.0
        %4753 = vmatmul.mubr.f32.gmra.mxu0 %v4611
        %v4754 = vpop.f32.mrf.mxu0
        %v4755 = vadd.f32 %v4564, %v4754
        %v4756 = vpop.f32.mrf.mxu0
        %4757 = vdwg.mxu0
        %v4758 = vxor.u32 %v4680, 2147483648
        %v4759 = vxor.u32 %v4685, 2147483648
        %v4760 = vxor.u32 %v4690, 2147483648
        %v4761 = vxor.u32 %v4695, 2147483648
        %v4762 = vxor.u32 %v4700, 2147483648
        %v4763 = vxor.u32 %v4705, 2147483648
        %v4764 = vxor.u32 %v4710, 2147483648
        %v4765 = vxor.u32 %v4715, 2147483648
        %v4766 = vxor.u32 %v4720, 2147483648
        %v4767 = vxor.u32 %v4725, 2147483648
        %v4768 = vxor.u32 %v4730, 2147483648
        %v4769 = vxor.u32 %v4735, 2147483648
        %v4770 = vxor.u32 %v4740, 2147483648
        %v4771 = vxor.u32 %v4745, 2147483648
        %v4772 = vxor.u32 %v4750, 2147483648
        %v4773 = vxor.u32 %v4755, 2147483648
        %v4774 = vmul.f32 %v4758, 1.442695
        %v4775 = vpow.pop %v4774
        %v4776 = vmul.f32 %v4759, 1.442695
        %v4777 = vpow.pop %v4776
        %v4778 = vmul.f32 %v4760, 1.442695
        %v4779 = vpow.pop %v4778
        %v4780 = vmul.f32 %v4761, 1.442695
        %v4781 = vpow.pop %v4780
        %v4782 = vmul.f32 %v4762, 1.442695
        %v4783 = vpow.pop %v4782
        %v4784 = vmul.f32 %v4763, 1.442695
        %v4785 = vpow.pop %v4784
        %v4786 = vmul.f32 %v4764, 1.442695
        %v4787 = vpow.pop %v4786
        %v4788 = vmul.f32 %v4765, 1.442695
        %v4789 = vpow.pop %v4788
        %v4790 = vmul.f32 %v4766, 1.442695
        %v4791 = vpow.pop %v4790
        %v4792 = vmul.f32 %v4767, 1.442695
        %v4793 = vpow.pop %v4792
        %v4794 = vmul.f32 %v4768, 1.442695
        %v4795 = vpow.pop %v4794
        %v4796 = vmul.f32 %v4769, 1.442695
        %v4797 = vpow.pop %v4796
        %v4798 = vmul.f32 %v4770, 1.442695
        %v4799 = vpow.pop %v4798
        %v4800 = vmul.f32 %v4771, 1.442695
        %v4801 = vpow.pop %v4800
        %v4802 = vmul.f32 %v4772, 1.442695
        %v4803 = vpow.pop %v4802
        %v4804 = vmul.f32 %v4773, 1.442695
        %v4805 = vpow.pop %v4804
        %v4806 = vadd.f32 %v4775, 1.0
        %v4807 = vadd.f32 %v4777, 1.0
        %v4808 = vadd.f32 %v4779, 1.0
        %v4809 = vadd.f32 %v4781, 1.0
        %v4810 = vadd.f32 %v4783, 1.0
        %v4811 = vadd.f32 %v4785, 1.0
        %v4812 = vadd.f32 %v4787, 1.0
        %v4813 = vadd.f32 %v4789, 1.0
        %v4814 = vadd.f32 %v4791, 1.0
        %v4815 = vadd.f32 %v4793, 1.0
        %v4816 = vadd.f32 %v4795, 1.0
        %v4817 = vadd.f32 %v4797, 1.0
        %v4818 = vadd.f32 %v4799, 1.0
        %v4819 = vadd.f32 %v4801, 1.0
        %v4820 = vadd.f32 %v4803, 1.0
        %v4821 = vadd.f32 %v4805, 1.0
        %v4822 = vrcp.pop %v4806
        %v4823 = vmul.f32 1.0, %v4822
        %v4824 = vrcp.pop %v4807
        %v4825 = vmul.f32 1.0, %v4824
        %v4826 = vrcp.pop %v4808
        %v4827 = vmul.f32 1.0, %v4826
        %v4828 = vrcp.pop %v4809
        %v4829 = vmul.f32 1.0, %v4828
        %v4830 = vrcp.pop %v4810
        %v4831 = vmul.f32 1.0, %v4830
        %v4832 = vrcp.pop %v4811
        %v4833 = vmul.f32 1.0, %v4832
        %v4834 = vrcp.pop %v4812
        %v4835 = vmul.f32 1.0, %v4834
        %v4836 = vrcp.pop %v4813
        %v4837 = vmul.f32 1.0, %v4836
        %v4838 = vrcp.pop %v4814
        %v4839 = vmul.f32 1.0, %v4838
        %v4840 = vrcp.pop %v4815
        %v4841 = vmul.f32 1.0, %v4840
        %v4842 = vrcp.pop %v4816
        %v4843 = vmul.f32 1.0, %v4842
        %v4844 = vrcp.pop %v4817
        %v4845 = vmul.f32 1.0, %v4844
        %v4846 = vrcp.pop %v4818
        %v4847 = vmul.f32 1.0, %v4846
        %v4848 = vrcp.pop %v4819
        %v4849 = vmul.f32 1.0, %v4848
        %v4850 = vrcp.pop %v4820
        %v4851 = vmul.f32 1.0, %v4850
        %v4852 = vrcp.pop %v4821
        %v4853 = vmul.f32 1.0, %v4852
        %4854 = vst.msk [vmem:[%s505] sm:$0xff] %vm1445, %v4089
        %4855 = vst.msk [vmem:[%s505 + $0x8] sm:$0xff] %vm1445, %v4090
        %4856 = vst.msk [vmem:[%s505 + $0x10] sm:$0xff] %vm1445, %v4091
        %4857 = vst.msk [vmem:[%s505 + $0x18] sm:$0xff] %vm1445, %v4092
        %4858 = vst.msk [vmem:[%s505 + $0x20] sm:$0xff] %vm1445, %v4093
        %4859 = vst.msk [vmem:[%s505 + $0x28] sm:$0xff] %vm1445, %v4094
        %4860 = vst.msk [vmem:[%s505 + $0x30] sm:$0xff] %vm1445, %v4095
        %4861 = vst.msk [vmem:[%s505 + $0x38] sm:$0xff] %vm1445, %v4096
        %4862 = vst.msk [vmem:[%s505 + $0x40] sm:$0xff] %vm1445, %v4097
        %4863 = vst.msk [vmem:[%s505 + $0x48] sm:$0xff] %vm1445, %v4098
        %4864 = vst.msk [vmem:[%s505 + $0x50] sm:$0xff] %vm1445, %v4099
        %4865 = vst.msk [vmem:[%s505 + $0x58] sm:$0xff] %vm1445, %v4100
        %4866 = vst.msk [vmem:[%s505 + $0x60] sm:$0xff] %vm1445, %v4101
        %4867 = vst.msk [vmem:[%s505 + $0x68] sm:$0xff] %vm1445, %v4102
        %4868 = vst.msk [vmem:[%s505 + $0x70] sm:$0xff] %vm1445, %v4103
        %4869 = vst.msk [vmem:[%s505 + $0x78] sm:$0xff] %vm1445, %v4104
        %v4870 = vmul.f32 %v4318, %v4823
        %v4871 = vmul.f32 %v4323, %v4825
        %v4872 = vmul.f32 %v4328, %v4827
        %v4873 = vmul.f32 %v4333, %v4829
        %v4874 = vmul.f32 %v4338, %v4831
        %v4875 = vmul.f32 %v4343, %v4833
        %v4876 = vmul.f32 %v4348, %v4835
        %v4877 = vmul.f32 %v4353, %v4837
        %v4878 = vmul.f32 %v4358, %v4839
        %v4879 = vmul.f32 %v4363, %v4841
        %v4880 = vmul.f32 %v4368, %v4843
        %v4881 = vmul.f32 %v4373, %v4845
        %v4882 = vmul.f32 %v4378, %v4847
        %v4883 = vmul.f32 %v4383, %v4849
        %v4884 = vmul.f32 %v4388, %v4851
        %v4885 = vmul.f32 %v4393, %v4853
        %4902 = vrot.lane.b32.xlu0 %v4870, 32
        %v4903 = vpop.permute.xlu0 %4902
        %4904 = vrot.lane.b32.xlu0 %v4871, 32
        %v4905 = vpop.permute.xlu0 %4904
        %4906 = vrot.lane.b32.xlu0 %v4872, 32
        %v4907 = vpop.permute.xlu0 %4906
        %4908 = vrot.lane.b32.xlu0 %v4873, 32
        %v4909 = vpop.permute.xlu0 %4908
        %4910 = vrot.lane.b32.xlu0 %v4874, 32
        %v4911 = vpop.permute.xlu0 %4910
        %4912 = vrot.lane.b32.xlu0 %v4875, 32
        %v4913 = vpop.permute.xlu0 %4912
        %4914 = vrot.lane.b32.xlu0 %v4876, 32
        %v4915 = vpop.permute.xlu0 %4914
        %4916 = vrot.lane.b32.xlu0 %v4877, 32
        %v4917 = vpop.permute.xlu0 %4916
        %4918 = vrot.lane.b32.xlu0 %v4878, 32
        %v4919 = vpop.permute.xlu0 %4918
        %4920 = vrot.lane.b32.xlu0 %v4879, 32
        %v4921 = vpop.permute.xlu0 %4920
        %4922 = vrot.lane.b32.xlu0 %v4880, 32
        %v4923 = vpop.permute.xlu0 %4922
        %4924 = vrot.lane.b32.xlu0 %v4881, 32
        %v4925 = vpop.permute.xlu0 %4924
        %4926 = vrot.lane.b32.xlu0 %v4882, 32
        %v4927 = vpop.permute.xlu0 %4926
        %4928 = vrot.lane.b32.xlu0 %v4883, 32
        %v4929 = vpop.permute.xlu0 %4928
        %4930 = vrot.lane.b32.xlu0 %v4884, 32
        %v4931 = vpop.permute.xlu0 %4930
        %4932 = vrot.lane.b32.xlu0 %v4885, 32
        %v4933 = vpop.permute.xlu0 %4932
        %vm4950 = vcmask 392448
        %4951 = vst.msk [vmem:[%s505] sm:$0xff] %vm4950, %v4903
        %4952 = vst.msk [vmem:[%s505 + $0x8] sm:$0xff] %vm4950, %v4905
        %4953 = vst.msk [vmem:[%s505 + $0x10] sm:$0xff] %vm4950, %v4907
        %4954 = vst.msk [vmem:[%s505 + $0x18] sm:$0xff] %vm4950, %v4909
        %4955 = vst.msk [vmem:[%s505 + $0x20] sm:$0xff] %vm4950, %v4911
        %4956 = vst.msk [vmem:[%s505 + $0x28] sm:$0xff] %vm4950, %v4913
        %4957 = vst.msk [vmem:[%s505 + $0x30] sm:$0xff] %vm4950, %v4915
        %4958 = vst.msk [vmem:[%s505 + $0x38] sm:$0xff] %vm4950, %v4917
        %4959 = vst.msk [vmem:[%s505 + $0x40] sm:$0xff] %vm4950, %v4919
        %4960 = vst.msk [vmem:[%s505 + $0x48] sm:$0xff] %vm4950, %v4921
        %4961 = vst.msk [vmem:[%s505 + $0x50] sm:$0xff] %vm4950, %v4923
        %4962 = vst.msk [vmem:[%s505 + $0x58] sm:$0xff] %vm4950, %v4925
        %4963 = vst.msk [vmem:[%s505 + $0x60] sm:$0xff] %vm4950, %v4927
        %4964 = vst.msk [vmem:[%s505 + $0x68] sm:$0xff] %vm4950, %v4929
        %4965 = vst.msk [vmem:[%s505 + $0x70] sm:$0xff] %vm4950, %v4931
        %4966 = vst.msk [vmem:[%s505 + $0x78] sm:$0xff] %vm4950, %v4933
        %v4967 = vmul.f32 %v4398, %v4823
        %v4968 = vmul.f32 %v4403, %v4825
        %v4969 = vmul.f32 %v4408, %v4827
        %v4970 = vmul.f32 %v4413, %v4829
        %v4971 = vmul.f32 %v4418, %v4831
        %v4972 = vmul.f32 %v4423, %v4833
        %v4973 = vmul.f32 %v4428, %v4835
        %v4974 = vmul.f32 %v4433, %v4837
        %v4975 = vmul.f32 %v4438, %v4839
        %v4976 = vmul.f32 %v4443, %v4841
        %v4977 = vmul.f32 %v4448, %v4843
        %v4978 = vmul.f32 %v4453, %v4845
        %v4979 = vmul.f32 %v4458, %v4847
        %v4980 = vmul.f32 %v4463, %v4849
        %v4981 = vmul.f32 %v4468, %v4851
        %v4982 = vmul.f32 %v4473, %v4853
        %4999 = vrot.lane.b32.xlu0 %v4967, 48
        %v5000 = vpop.permute.xlu0 %4999
        %5001 = vrot.lane.b32.xlu0 %v4968, 48
        %v5002 = vpop.permute.xlu0 %5001
        %5003 = vrot.lane.b32.xlu0 %v4969, 48
        %v5004 = vpop.permute.xlu0 %5003
        %5005 = vrot.lane.b32.xlu0 %v4970, 48
        %v5006 = vpop.permute.xlu0 %5005
        %5007 = vrot.lane.b32.xlu0 %v4971, 48
        %v5008 = vpop.permute.xlu0 %5007
        %5009 = vrot.lane.b32.xlu0 %v4972, 48
        %v5010 = vpop.permute.xlu0 %5009
        %5011 = vrot.lane.b32.xlu0 %v4973, 48
        %v5012 = vpop.permute.xlu0 %5011
        %5013 = vrot.lane.b32.xlu0 %v4974, 48
        %v5014 = vpop.permute.xlu0 %5013
        %5015 = vrot.lane.b32.xlu0 %v4975, 48
        %v5016 = vpop.permute.xlu0 %5015
        %5017 = vrot.lane.b32.xlu0 %v4976, 48
        %v5018 = vpop.permute.xlu0 %5017
        %5019 = vrot.lane.b32.xlu0 %v4977, 48
        %v5020 = vpop.permute.xlu0 %5019
        %5021 = vrot.lane.b32.xlu0 %v4978, 48
        %v5022 = vpop.permute.xlu0 %5021
        %5023 = vrot.lane.b32.xlu0 %v4979, 48
        %v5024 = vpop.permute.xlu0 %5023
        %5025 = vrot.lane.b32.xlu0 %v4980, 48
        %v5026 = vpop.permute.xlu0 %5025
        %5027 = vrot.lane.b32.xlu0 %v4981, 48
        %v5028 = vpop.permute.xlu0 %5027
        %5029 = vrot.lane.b32.xlu0 %v4982, 48
        %v5030 = vpop.permute.xlu0 %5029
        %vm5047 = vcmask 523648
        %5048 = vst.msk [vmem:[%s505] sm:$0xff] %vm5047, %v5000
        %5049 = vst.msk [vmem:[%s505 + $0x8] sm:$0xff] %vm5047, %v5002
        %5050 = vst.msk [vmem:[%s505 + $0x10] sm:$0xff] %vm5047, %v5004
        %5051 = vst.msk [vmem:[%s505 + $0x18] sm:$0xff] %vm5047, %v5006
        %5052 = vst.msk [vmem:[%s505 + $0x20] sm:$0xff] %vm5047, %v5008
        %5053 = vst.msk [vmem:[%s505 + $0x28] sm:$0xff] %vm5047, %v5010
        %5054 = vst.msk [vmem:[%s505 + $0x30] sm:$0xff] %vm5047, %v5012
        %5055 = vst.msk [vmem:[%s505 + $0x38] sm:$0xff] %vm5047, %v5014
        %5056 = vst.msk [vmem:[%s505 + $0x40] sm:$0xff] %vm5047, %v5016
        %5057 = vst.msk [vmem:[%s505 + $0x48] sm:$0xff] %vm5047, %v5018
        %5058 = vst.msk [vmem:[%s505 + $0x50] sm:$0xff] %vm5047, %v5020
        %5059 = vst.msk [vmem:[%s505 + $0x58] sm:$0xff] %vm5047, %v5022
        %5060 = vst.msk [vmem:[%s505 + $0x60] sm:$0xff] %vm5047, %v5024
        %5061 = vst.msk [vmem:[%s505 + $0x68] sm:$0xff] %vm5047, %v5026
        %5062 = vst.msk [vmem:[%s505 + $0x70] sm:$0xff] %vm5047, %v5028
        %5063 = vst.msk [vmem:[%s505 + $0x78] sm:$0xff] %vm5047, %v5030
        %v5064 = vmul.f32 %v4478, %v4823
        %v5065 = vmul.f32 %v4483, %v4825
        %v5066 = vmul.f32 %v4488, %v4827
        %v5067 = vmul.f32 %v4493, %v4829
        %v5068 = vmul.f32 %v4498, %v4831
        %v5069 = vmul.f32 %v4503, %v4833
        %v5070 = vmul.f32 %v4508, %v4835
        %v5071 = vmul.f32 %v4513, %v4837
        %v5072 = vmul.f32 %v4518, %v4839
        %v5073 = vmul.f32 %v4523, %v4841
        %v5074 = vmul.f32 %v4528, %v4843
        %v5075 = vmul.f32 %v4533, %v4845
        %v5076 = vmul.f32 %v4538, %v4847
        %v5077 = vmul.f32 %v4543, %v4849
        %v5078 = vmul.f32 %v4548, %v4851
        %v5079 = vmul.f32 %v4553, %v4853
        %5096 = vrot.lane.b32.xlu0 %v5064, 64
        %v5097 = vpop.permute.xlu0 %5096
        %5098 = vrot.lane.b32.xlu0 %v5065, 64
        %v5099 = vpop.permute.xlu0 %5098
        %5100 = vrot.lane.b32.xlu0 %v5066, 64
        %v5101 = vpop.permute.xlu0 %5100
        %5102 = vrot.lane.b32.xlu0 %v5067, 64
        %v5103 = vpop.permute.xlu0 %5102
        %5104 = vrot.lane.b32.xlu0 %v5068, 64
        %v5105 = vpop.permute.xlu0 %5104
        %5106 = vrot.lane.b32.xlu0 %v5069, 64
        %v5107 = vpop.permute.xlu0 %5106
        %5108 = vrot.lane.b32.xlu0 %v5070, 64
        %v5109 = vpop.permute.xlu0 %5108
        %5110 = vrot.lane.b32.xlu0 %v5071, 64
        %v5111 = vpop.permute.xlu0 %5110
        %5112 = vrot.lane.b32.xlu0 %v5072, 64
        %v5113 = vpop.permute.xlu0 %5112
        %5114 = vrot.lane.b32.xlu0 %v5073, 64
        %v5115 = vpop.permute.xlu0 %5114
        %5116 = vrot.lane.b32.xlu0 %v5074, 64
        %v5117 = vpop.permute.xlu0 %5116
        %5118 = vrot.lane.b32.xlu0 %v5075, 64
        %v5119 = vpop.permute.xlu0 %5118
        %5120 = vrot.lane.b32.xlu0 %v5076, 64
        %v5121 = vpop.permute.xlu0 %5120
        %5122 = vrot.lane.b32.xlu0 %v5077, 64
        %v5123 = vpop.permute.xlu0 %5122
        %5124 = vrot.lane.b32.xlu0 %v5078, 64
        %v5125 = vpop.permute.xlu0 %5124
        %5126 = vrot.lane.b32.xlu0 %v5079, 64
        %v5127 = vpop.permute.xlu0 %5126
        %vm5144 = vcmask 654848
        %5145 = vst.msk [vmem:[%s505] sm:$0xff] %vm5144, %v5097
        %5146 = vst.msk [vmem:[%s505 + $0x8] sm:$0xff] %vm5144, %v5099
        %5147 = vst.msk [vmem:[%s505 + $0x10] sm:$0xff] %vm5144, %v5101
        %5148 = vst.msk [vmem:[%s505 + $0x18] sm:$0xff] %vm5144, %v5103
        %5149 = vst.msk [vmem:[%s505 + $0x20] sm:$0xff] %vm5144, %v5105
        %5150 = vst.msk [vmem:[%s505 + $0x28] sm:$0xff] %vm5144, %v5107
        %5151 = vst.msk [vmem:[%s505 + $0x30] sm:$0xff] %vm5144, %v5109
        %5152 = vst.msk [vmem:[%s505 + $0x38] sm:$0xff] %vm5144, %v5111
        %5153 = vst.msk [vmem:[%s505 + $0x40] sm:$0xff] %vm5144, %v5113
        %5154 = vst.msk [vmem:[%s505 + $0x48] sm:$0xff] %vm5144, %v5115
        %5155 = vst.msk [vmem:[%s505 + $0x50] sm:$0xff] %vm5144, %v5117
        %5156 = vst.msk [vmem:[%s505 + $0x58] sm:$0xff] %vm5144, %v5119
        %5157 = vst.msk [vmem:[%s505 + $0x60] sm:$0xff] %vm5144, %v5121
        %5158 = vst.msk [vmem:[%s505 + $0x68] sm:$0xff] %vm5144, %v5123
        %5159 = vst.msk [vmem:[%s505 + $0x70] sm:$0xff] %vm5144, %v5125
        %5160 = vst.msk [vmem:[%s505 + $0x78] sm:$0xff] %vm5144, %v5127
        %vm5161 = vcmask 1048192
        %5162 = vst.msk [vmem:[%s505] sm:$0xff] %vm5161, 0.0
        %5163 = vst.msk [vmem:[%s505 + $0x8] sm:$0xff] %vm5161, 0.0
        %5164 = vst.msk [vmem:[%s505 + $0x10] sm:$0xff] %vm5161, 0.0
        %5165 = vst.msk [vmem:[%s505 + $0x18] sm:$0xff] %vm5161, 0.0
        %5166 = vst.msk [vmem:[%s505 + $0x20] sm:$0xff] %vm5161, 0.0
        %5167 = vst.msk [vmem:[%s505 + $0x28] sm:$0xff] %vm5161, 0.0
        %5168 = vst.msk [vmem:[%s505 + $0x30] sm:$0xff] %vm5161, 0.0
        %5169 = vst.msk [vmem:[%s505 + $0x38] sm:$0xff] %vm5161, 0.0
        %5170 = vst.msk [vmem:[%s505 + $0x40] sm:$0xff] %vm5161, 0.0
        %5171 = vst.msk [vmem:[%s505 + $0x48] sm:$0xff] %vm5161, 0.0
        %5172 = vst.msk [vmem:[%s505 + $0x50] sm:$0xff] %vm5161, 0.0
        %5173 = vst.msk [vmem:[%s505 + $0x58] sm:$0xff] %vm5161, 0.0
        %5174 = vst.msk [vmem:[%s505 + $0x60] sm:$0xff] %vm5161, 0.0
        %5175 = vst.msk [vmem:[%s505 + $0x68] sm:$0xff] %vm5161, 0.0
        %5176 = vst.msk [vmem:[%s505 + $0x70] sm:$0xff] %vm5161, 0.0
        %5177 = vst.msk [vmem:[%s505 + $0x78] sm:$0xff] %vm5161, 0.0
        %s5178 = sand.u32 %s169, 1
        %s5179 = scalar_lea.sflag [#allocation4], %s5178
        %s5180 = sand.u32 %s169, 1
        %s5181 = smul.addr %s5180, 128
        %s5182 = scalar_lea.vmem [#allocation3], %s5181
        // Predicated region
        $region83: #{tpu_custom_call.1} parent=77 // pred_check
          %p5183 = pneg %p179
        $region84: #{tpu_custom_call.1} parent=77 // pred_check_branch
          %5185 = sbr.rel (%p5183) target = $region86
        $region85: #{tpu_custom_call.1} parent=77 // pred_region
          %s5186 = smul.u32 16, %s20
          %s5188 = ssub.s32 2048, 2048
          %5189 = vsyncadd %s5179, %s5188
          %s5190 = smul.addr %s5186, 128
          %s5191 = scalar_lea.hbm %s6, %s5190
          %s5192 = sshll.u32 %s5182, 4
          %s5193 = int_to_ptr.vmem [resolvable:$true] %s5192
          %5198 = dma.vmem_to_hbm [thread:$0]  %s5193, 2048, %s5191, %s5179, 128, 128, 8
        $region86: #{tpu_custom_call.1} parent=77 // pred_fallthru
          _
      $region78: #{tpu_custom_call.1} parent=5 // pred_fallthru
        _
      %p5199 = scmp.le.s32.totalorder 2, %s15
      // Predicated region
      $region87: #{tpu_custom_call.1} parent=5 // pred_check
        %p5200 = pneg %p5199
      $region88: #{tpu_custom_call.1} parent=5 // pred_check_branch
        %5202 = sbr.rel (%p5200) target = $region90
      $region89: #{tpu_custom_call.1} parent=5 // pred_region
        %s5203 = ssub.s32 %s15, 2
        // Predicated region
        $region91: #{tpu_custom_call.1} parent=89 // pred_check
          %p5204 = pneg %p185
        $region92: #{tpu_custom_call.1} parent=89 // pred_check_branch
          %5206 = sbr.rel (%p5204) target = $region94
        $region93: #{tpu_custom_call.1} parent=89 // pred_region
          %s5207 = sand.u32 %s170, 1
          %s5208 = scalar_lea.sflag [#allocation4], %s5207
          %s5209 = sand.u32 %s170, 1
          %s5210 = smul.addr %s5209, 128
          %s5211 = scalar_lea.vmem [#allocation3], %s5210
          %5212 = dma.done %s5208, 2048
        $region94: #{tpu_custom_call.1} parent=89 // pred_fallthru
          _
      $region90: #{tpu_custom_call.1} parent=5 // pred_fallthru
        _
    $region6: #{tpu_custom_call.1} parent=1 // loop_footer
      %s19 = sadd.s32 1, %s15
    $region7: #{tpu_custom_call.1} parent=1 // loop_footer_branch
      %14 = sbr.rel target = $region3
    $region8: #{tpu_custom_call.1} parent=1 // loop_exit
      _
    %5213 = vsyncpa [#allocation4], 1
    %s5214 = scalar_lea.sflag [#allocation4], 1
    %5215 = vsyncpa %s5214, 1

</llo_original>
